<compile_context>
chip_gen: v7x
topology: tpu7x:2x2x1
jax: 0.10.0
libtpu: 0.0.40
codegen_flags: <defaults>
</compile_context>

<pallas_src>
import functools
import math

import jax
import jax.numpy as jnp
from jax.experimental import pallas as pl
from jax.experimental.pallas import tpu as pltpu


FPN_CHANNELS = 32
NUM_ANCHORS = 3                       # 3 aspect ratios per location
ANCHOR_STRIDES = (4, 8, 16, 32, 64)   # 5 FPN levels
ASPECT_RATIOS = (0.5, 1.0, 2.0)
BBOX_XFORM_CLIP = math.log(1000.0 / 16.0)


def _round_up(n, m):
    return ((n + m - 1) // m) * m


# ----------------------------------------------------------------------------
# im2col (channel-major): K = 9*Cin on sublanes, spatial positions on lanes,
# so the Pallas kernels below are single lane-dense GEMMs.
# ----------------------------------------------------------------------------
def _im2col_3x3(x_nchw, *, stride):
    B, C, H, W = x_nchw.shape
    Ho = (H - 1) // stride + 1
    Wo = (W - 1) // stride + 1
    xp = jnp.pad(x_nchw, ((0, 0), (0, 0), (1, 1), (1, 1)))
    slabs = []
    for di in range(3):
        for dj in range(3):
            slabs.append(xp[:, :,
                            di:di + (Ho - 1) * stride + 1:stride,
                            dj:dj + (Wo - 1) * stride + 1:stride])
    pat = jnp.concatenate(slabs, axis=1)                  # (B, 9C, Ho, Wo)
    return pat.reshape(B, 9 * C, Ho * Wo), Ho, Wo


# ----------------------------------------------------------------------------
# Pallas kernel 1: a whole 3x3 conv (+bias +ReLU) as one GEMM per image
# ----------------------------------------------------------------------------
def _gemm_bias_act_kernel(x_ref, w_ref, b_ref, o_ref, *, act):
    """x_ref: (K, N) bf16; w_ref: (Cout, K) bf16; b_ref: (Cout, 1) f32;
       o_ref: (Cout, N)."""
    acc = jnp.dot(w_ref[...], x_ref[...], preferred_element_type=jnp.float32)
    acc = acc + b_ref[...]
    if act == "relu":
        acc = jnp.maximum(acc, 0.0)
    o_ref[...] = acc.astype(o_ref.dtype)


def conv2d_3x3(x_nchw, w, b, *, stride=1, act="relu", out_dtype=jnp.bfloat16):
    B, Cin, H, W = x_nchw.shape
    Cout = w.shape[0]
    patches, Ho, Wo = _im2col_3x3(x_nchw, stride=stride)
    K = 9 * Cin
    N = Ho * Wo
    Np = _round_up(N, 8)
    if Np != N:
        patches = jnp.pad(patches, ((0, 0), (0, 0), (0, Np - N)))
    patches = patches.astype(jnp.bfloat16)
    wmat = jnp.transpose(w, (0, 2, 3, 1)).reshape(Cout, K).astype(jnp.bfloat16)
    bias = b.reshape(Cout, 1).astype(jnp.float32)
    out = pl.pallas_call(
        functools.partial(_gemm_bias_act_kernel, act=act),
        out_shape=jax.ShapeDtypeStruct((B, Cout, Np), out_dtype),
        grid=(B,),
        in_specs=[
            pl.BlockSpec((None, K, Np), lambda bb: (bb, 0, 0)),
            pl.BlockSpec((Cout, K), lambda bb: (0, 0)),
            pl.BlockSpec((Cout, 1), lambda bb: (0, 0)),
        ],
        out_specs=pl.BlockSpec((None, Cout, Np), lambda bb: (bb, 0, 0)),
        compiler_params=pltpu.CompilerParams(dimension_semantics=("parallel",)),
    )(patches, wmat, bias)
    return out[:, :, :N].reshape(B, Cout, Ho, Wo)


# ----------------------------------------------------------------------------
# Pallas kernel 2: fused RPN head over ALL FPN levels at once
#   (3x3 conv + ReLU + fused cls/bbox 1x1 convs, two chained GEMMs)
# ----------------------------------------------------------------------------
def _rpn_head_kernel(x_ref, w1_ref, b1_ref, w2_ref, b2_ref, o_ref):
    t = jnp.dot(w1_ref[...], x_ref[...], preferred_element_type=jnp.float32)
    t = jnp.maximum(t + b1_ref[...], 0.0).astype(jnp.bfloat16)
    h = jnp.dot(w2_ref[...], t, preferred_element_type=jnp.float32)
    o_ref[...] = h + b2_ref[...]


def rpn_head(params, features):
    wc, bc = params["rpn_conv"]
    wcls, bcls = params["rpn_cls"]
    wbox, bbox_bias = params["rpn_bbox"]
    Cmid, Cin = wc.shape[0], wc.shape[1]
    K = 9 * Cin
    nout = NUM_ANCHORS + 4 * NUM_ANCHORS               # 15
    nout_p = _round_up(nout, 8)                        # pad to 16 (lane-friendlier)

    w1 = jnp.transpose(wc, (0, 2, 3, 1)).reshape(Cmid, K).astype(jnp.bfloat16)
    b1 = bc.reshape(Cmid, 1).astype(jnp.float32)
    w2 = jnp.concatenate([wcls[:, :, 0, 0], wbox[:, :, 0, 0]], axis=0)  # (15, Cmid)
    w2 = jnp.pad(w2, ((0, nout_p - nout), (0, 0))).astype(jnp.bfloat16)
    b2 = jnp.pad(jnp.concatenate([bcls, bbox_bias], axis=0),
                 (0, nout_p - nout)).reshape(nout_p, 1).astype(jnp.float32)

    # Pack all levels along the lane (spatial) axis -> a single fused call.
    pats, lvl_shapes = [], []
    for f in features:
        p, H, W = _im2col_3x3(f, stride=1)
        pats.append(p)
        lvl_shapes.append((H, W))
    x = jnp.concatenate(pats, axis=2)                  # (B, K, Ntot)
    B, _, Ntot = x.shape
    Np = _round_up(Ntot, 8)
    if Np != Ntot:
        x = jnp.pad(x, ((0, 0), (0, 0), (0, Np - Ntot)))
    x = x.astype(jnp.bfloat16)

    out = pl.pallas_call(
        _rpn_head_kernel,
        out_shape=jax.ShapeDtypeStruct((B, nout_p, Np), jnp.float32),
        grid=(B,),
        in_specs=[
            pl.BlockSpec((None, K, Np), lambda bb: (bb, 0, 0)),
            pl.BlockSpec((Cmid, K), lambda bb: (0, 0)),
            pl.BlockSpec((Cmid, 1), lambda bb: (0, 0)),
            pl.BlockSpec((nout_p, Cmid), lambda bb: (0, 0)),
            pl.BlockSpec((nout_p, 1), lambda bb: (0, 0)),
        ],
        out_specs=pl.BlockSpec((None, nout_p, Np), lambda bb: (bb, 0, 0)),
        compiler_params=pltpu.CompilerParams(dimension_semantics=("parallel",)),
    )(x, w1, b1, w2, b2)

    objectness, bbox_reg = [], []
    off = 0
    for (H, W) in lvl_shapes:
        n = H * W
        blk = out[:, :, off:off + n]
        objectness.append(blk[:, :NUM_ANCHORS, :].reshape(B, NUM_ANCHORS, H, W))
        bbox_reg.append(
            blk[:, NUM_ANCHORS:nout, :].reshape(B, 4 * NUM_ANCHORS, H, W))
        off += n
    return objectness, bbox_reg


# ----------------------------------------------------------------------------
# Pallas kernel 3: batched RPN box decoding + clip-to-image (single store)
# ----------------------------------------------------------------------------
def _box_decode_kernel(size_ref, ad_ref, o_ref):
    """size_ref: (B, 2) f32 in SMEM (h, w); ad_ref: (8, Mp) anchors(4)+deltas(4);
       o_ref: (4, Mp) decoded, clipped boxes (x1, y1, x2, y2)."""
    b = pl.program_id(0)
    ad = ad_ref[...]
    x1, y1, x2, y2 = ad[0:1], ad[1:2], ad[2:3], ad[3:4]
    dx, dy, dw, dh = ad[4:5], ad[5:6], ad[6:7], ad[7:8]
    # Legacy (+1 / size-1) Caffe2 convention, matching maskrcnn-benchmark /
    # SageMakerCV BoxCoder.
    widths = x2 - x1 + 1.0
    heights = y2 - y1 + 1.0
    ctr_x = x1 + 0.5 * widths
    ctr_y = y1 + 0.5 * heights
    dw = jnp.minimum(dw, BBOX_XFORM_CLIP)
    dh = jnp.minimum(dh, BBOX_XFORM_CLIP)
    pcx = dx * widths + ctr_x
    pcy = dy * heights + ctr_y
    pw = jnp.exp(dw) * widths
    ph = jnp.exp(dh) * heights
    hi = size_ref[b, 0]
    wi = size_ref[b, 1]
    boxes = jnp.concatenate(
        [jnp.clip(pcx - 0.5 * pw, 0.0, wi - 1.0),
         jnp.clip(pcy - 0.5 * ph, 0.0, hi - 1.0),
         jnp.clip(pcx + 0.5 * pw - 1.0, 0.0, wi - 1.0),
         jnp.clip(pcy + 0.5 * ph - 1.0, 0.0, hi - 1.0)], axis=0)
    o_ref[...] = boxes


def decode_boxes_batched(anchors, deltas, image_sizes):
    """anchors (M,4), deltas (B,M,4), image_sizes (B,2) -> clipped boxes (B,M,4)."""
    B, M, _ = deltas.shape
    Mp = _round_up(M, 128)
    a_t = jnp.pad(anchors, ((0, Mp - M), (0, 0))).T                           # (4, Mp)
    d_t = jnp.pad(deltas, ((0, 0), (0, Mp - M), (0, 0))).transpose(0, 2, 1)   # (B, 4, Mp)
    packed = jnp.concatenate(
        [jnp.broadcast_to(a_t[None], (B, 4, Mp)), d_t], axis=1)               # (B, 8, Mp)
    sizes = image_sizes.astype(jnp.float32)
    out = pl.pallas_call(
        _box_decode_kernel,
        out_shape=jax.ShapeDtypeStruct((B, 4, Mp), jnp.float32),
        grid=(B,),
        in_specs=[
            pl.BlockSpec(memory_space=pltpu.MemorySpace.SMEM),
            pl.BlockSpec((None, 8, Mp), lambda bb: (bb, 0, 0)),
        ],
        out_specs=pl.BlockSpec((None, 4, Mp), lambda bb: (bb, 0, 0)),
        compiler_params=pltpu.CompilerParams(dimension_semantics=("parallel",)),
    )(sizes, packed)
    return out.transpose(0, 2, 1)[:, :M]                                      # (B, M, 4)


# ----------------------------------------------------------------------------
# Deterministic parameter init (synthetic; shapes implied by the module)
# ----------------------------------------------------------------------------
def _conv_params(key, cout, cin, k):
    w = 0.05 * jax.random.normal(key, (cout, cin, k, k), dtype=jnp.float32)
    b = jnp.zeros((cout,), jnp.float32)
    return w, b


def init_params(key):
    keys = jax.random.split(key, 9)
    return {
        "stem": _conv_params(keys[0], 16, 3, 3),
        "c2": _conv_params(keys[1], FPN_CHANNELS, 16, 3),
        "c3": _conv_params(keys[2], FPN_CHANNELS, FPN_CHANNELS, 3),
        "c4": _conv_params(keys[3], FPN_CHANNELS, FPN_CHANNELS, 3),
        "c5": _conv_params(keys[4], FPN_CHANNELS, FPN_CHANNELS, 3),
        "c6": _conv_params(keys[5], FPN_CHANNELS, FPN_CHANNELS, 3),
        "rpn_conv": _conv_params(keys[6], FPN_CHANNELS, FPN_CHANNELS, 3),
        "rpn_cls": _conv_params(keys[7], NUM_ANCHORS, FPN_CHANNELS, 1),
        "rpn_bbox": _conv_params(keys[8], 4 * NUM_ANCHORS, FPN_CHANNELS, 1),
    }


# ----------------------------------------------------------------------------
# Graphable: backbone + RPN head + anchor generator
# ----------------------------------------------------------------------------
def backbone(params, x_nchw):
    x = conv2d_3x3(x_nchw, *params["stem"], stride=2)    # /2
    p2 = conv2d_3x3(x, *params["c2"], stride=2)          # /4
    p3 = conv2d_3x3(p2, *params["c3"], stride=2)         # /8
    p4 = conv2d_3x3(p3, *params["c4"], stride=2)         # /16
    p5 = conv2d_3x3(p4, *params["c5"], stride=2)         # /32
    p6 = conv2d_3x3(p5, *params["c6"], stride=2)         # /64
    return (p2, p3, p4, p5, p6)                          # NCHW bf16


def _base_anchors(base_size, ratios):
    ratios = jnp.asarray(ratios, jnp.float32)
    w = h = float(base_size)
    x_ctr = 0.5 * (w - 1.0)
    y_ctr = 0.5 * (h - 1.0)
    size = w * h
    size_ratios = size / ratios
    ws = jnp.round(jnp.sqrt(size_ratios))
    hs = jnp.round(ws * ratios)
    return jnp.stack(
        [x_ctr - 0.5 * (ws - 1.0), y_ctr - 0.5 * (hs - 1.0),
         x_ctr + 0.5 * (ws - 1.0), y_ctr + 0.5 * (hs - 1.0)], axis=1)


def _grid_anchors(base, stride, h, w):
    shift_x = jnp.arange(w, dtype=jnp.float32) * stride
    shift_y = jnp.arange(h, dtype=jnp.float32) * stride
    sx, sy = jnp.meshgrid(shift_x, shift_y)
    shifts = jnp.stack([sx.ravel(), sy.ravel(), sx.ravel(), sy.ravel()], axis=1)
    anchors = shifts[:, None, :] + base[None, :, :]     # (H*W, A, 4)
    return anchors.reshape(-1, 4)


def anchor_generator(image_sizes, features):
    anchors_per_level = []
    for f, stride in zip(features, ANCHOR_STRIDES):
        h, w = f.shape[2], f.shape[3]
        base = _base_anchors(stride * 4, ASPECT_RATIOS)
        anchors_per_level.append(_grid_anchors(base, stride, h, w))
    all_anchors = jnp.concatenate(anchors_per_level, axis=0)
    sizes = image_sizes.astype(jnp.float32)             # (B, 2) = (h, w)
    img_h, img_w = sizes[:, 0:1], sizes[:, 1:2]
    visibility = ((all_anchors[None, :, 0] >= 0)
                  & (all_anchors[None, :, 1] >= 0)
                  & (all_anchors[None, :, 2] < img_w)
                  & (all_anchors[None, :, 3] < img_h))
    return anchors_per_level, all_anchors, visibility


# ----------------------------------------------------------------------------
# RPN proposals: batched Pallas box decode (+clip), per-level top-k in XLA
# ----------------------------------------------------------------------------
def rpn_proposals(objectness, bbox_reg, anchors_per_level, image_sizes,
                  pre_nms_top_n=50, post_nms_top_n=20):
    B = objectness[0].shape[0]
    scores_list, deltas_list = [], []
    for o, r in zip(objectness, bbox_reg):
        _, A, H, W = o.shape
        # NCHW -> anchor-major (y, x, a) ordering, matching anchor layout
        scores_list.append(jax.nn.sigmoid(
            jnp.transpose(o, (0, 2, 3, 1)).reshape(B, -1)))
        deltas_list.append(jnp.transpose(
            r.reshape(B, A, 4, H, W), (0, 3, 4, 1, 2)).reshape(B, -1, 4))
    deltas = jnp.concatenate(deltas_list, axis=1)
    all_anchors = jnp.concatenate(anchors_per_level, axis=0)
    boxes = decode_boxes_batched(all_anchors, deltas, image_sizes)   # (B, M, 4)

    sel_boxes, sel_scores = [], []
    off = 0
    for li, anc in enumerate(anchors_per_level):
        n_l = anc.shape[0]
        k = min(pre_nms_top_n, n_l)
        vals, idx = jax.lax.top_k(scores_list[li], k)                # (B, k)
        lvl_boxes = boxes[:, off:off + n_l]
        sel_boxes.append(jnp.take_along_axis(lvl_boxes, idx[..., None], axis=1))
        sel_scores.append(vals)
        off += n_l
    boxes_cat = jnp.concatenate(sel_boxes, axis=1)
    scores_cat = jnp.concatenate(sel_scores, axis=1)
    # TODO(synk): per-level NMS + min-size/score filtering have no clean Pallas
    # equivalent; a global top-k over objectness scores stands in for them.
    k2 = min(post_nms_top_n, scores_cat.shape[1])
    top_scores, top_idx = jax.lax.top_k(scores_cat, k2)
    top_boxes = jnp.take_along_axis(boxes_cat, top_idx[..., None], axis=1)
    return {"boxes": top_boxes, "scores": top_scores}


# ----------------------------------------------------------------------------
# GeneralizedRCNN forward (inference path: targets=None, roi_heads empty)
# ----------------------------------------------------------------------------
def generalized_rcnn_forward(params, images_nchw, image_sizes):
    x = images_nchw.astype(jnp.bfloat16)
    features = backbone(params, x)
    objectness, bbox_reg = rpn_head(params, features)
    anchors_per_level, anchor_boxes, anchor_visibility = anchor_generator(
        image_sizes, features)
    proposals = rpn_proposals(objectness, bbox_reg, anchors_per_level, image_sizes)
    # TODO(synk): roi_heads (ROIAlign + box/mask heads + per-class NMS) and the
    # training losses have no clean Pallas equivalent; inference returns the
    # RPN proposals, matching the `else: result = proposals` branch.
    return proposals, features, anchor_boxes, anchor_visibility


forward = jax.jit(generalized_rcnn_forward)


if __name__ == "__main__":
    key = jax.random.PRNGKey(0)
    pkey, ikey = jax.random.split(key)
    params = init_params(pkey)
    images = jax.random.normal(ikey, (2, 3, 64, 64), dtype=jnp.float32)   # NCHW
    image_sizes = jnp.array([[60, 62], [64, 58]], dtype=jnp.int32)        # (h, w)

    proposals, features, anchor_boxes, anchor_vis = forward(
        params, images, image_sizes)
    jax.block_until_ready((proposals, features, anchor_boxes, anchor_vis))
    print("KERNEL_OK")
</pallas_src>

<mosaic_0001>
module attributes {stable_mosaic.version = 11 : i64} {
  func.func @_gemm_bias_act_kernel(%arg0: i32, %arg1: memref<1x27x1024xbf16, #tpu.memory_space<vmem>>, %arg2: memref<16x27xbf16, #tpu.memory_space<vmem>>, %arg3: memref<16x1xf32, #tpu.memory_space<vmem>>, %arg4: memref<1x16x1024xbf16, #tpu.memory_space<vmem>>) attributes {dimension_semantics = [#tpu.dimension_semantics<parallel>], iteration_bounds = array<i64: 2>, scalar_prefetch = 0 : i64, scratch_operands = 0 : i64, tpu.core_type = #tpu.core_type<tc>, window_params = [{transform_indices = @transform_0, window_bounds = array<i64: 1, 27, 1024>}, {pipeline_mode = #tpu.pipeline_mode<synchronous>, transform_indices = @transform_1, window_bounds = array<i64: 16, 27>}, {pipeline_mode = #tpu.pipeline_mode<synchronous>, transform_indices = @transform_2, window_bounds = array<i64: 16, 1>}, {transform_indices = @transform_3, window_bounds = array<i64: 1, 16, 1024>}]} {
    %c0 = arith.constant 0 : index
    %c0_0 = arith.constant 0 : index
    %0 = vector.load %arg2[%c0, %c0_0] : memref<16x27xbf16, #tpu.memory_space<vmem>>, vector<16x27xbf16>
    %c0_1 = arith.constant 0 : index
    %c0_2 = arith.constant 0 : index
    %c0_3 = arith.constant 0 : index
    %1 = vector.load %arg1[%c0_1, %c0_2, %c0_3] : memref<1x27x1024xbf16, #tpu.memory_space<vmem>>, vector<1x27x1024xbf16>
    %2 = vector.shape_cast %1 : vector<1x27x1024xbf16> to vector<27x1024xbf16>
    %cst = arith.constant dense<0.000000e+00> : vector<16x1024xf32>
    %3 = tpu.matmul %0, %2, %cst {dimension_numbers = #tpu.dot_dimension_numbers<[1], [0], [0], [1], [0, 0, 1, 1], [], []>} : vector<16x27xbf16>, vector<27x1024xbf16>, vector<16x1024xf32> -> vector<16x1024xf32>
    %c0_4 = arith.constant 0 : index
    %c0_5 = arith.constant 0 : index
    %4 = vector.load %arg3[%c0_4, %c0_5] : memref<16x1xf32, #tpu.memory_space<vmem>>, vector<16x1xf32>
    %5 = vector.broadcast %4 : vector<16x1xf32> to vector<16x1024xf32>
    %6 = arith.addf %3, %5 : vector<16x1024xf32>
    %cst_6 = arith.constant 0.000000e+00 : f32
    %7 = vector.broadcast %cst_6 : f32 to vector<16x1024xf32>
    %8 = arith.maximumf %6, %7 : vector<16x1024xf32>
    %9 = arith.truncf %8 : vector<16x1024xf32> to vector<16x1024xbf16>
    %c0_7 = arith.constant 0 : index
    %c0_8 = arith.constant 0 : index
    %c0_9 = arith.constant 0 : index
    %10 = vector.load %arg4[%c0_7, %c0_8, %c0_9] : memref<1x16x1024xbf16, #tpu.memory_space<vmem>>, vector<1x16x1024xbf16>
    %11 = vector.shape_cast %10 : vector<1x16x1024xbf16> to vector<16x1024xbf16>
    %12 = vector.shape_cast %9 : vector<16x1024xbf16> to vector<1x16x1024xbf16>
    tpu.vector_store %arg4[%c0_7, %c0_8, %c0_9], %12 {strides = array<i32>} : memref<1x16x1024xbf16, #tpu.memory_space<vmem>>, vector<1x16x1024xbf16>,
    return
  }
  func.func @transform_0(%arg0: i32) -> (i32, i32, i32) {
    %c0_i32 = arith.constant 0 : i32
    %c0_i32_0 = arith.constant 0 : i32
    %c0_i32_1 = arith.constant 0 : i32
    return %arg0, %c0_i32, %c0_i32_0 : i32, i32, i32
  }
  func.func @transform_1(%arg0: i32) -> (i32, i32) {
    %c0_i32 = arith.constant 0 : i32
    %c0_i32_0 = arith.constant 0 : i32
    %c0_i32_1 = arith.constant 0 : i32
    return %c0_i32, %c0_i32_0 : i32, i32
  }
  func.func @transform_2(%arg0: i32) -> (i32, i32) {
    %c0_i32 = arith.constant 0 : i32
    %c0_i32_0 = arith.constant 0 : i32
    %c0_i32_1 = arith.constant 0 : i32
    return %c0_i32, %c0_i32_0 : i32, i32
  }
  func.func @transform_3(%arg0: i32) -> (i32, i32, i32) {
    %c0_i32 = arith.constant 0 : i32
    %c0_i32_0 = arith.constant 0 : i32
    %c0_i32_1 = arith.constant 0 : i32
    return %arg0, %c0_i32, %c0_i32_0 : i32, i32, i32
  }
}

module attributes {stable_mosaic.version = 11 : i64} {
  func.func @_gemm_bias_act_kernel(%arg0: i32, %arg1: memref<1x144x256xbf16, #tpu.memory_space<vmem>>, %arg2: memref<32x144xbf16, #tpu.memory_space<vmem>>, %arg3: memref<32x1xf32, #tpu.memory_space<vmem>>, %arg4: memref<1x32x256xbf16, #tpu.memory_space<vmem>>) attributes {dimension_semantics = [#tpu.dimension_semantics<parallel>], iteration_bounds = array<i64: 2>, scalar_prefetch = 0 : i64, scratch_operands = 0 : i64, tpu.core_type = #tpu.core_type<tc>, window_params = [{transform_indices = @transform_0, window_bounds = array<i64: 1, 144, 256>}, {pipeline_mode = #tpu.pipeline_mode<synchronous>, transform_indices = @transform_1, window_bounds = array<i64: 32, 144>}, {pipeline_mode = #tpu.pipeline_mode<synchronous>, transform_indices = @transform_2, window_bounds = array<i64: 32, 1>}, {transform_indices = @transform_3, window_bounds = array<i64: 1, 32, 256>}]} {
    %c0 = arith.constant 0 : index
    %c0_0 = arith.constant 0 : index
    %0 = vector.load %arg2[%c0, %c0_0] : memref<32x144xbf16, #tpu.memory_space<vmem>>, vector<32x144xbf16>
    %c0_1 = arith.constant 0 : index
    %c0_2 = arith.constant 0 : index
    %c0_3 = arith.constant 0 : index
    %1 = vector.load %arg1[%c0_1, %c0_2, %c0_3] : memref<1x144x256xbf16, #tpu.memory_space<vmem>>, vector<1x144x256xbf16>
    %2 = vector.shape_cast %1 : vector<1x144x256xbf16> to vector<144x256xbf16>
    %cst = arith.constant dense<0.000000e+00> : vector<32x256xf32>
    %3 = tpu.matmul %0, %2, %cst {dimension_numbers = #tpu.dot_dimension_numbers<[1], [0], [0], [1], [0, 0, 1, 1], [], []>} : vector<32x144xbf16>, vector<144x256xbf16>, vector<32x256xf32> -> vector<32x256xf32>
    %c0_4 = arith.constant 0 : index
    %c0_5 = arith.constant 0 : index
    %4 = vector.load %arg3[%c0_4, %c0_5] : memref<32x1xf32, #tpu.memory_space<vmem>>, vector<32x1xf32>
    %5 = vector.broadcast %4 : vector<32x1xf32> to vector<32x256xf32>
    %6 = arith.addf %3, %5 : vector<32x256xf32>
    %cst_6 = arith.constant 0.000000e+00 : f32
    %7 = vector.broadcast %cst_6 : f32 to vector<32x256xf32>
    %8 = arith.maximumf %6, %7 : vector<32x256xf32>
    %9 = arith.truncf %8 : vector<32x256xf32> to vector<32x256xbf16>
    %c0_7 = arith.constant 0 : index
    %c0_8 = arith.constant 0 : index
    %c0_9 = arith.constant 0 : index
    %10 = vector.load %arg4[%c0_7, %c0_8, %c0_9] : memref<1x32x256xbf16, #tpu.memory_space<vmem>>, vector<1x32x256xbf16>
    %11 = vector.shape_cast %10 : vector<1x32x256xbf16> to vector<32x256xbf16>
    %12 = vector.shape_cast %9 : vector<32x256xbf16> to vector<1x32x256xbf16>
    tpu.vector_store %arg4[%c0_7, %c0_8, %c0_9], %12 {strides = array<i32>} : memref<1x32x256xbf16, #tpu.memory_space<vmem>>, vector<1x32x256xbf16>,
    return
  }
  func.func @transform_0(%arg0: i32) -> (i32, i32, i32) {
    %c0_i32 = arith.constant 0 : i32
    %c0_i32_0 = arith.constant 0 : i32
    %c0_i32_1 = arith.constant 0 : i32
    return %arg0, %c0_i32, %c0_i32_0 : i32, i32, i32
  }
  func.func @transform_1(%arg0: i32) -> (i32, i32) {
    %c0_i32 = arith.constant 0 : i32
    %c0_i32_0 = arith.constant 0 : i32
    %c0_i32_1 = arith.constant 0 : i32
    return %c0_i32, %c0_i32_0 : i32, i32
  }
  func.func @transform_2(%arg0: i32) -> (i32, i32) {
    %c0_i32 = arith.constant 0 : i32
    %c0_i32_0 = arith.constant 0 : i32
    %c0_i32_1 = arith.constant 0 : i32
    return %c0_i32, %c0_i32_0 : i32, i32
  }
  func.func @transform_3(%arg0: i32) -> (i32, i32, i32) {
    %c0_i32 = arith.constant 0 : i32
    %c0_i32_0 = arith.constant 0 : i32
    %c0_i32_1 = arith.constant 0 : i32
    return %arg0, %c0_i32, %c0_i32_0 : i32, i32, i32
  }
}

module attributes {stable_mosaic.version = 11 : i64} {
  func.func @_gemm_bias_act_kernel(%arg0: i32, %arg1: memref<1x288x64xbf16, #tpu.memory_space<vmem>>, %arg2: memref<32x288xbf16, #tpu.memory_space<vmem>>, %arg3: memref<32x1xf32, #tpu.memory_space<vmem>>, %arg4: memref<1x32x64xbf16, #tpu.memory_space<vmem>>) attributes {dimension_semantics = [#tpu.dimension_semantics<parallel>], iteration_bounds = array<i64: 2>, scalar_prefetch = 0 : i64, scratch_operands = 0 : i64, tpu.core_type = #tpu.core_type<tc>, window_params = [{transform_indices = @transform_0, window_bounds = array<i64: 1, 288, 64>}, {pipeline_mode = #tpu.pipeline_mode<synchronous>, transform_indices = @transform_1, window_bounds = array<i64: 32, 288>}, {pipeline_mode = #tpu.pipeline_mode<synchronous>, transform_indices = @transform_2, window_bounds = array<i64: 32, 1>}, {transform_indices = @transform_3, window_bounds = array<i64: 1, 32, 64>}]} {
    %c0 = arith.constant 0 : index
    %c0_0 = arith.constant 0 : index
    %0 = vector.load %arg2[%c0, %c0_0] : memref<32x288xbf16, #tpu.memory_space<vmem>>, vector<32x288xbf16>
    %c0_1 = arith.constant 0 : index
    %c0_2 = arith.constant 0 : index
    %c0_3 = arith.constant 0 : index
    %1 = vector.load %arg1[%c0_1, %c0_2, %c0_3] : memref<1x288x64xbf16, #tpu.memory_space<vmem>>, vector<1x288x64xbf16>
    %2 = vector.shape_cast %1 : vector<1x288x64xbf16> to vector<288x64xbf16>
    %cst = arith.constant dense<0.000000e+00> : vector<32x64xf32>
    %3 = tpu.matmul %0, %2, %cst {dimension_numbers = #tpu.dot_dimension_numbers<[1], [0], [0], [1], [0, 0, 1, 1], [], []>} : vector<32x288xbf16>, vector<288x64xbf16>, vector<32x64xf32> -> vector<32x64xf32>
    %c0_4 = arith.constant 0 : index
    %c0_5 = arith.constant 0 : index
    %4 = vector.load %arg3[%c0_4, %c0_5] : memref<32x1xf32, #tpu.memory_space<vmem>>, vector<32x1xf32>
    %5 = vector.broadcast %4 : vector<32x1xf32> to vector<32x64xf32>
    %6 = arith.addf %3, %5 : vector<32x64xf32>
    %cst_6 = arith.constant 0.000000e+00 : f32
    %7 = vector.broadcast %cst_6 : f32 to vector<32x64xf32>
    %8 = arith.maximumf %6, %7 : vector<32x64xf32>
    %9 = arith.truncf %8 : vector<32x64xf32> to vector<32x64xbf16>
    %c0_7 = arith.constant 0 : index
    %c0_8 = arith.constant 0 : index
    %c0_9 = arith.constant 0 : index
    %10 = vector.load %arg4[%c0_7, %c0_8, %c0_9] : memref<1x32x64xbf16, #tpu.memory_space<vmem>>, vector<1x32x64xbf16>
    %11 = vector.shape_cast %10 : vector<1x32x64xbf16> to vector<32x64xbf16>
    %12 = vector.shape_cast %9 : vector<32x64xbf16> to vector<1x32x64xbf16>
    tpu.vector_store %arg4[%c0_7, %c0_8, %c0_9], %12 {strides = array<i32>} : memref<1x32x64xbf16, #tpu.memory_space<vmem>>, vector<1x32x64xbf16>,
    return
  }
  func.func @transform_0(%arg0: i32) -> (i32, i32, i32) {
    %c0_i32 = arith.constant 0 : i32
    %c0_i32_0 = arith.constant 0 : i32
    %c0_i32_1 = arith.constant 0 : i32
    return %arg0, %c0_i32, %c0_i32_0 : i32, i32, i32
  }
  func.func @transform_1(%arg0: i32) -> (i32, i32) {
    %c0_i32 = arith.constant 0 : i32
    %c0_i32_0 = arith.constant 0 : i32
    %c0_i32_1 = arith.constant 0 : i32
    return %c0_i32, %c0_i32_0 : i32, i32
  }
  func.func @transform_2(%arg0: i32) -> (i32, i32) {
    %c0_i32 = arith.constant 0 : i32
    %c0_i32_0 = arith.constant 0 : i32
    %c0_i32_1 = arith.constant 0 : i32
    return %c0_i32, %c0_i32_0 : i32, i32
  }
  func.func @transform_3(%arg0: i32) -> (i32, i32, i32) {
    %c0_i32 = arith.constant 0 : i32
    %c0_i32_0 = arith.constant 0 : i32
    %c0_i32_1 = arith.constant 0 : i32
    return %arg0, %c0_i32, %c0_i32_0 : i32, i32, i32
  }
}

module attributes {stable_mosaic.version = 11 : i64} {
  func.func @_gemm_bias_act_kernel(%arg0: i32, %arg1: memref<1x288x16xbf16, #tpu.memory_space<vmem>>, %arg2: memref<32x288xbf16, #tpu.memory_space<vmem>>, %arg3: memref<32x1xf32, #tpu.memory_space<vmem>>, %arg4: memref<1x32x16xbf16, #tpu.memory_space<vmem>>) attributes {dimension_semantics = [#tpu.dimension_semantics<parallel>], iteration_bounds = array<i64: 2>, scalar_prefetch = 0 : i64, scratch_operands = 0 : i64, tpu.core_type = #tpu.core_type<tc>, window_params = [{transform_indices = @transform_0, window_bounds = array<i64: 1, 288, 16>}, {pipeline_mode = #tpu.pipeline_mode<synchronous>, transform_indices = @transform_1, window_bounds = array<i64: 32, 288>}, {pipeline_mode = #tpu.pipeline_mode<synchronous>, transform_indices = @transform_2, window_bounds = array<i64: 32, 1>}, {transform_indices = @transform_3, window_bounds = array<i64: 1, 32, 16>}]} {
    %c0 = arith.constant 0 : index
    %c0_0 = arith.constant 0 : index
    %0 = vector.load %arg2[%c0, %c0_0] : memref<32x288xbf16, #tpu.memory_space<vmem>>, vector<32x288xbf16>
    %c0_1 = arith.constant 0 : index
    %c0_2 = arith.constant 0 : index
    %c0_3 = arith.constant 0 : index
    %1 = vector.load %arg1[%c0_1, %c0_2, %c0_3] : memref<1x288x16xbf16, #tpu.memory_space<vmem>>, vector<1x288x16xbf16>
    %2 = vector.shape_cast %1 : vector<1x288x16xbf16> to vector<288x16xbf16>
    %cst = arith.constant dense<0.000000e+00> : vector<32x16xf32>
    %3 = tpu.matmul %0, %2, %cst {dimension_numbers = #tpu.dot_dimension_numbers<[1], [0], [0], [1], [0, 0, 1, 1], [], []>} : vector<32x288xbf16>, vector<288x16xbf16>, vector<32x16xf32> -> vector<32x16xf32>
    %c0_4 = arith.constant 0 : index
    %c0_5 = arith.constant 0 : index
    %4 = vector.load %arg3[%c0_4, %c0_5] : memref<32x1xf32, #tpu.memory_space<vmem>>, vector<32x1xf32>
    %5 = vector.broadcast %4 : vector<32x1xf32> to vector<32x16xf32>
    %6 = arith.addf %3, %5 : vector<32x16xf32>
    %cst_6 = arith.constant 0.000000e+00 : f32
    %7 = vector.broadcast %cst_6 : f32 to vector<32x16xf32>
    %8 = arith.maximumf %6, %7 : vector<32x16xf32>
    %9 = arith.truncf %8 : vector<32x16xf32> to vector<32x16xbf16>
    %c0_7 = arith.constant 0 : index
    %c0_8 = arith.constant 0 : index
    %c0_9 = arith.constant 0 : index
    %10 = vector.load %arg4[%c0_7, %c0_8, %c0_9] : memref<1x32x16xbf16, #tpu.memory_space<vmem>>, vector<1x32x16xbf16>
    %11 = vector.shape_cast %10 : vector<1x32x16xbf16> to vector<32x16xbf16>
    %12 = vector.shape_cast %9 : vector<32x16xbf16> to vector<1x32x16xbf16>
    tpu.vector_store %arg4[%c0_7, %c0_8, %c0_9], %12 {strides = array<i32>} : memref<1x32x16xbf16, #tpu.memory_space<vmem>>, vector<1x32x16xbf16>,
    return
  }
  func.func @transform_0(%arg0: i32) -> (i32, i32, i32) {
    %c0_i32 = arith.constant 0 : i32
    %c0_i32_0 = arith.constant 0 : i32
    %c0_i32_1 = arith.constant 0 : i32
    return %arg0, %c0_i32, %c0_i32_0 : i32, i32, i32
  }
  func.func @transform_1(%arg0: i32) -> (i32, i32) {
    %c0_i32 = arith.constant 0 : i32
    %c0_i32_0 = arith.constant 0 : i32
    %c0_i32_1 = arith.constant 0 : i32
    return %c0_i32, %c0_i32_0 : i32, i32
  }
  func.func @transform_2(%arg0: i32) -> (i32, i32) {
    %c0_i32 = arith.constant 0 : i32
    %c0_i32_0 = arith.constant 0 : i32
    %c0_i32_1 = arith.constant 0 : i32
    return %c0_i32, %c0_i32_0 : i32, i32
  }
  func.func @transform_3(%arg0: i32) -> (i32, i32, i32) {
    %c0_i32 = arith.constant 0 : i32
    %c0_i32_0 = arith.constant 0 : i32
    %c0_i32_1 = arith.constant 0 : i32
    return %arg0, %c0_i32, %c0_i32_0 : i32, i32, i32
  }
}

module attributes {stable_mosaic.version = 11 : i64} {
  func.func @_gemm_bias_act_kernel(%arg0: i32, %arg1: memref<1x288x8xbf16, #tpu.memory_space<vmem>>, %arg2: memref<32x288xbf16, #tpu.memory_space<vmem>>, %arg3: memref<32x1xf32, #tpu.memory_space<vmem>>, %arg4: memref<1x32x8xbf16, #tpu.memory_space<vmem>>) attributes {dimension_semantics = [#tpu.dimension_semantics<parallel>], iteration_bounds = array<i64: 2>, scalar_prefetch = 0 : i64, scratch_operands = 0 : i64, tpu.core_type = #tpu.core_type<tc>, window_params = [{transform_indices = @transform_0, window_bounds = array<i64: 1, 288, 8>}, {pipeline_mode = #tpu.pipeline_mode<synchronous>, transform_indices = @transform_1, window_bounds = array<i64: 32, 288>}, {pipeline_mode = #tpu.pipeline_mode<synchronous>, transform_indices = @transform_2, window_bounds = array<i64: 32, 1>}, {transform_indices = @transform_3, window_bounds = array<i64: 1, 32, 8>}]} {
    %c0 = arith.constant 0 : index
    %c0_0 = arith.constant 0 : index
    %0 = vector.load %arg2[%c0, %c0_0] : memref<32x288xbf16, #tpu.memory_space<vmem>>, vector<32x288xbf16>
    %c0_1 = arith.constant 0 : index
    %c0_2 = arith.constant 0 : index
    %c0_3 = arith.constant 0 : index
    %1 = vector.load %arg1[%c0_1, %c0_2, %c0_3] : memref<1x288x8xbf16, #tpu.memory_space<vmem>>, vector<1x288x8xbf16>
    %2 = vector.shape_cast %1 : vector<1x288x8xbf16> to vector<288x8xbf16>
    %cst = arith.constant dense<0.000000e+00> : vector<32x8xf32>
    %3 = tpu.matmul %0, %2, %cst {dimension_numbers = #tpu.dot_dimension_numbers<[1], [0], [0], [1], [0, 0, 1, 1], [], []>} : vector<32x288xbf16>, vector<288x8xbf16>, vector<32x8xf32> -> vector<32x8xf32>
    %c0_4 = arith.constant 0 : index
    %c0_5 = arith.constant 0 : index
    %4 = vector.load %arg3[%c0_4, %c0_5] : memref<32x1xf32, #tpu.memory_space<vmem>>, vector<32x1xf32>
    %5 = vector.broadcast %4 : vector<32x1xf32> to vector<32x8xf32>
    %6 = arith.addf %3, %5 : vector<32x8xf32>
    %cst_6 = arith.constant 0.000000e+00 : f32
    %7 = vector.broadcast %cst_6 : f32 to vector<32x8xf32>
    %8 = arith.maximumf %6, %7 : vector<32x8xf32>
    %9 = arith.truncf %8 : vector<32x8xf32> to vector<32x8xbf16>
    %c0_7 = arith.constant 0 : index
    %c0_8 = arith.constant 0 : index
    %c0_9 = arith.constant 0 : index
    %10 = vector.load %arg4[%c0_7, %c0_8, %c0_9] : memref<1x32x8xbf16, #tpu.memory_space<vmem>>, vector<1x32x8xbf16>
    %11 = vector.shape_cast %10 : vector<1x32x8xbf16> to vector<32x8xbf16>
    %12 = vector.shape_cast %9 : vector<32x8xbf16> to vector<1x32x8xbf16>
    tpu.vector_store %arg4[%c0_7, %c0_8, %c0_9], %12 {strides = array<i32>} : memref<1x32x8xbf16, #tpu.memory_space<vmem>>, vector<1x32x8xbf16>,
    return
  }
  func.func @transform_0(%arg0: i32) -> (i32, i32, i32) {
    %c0_i32 = arith.constant 0 : i32
    %c0_i32_0 = arith.constant 0 : i32
    %c0_i32_1 = arith.constant 0 : i32
    return %arg0, %c0_i32, %c0_i32_0 : i32, i32, i32
  }
  func.func @transform_1(%arg0: i32) -> (i32, i32) {
    %c0_i32 = arith.constant 0 : i32
    %c0_i32_0 = arith.constant 0 : i32
    %c0_i32_1 = arith.constant 0 : i32
    return %c0_i32, %c0_i32_0 : i32, i32
  }
  func.func @transform_2(%arg0: i32) -> (i32, i32) {
    %c0_i32 = arith.constant 0 : i32
    %c0_i32_0 = arith.constant 0 : i32
    %c0_i32_1 = arith.constant 0 : i32
    return %c0_i32, %c0_i32_0 : i32, i32
  }
  func.func @transform_3(%arg0: i32) -> (i32, i32, i32) {
    %c0_i32 = arith.constant 0 : i32
    %c0_i32_0 = arith.constant 0 : i32
    %c0_i32_1 = arith.constant 0 : i32
    return %arg0, %c0_i32, %c0_i32_0 : i32, i32, i32
  }
}

module attributes {stable_mosaic.version = 11 : i64} {
  func.func @_rpn_head_kernel(%arg0: i32, %arg1: memref<1x288x344xbf16, #tpu.memory_space<vmem>>, %arg2: memref<32x288xbf16, #tpu.memory_space<vmem>>, %arg3: memref<32x1xf32, #tpu.memory_space<vmem>>, %arg4: memref<16x32xbf16, #tpu.memory_space<vmem>>, %arg5: memref<16x1xf32, #tpu.memory_space<vmem>>, %arg6: memref<1x16x344xf32, #tpu.memory_space<vmem>>) attributes {dimension_semantics = [#tpu.dimension_semantics<parallel>], iteration_bounds = array<i64: 2>, scalar_prefetch = 0 : i64, scratch_operands = 0 : i64, tpu.core_type = #tpu.core_type<tc>, window_params = [{transform_indices = @transform_0, window_bounds = array<i64: 1, 288, 344>}, {pipeline_mode = #tpu.pipeline_mode<synchronous>, transform_indices = @transform_1, window_bounds = array<i64: 32, 288>}, {pipeline_mode = #tpu.pipeline_mode<synchronous>, transform_indices = @transform_2, window_bounds = array<i64: 32, 1>}, {pipeline_mode = #tpu.pipeline_mode<synchronous>, transform_indices = @transform_3, window_bounds = array<i64: 16, 32>}, {pipeline_mode = #tpu.pipeline_mode<synchronous>, transform_indices = @transform_4, window_bounds = array<i64: 16, 1>}, {transform_indices = @transform_5, window_bounds = array<i64: 1, 16, 344>}]} {
    %c0 = arith.constant 0 : index
    %c0_0 = arith.constant 0 : index
    %0 = vector.load %arg2[%c0, %c0_0] : memref<32x288xbf16, #tpu.memory_space<vmem>>, vector<32x288xbf16>
    %c0_1 = arith.constant 0 : index
    %c0_2 = arith.constant 0 : index
    %c0_3 = arith.constant 0 : index
    %1 = vector.load %arg1[%c0_1, %c0_2, %c0_3] : memref<1x288x344xbf16, #tpu.memory_space<vmem>>, vector<1x288x344xbf16>
    %2 = vector.shape_cast %1 : vector<1x288x344xbf16> to vector<288x344xbf16>
    %cst = arith.constant dense<0.000000e+00> : vector<32x344xf32>
    %3 = tpu.matmul %0, %2, %cst {dimension_numbers = #tpu.dot_dimension_numbers<[1], [0], [0], [1], [0, 0, 1, 1], [], []>} : vector<32x288xbf16>, vector<288x344xbf16>, vector<32x344xf32> -> vector<32x344xf32>
    %c0_4 = arith.constant 0 : index
    %c0_5 = arith.constant 0 : index
    %4 = vector.load %arg3[%c0_4, %c0_5] : memref<32x1xf32, #tpu.memory_space<vmem>>, vector<32x1xf32>
    %5 = vector.broadcast %4 : vector<32x1xf32> to vector<32x344xf32>
    %6 = arith.addf %3, %5 : vector<32x344xf32>
    %cst_6 = arith.constant 0.000000e+00 : f32
    %7 = vector.broadcast %cst_6 : f32 to vector<32x344xf32>
    %8 = arith.maximumf %6, %7 : vector<32x344xf32>
    %9 = arith.truncf %8 : vector<32x344xf32> to vector<32x344xbf16>
    %c0_7 = arith.constant 0 : index
    %c0_8 = arith.constant 0 : index
    %10 = vector.load %arg4[%c0_7, %c0_8] : memref<16x32xbf16, #tpu.memory_space<vmem>>, vector<16x32xbf16>
    %cst_9 = arith.constant dense<0.000000e+00> : vector<16x344xf32>
    %11 = tpu.matmul %10, %9, %cst_9 {dimension_numbers = #tpu.dot_dimension_numbers<[1], [0], [0], [1], [0, 0, 1, 1], [], []>} : vector<16x32xbf16>, vector<32x344xbf16>, vector<16x344xf32> -> vector<16x344xf32>
    %c0_10 = arith.constant 0 : index
    %c0_11 = arith.constant 0 : index
    %12 = vector.load %arg5[%c0_10, %c0_11] : memref<16x1xf32, #tpu.memory_space<vmem>>, vector<16x1xf32>
    %13 = vector.broadcast %12 : vector<16x1xf32> to vector<16x344xf32>
    %14 = arith.addf %11, %13 : vector<16x344xf32>
    %c0_12 = arith.constant 0 : index
    %c0_13 = arith.constant 0 : index
    %c0_14 = arith.constant 0 : index
    %15 = vector.load %arg6[%c0_12, %c0_13, %c0_14] : memref<1x16x344xf32, #tpu.memory_space<vmem>>, vector<1x16x344xf32>
    %16 = vector.shape_cast %15 : vector<1x16x344xf32> to vector<16x344xf32>
    %17 = vector.shape_cast %14 : vector<16x344xf32> to vector<1x16x344xf32>
    tpu.vector_store %arg6[%c0_12, %c0_13, %c0_14], %17 {strides = array<i32>} : memref<1x16x344xf32, #tpu.memory_space<vmem>>, vector<1x16x344xf32>,
    return
  }
  func.func @transform_0(%arg0: i32) -> (i32, i32, i32) {
    %c0_i32 = arith.constant 0 : i32
    %c0_i32_0 = arith.constant 0 : i32
    %c0_i32_1 = arith.constant 0 : i32
    return %arg0, %c0_i32, %c0_i32_0 : i32, i32, i32
  }
  func.func @transform_1(%arg0: i32) -> (i32, i32) {
    %c0_i32 = arith.constant 0 : i32
    %c0_i32_0 = arith.constant 0 : i32
    %c0_i32_1 = arith.constant 0 : i32
    return %c0_i32, %c0_i32_0 : i32, i32
  }
  func.func @transform_2(%arg0: i32) -> (i32, i32) {
    %c0_i32 = arith.constant 0 : i32
    %c0_i32_0 = arith.constant 0 : i32
    %c0_i32_1 = arith.constant 0 : i32
    return %c0_i32, %c0_i32_0 : i32, i32
  }
  func.func @transform_3(%arg0: i32) -> (i32, i32) {
    %c0_i32 = arith.constant 0 : i32
    %c0_i32_0 = arith.constant 0 : i32
    %c0_i32_1 = arith.constant 0 : i32
    return %c0_i32, %c0_i32_0 : i32, i32
  }
  func.func @transform_4(%arg0: i32) -> (i32, i32) {
    %c0_i32 = arith.constant 0 : i32
    %c0_i32_0 = arith.constant 0 : i32
    %c0_i32_1 = arith.constant 0 : i32
    return %c0_i32, %c0_i32_0 : i32, i32
  }
  func.func @transform_5(%arg0: i32) -> (i32, i32, i32) {
    %c0_i32 = arith.constant 0 : i32
    %c0_i32_0 = arith.constant 0 : i32
    %c0_i32_1 = arith.constant 0 : i32
    return %arg0, %c0_i32, %c0_i32_0 : i32, i32, i32
  }
}

module attributes {stable_mosaic.version = 11 : i64} {
  func.func @_box_decode_kernel(%arg0: i32, %arg1: memref<2x2xf32, #tpu.memory_space<smem>>, %arg2: memref<1x8x1024xf32, #tpu.memory_space<vmem>>, %arg3: memref<1x4x1024xf32, #tpu.memory_space<vmem>>) attributes {dimension_semantics = [#tpu.dimension_semantics<parallel>], iteration_bounds = array<i64: 2>, scalar_prefetch = 0 : i64, scratch_operands = 0 : i64, tpu.core_type = #tpu.core_type<tc>, window_params = [{transform_indices = @transform_0, window_bounds = array<i64: 2, 2>}, {transform_indices = @transform_1, window_bounds = array<i64: 1, 8, 1024>}, {transform_indices = @transform_2, window_bounds = array<i64: 1, 4, 1024>}]} {
    %c0 = arith.constant 0 : index
    %c0_0 = arith.constant 0 : index
    %c0_1 = arith.constant 0 : index
    %0 = vector.load %arg2[%c0, %c0_0, %c0_1] : memref<1x8x1024xf32, #tpu.memory_space<vmem>>, vector<1x8x1024xf32>
    %1 = vector.shape_cast %0 : vector<1x8x1024xf32> to vector<8x1024xf32>
    %2 = vector.extract_strided_slice %1 {offsets = [0, 0], sizes = [1, 1024], strides = [1, 1]} : vector<8x1024xf32> to vector<1x1024xf32>
    %3 = vector.extract_strided_slice %1 {offsets = [1, 0], sizes = [1, 1024], strides = [1, 1]} : vector<8x1024xf32> to vector<1x1024xf32>
    %4 = vector.extract_strided_slice %1 {offsets = [2, 0], sizes = [1, 1024], strides = [1, 1]} : vector<8x1024xf32> to vector<1x1024xf32>
    %5 = vector.extract_strided_slice %1 {offsets = [3, 0], sizes = [1, 1024], strides = [1, 1]} : vector<8x1024xf32> to vector<1x1024xf32>
    %6 = vector.extract_strided_slice %1 {offsets = [4, 0], sizes = [1, 1024], strides = [1, 1]} : vector<8x1024xf32> to vector<1x1024xf32>
    %7 = vector.extract_strided_slice %1 {offsets = [5, 0], sizes = [1, 1024], strides = [1, 1]} : vector<8x1024xf32> to vector<1x1024xf32>
    %8 = vector.extract_strided_slice %1 {offsets = [6, 0], sizes = [1, 1024], strides = [1, 1]} : vector<8x1024xf32> to vector<1x1024xf32>
    %9 = vector.extract_strided_slice %1 {offsets = [7, 0], sizes = [1, 1024], strides = [1, 1]} : vector<8x1024xf32> to vector<1x1024xf32>
    %10 = arith.subf %4, %2 : vector<1x1024xf32>
    %cst = arith.constant 1.000000e+00 : f32
    %11 = vector.broadcast %cst : f32 to vector<1x1024xf32>
    %12 = arith.addf %10, %11 : vector<1x1024xf32>
    %13 = arith.subf %5, %3 : vector<1x1024xf32>
    %cst_2 = arith.constant 1.000000e+00 : f32
    %14 = vector.broadcast %cst_2 : f32 to vector<1x1024xf32>
    %15 = arith.addf %13, %14 : vector<1x1024xf32>
    %cst_3 = arith.constant 5.000000e-01 : f32
    %16 = vector.broadcast %cst_3 : f32 to vector<1x1024xf32>
    %17 = arith.mulf %16, %12 : vector<1x1024xf32>
    %18 = arith.addf %2, %17 : vector<1x1024xf32>
    %cst_4 = arith.constant 5.000000e-01 : f32
    %19 = vector.broadcast %cst_4 : f32 to vector<1x1024xf32>
    %20 = arith.mulf %19, %15 : vector<1x1024xf32>
    %21 = arith.addf %3, %20 : vector<1x1024xf32>
    %cst_5 = arith.constant 4.13516665 : f32
    %22 = vector.broadcast %cst_5 : f32 to vector<1x1024xf32>
    %23 = arith.minimumf %8, %22 : vector<1x1024xf32>
    %cst_6 = arith.constant 4.13516665 : f32
    %24 = vector.broadcast %cst_6 : f32 to vector<1x1024xf32>
    %25 = arith.minimumf %9, %24 : vector<1x1024xf32>
    %26 = arith.mulf %6, %12 : vector<1x1024xf32>
    %27 = arith.addf %26, %18 : vector<1x1024xf32>
    %28 = arith.mulf %7, %15 : vector<1x1024xf32>
    %29 = arith.addf %28, %21 : vector<1x1024xf32>
    %30 = math.exp %23 : vector<1x1024xf32>
    %31 = arith.mulf %30, %12 : vector<1x1024xf32>
    %32 = math.exp %25 : vector<1x1024xf32>
    %33 = arith.mulf %32, %15 : vector<1x1024xf32>
    %34 = arith.index_cast %arg0 : i32 to index
    %c0_7 = arith.constant 0 : index
    %35 = memref.load %arg1[%34, %c0_7] : memref<2x2xf32, #tpu.memory_space<smem>>
    %36 = arith.index_cast %arg0 : i32 to index
    %c1 = arith.constant 1 : index
    %37 = memref.load %arg1[%36, %c1] : memref<2x2xf32, #tpu.memory_space<smem>>
    %cst_8 = arith.constant 5.000000e-01 : f32
    %38 = vector.broadcast %cst_8 : f32 to vector<1x1024xf32>
    %39 = arith.mulf %38, %31 : vector<1x1024xf32>
    %40 = arith.subf %27, %39 : vector<1x1024xf32>
    %cst_9 = arith.constant 1.000000e+00 : f32
    %41 = arith.subf %37, %cst_9 : f32
    %cst_10 = arith.constant 0.000000e+00 : f32
    %42 = vector.broadcast %cst_10 : f32 to vector<1x1024xf32>
    %43 = arith.maximumf %42, %40 : vector<1x1024xf32>
    %44 = vector.broadcast %41 : f32 to vector<1x1024xf32>
    %45 = arith.minimumf %44, %43 : vector<1x1024xf32>
    %cst_11 = arith.constant 5.000000e-01 : f32
    %46 = vector.broadcast %cst_11 : f32 to vector<1x1024xf32>
    %47 = arith.mulf %46, %33 : vector<1x1024xf32>
    %48 = arith.subf %29, %47 : vector<1x1024xf32>
    %cst_12 = arith.constant 1.000000e+00 : f32
    %49 = arith.subf %35, %cst_12 : f32
    %cst_13 = arith.constant 0.000000e+00 : f32
    %50 = vector.broadcast %cst_13 : f32 to vector<1x1024xf32>
    %51 = arith.maximumf %50, %48 : vector<1x1024xf32>
    %52 = vector.broadcast %49 : f32 to vector<1x1024xf32>
    %53 = arith.minimumf %52, %51 : vector<1x1024xf32>
    %cst_14 = arith.constant 5.000000e-01 : f32
    %54 = vector.broadcast %cst_14 : f32 to vector<1x1024xf32>
    %55 = arith.mulf %54, %31 : vector<1x1024xf32>
    %56 = arith.addf %27, %55 : vector<1x1024xf32>
    %cst_15 = arith.constant 1.000000e+00 : f32
    %57 = vector.broadcast %cst_15 : f32 to vector<1x1024xf32>
    %58 = arith.subf %56, %57 : vector<1x1024xf32>
    %cst_16 = arith.constant 1.000000e+00 : f32
    %59 = arith.subf %37, %cst_16 : f32
    %cst_17 = arith.constant 0.000000e+00 : f32
    %60 = vector.broadcast %cst_17 : f32 to vector<1x1024xf32>
    %61 = arith.maximumf %60, %58 : vector<1x1024xf32>
    %62 = vector.broadcast %59 : f32 to vector<1x1024xf32>
    %63 = arith.minimumf %62, %61 : vector<1x1024xf32>
    %cst_18 = arith.constant 5.000000e-01 : f32
    %64 = vector.broadcast %cst_18 : f32 to vector<1x1024xf32>
    %65 = arith.mulf %64, %33 : vector<1x1024xf32>
    %66 = arith.addf %29, %65 : vector<1x1024xf32>
    %cst_19 = arith.constant 1.000000e+00 : f32
    %67 = vector.broadcast %cst_19 : f32 to vector<1x1024xf32>
    %68 = arith.subf %66, %67 : vector<1x1024xf32>
    %cst_20 = arith.constant 1.000000e+00 : f32
    %69 = arith.subf %35, %cst_20 : f32
    %cst_21 = arith.constant 0.000000e+00 : f32
    %70 = vector.broadcast %cst_21 : f32 to vector<1x1024xf32>
    %71 = arith.maximumf %70, %68 : vector<1x1024xf32>
    %72 = vector.broadcast %69 : f32 to vector<1x1024xf32>
    %73 = arith.minimumf %72, %71 : vector<1x1024xf32>
    %74 = tpu.concatenate %45, %53, %63, %73 in 0 : vector<1x1024xf32>, vector<1x1024xf32>, vector<1x1024xf32>, vector<1x1024xf32> -> vector<4x1024xf32>
    %c0_22 = arith.constant 0 : index
    %c0_23 = arith.constant 0 : index
    %c0_24 = arith.constant 0 : index
    %75 = vector.load %arg3[%c0_22, %c0_23, %c0_24] : memref<1x4x1024xf32, #tpu.memory_space<vmem>>, vector<1x4x1024xf32>
    %76 = vector.shape_cast %75 : vector<1x4x1024xf32> to vector<4x1024xf32>
    %77 = vector.shape_cast %74 : vector<4x1024xf32> to vector<1x4x1024xf32>
    tpu.vector_store %arg3[%c0_22, %c0_23, %c0_24], %77 {strides = array<i32>} : memref<1x4x1024xf32, #tpu.memory_space<vmem>>, vector<1x4x1024xf32>,
    return
  }
  func.func @transform_0(%arg0: i32) -> (i32, i32) {
    %c0_i32 = arith.constant 0 : i32
    %c0_i32_0 = arith.constant 0 : i32
    %c0_i32_1 = arith.constant 0 : i32
    return %c0_i32, %c0_i32_0 : i32, i32
  }
  func.func @transform_1(%arg0: i32) -> (i32, i32, i32) {
    %c0_i32 = arith.constant 0 : i32
    %c0_i32_0 = arith.constant 0 : i32
    %c0_i32_1 = arith.constant 0 : i32
    return %arg0, %c0_i32, %c0_i32_0 : i32, i32, i32
  }
  func.func @transform_2(%arg0: i32) -> (i32, i32, i32) {
    %c0_i32 = arith.constant 0 : i32
    %c0_i32_0 = arith.constant 0 : i32
    %c0_i32_1 = arith.constant 0 : i32
    return %arg0, %c0_i32, %c0_i32_0 : i32, i32, i32
  }
}

</mosaic_0001>

<llo_original>
// kernel: generalized_rcnn_forward.8
$region0: #{generalized_rcnn_forward.8}
  #allocation0 [shape = 'u32[]', space=smem, size = 0x4, offset = 0x4, fixed_abs, tag = 'smem constant byte address 0x4 - core index']
  #allocation1 [shape = 'u32[144,128]{1,0:T(1,128)}', space=vmem, size = 0x12000, scoped, tag = 'internal scratch']
  %s0 = inlined_call_operand.vmem [shape: bf16[2,27,1024], index: 0, kind: input, shape index: {}]
  %s1 = inlined_call_operand.vmem [shape: bf16[16,27], index: 1, kind: input, shape index: {}]
  %s2 = inlined_call_operand.vmem [shape: f32[16,1], index: 2, kind: input, shape index: {}]
  %s3 = inlined_call_operand.vmem [shape: bf16[2,16,1024], index: 3, kind: output, shape index: {}]
  %s4 = sld [smem:[#allocation0]]
  $region45: #{generalized_rcnn_forward.8} parent=0
    _
  %s6 = ssub.s32 1, %s4
  %s7 = scalar_select 0, %s6, %s4
  loop: start=0, step=1, limit=4
  $region2: #{generalized_rcnn_forward.8} parent=0 // loop_pre_header
    _
  $region3: #{generalized_rcnn_forward.8} parent=0 // loop_header
    %s9 = sphi 0, %s13
    %p10 = scmp.ge.s32.totalorder %s9, 4
    %s19 = sphi 0, %s21
    %s22 = sphi 0, %s19
    %s23 = sphi 0, %s22
    %s39 = sphi 0, %s23
    %s43 = sphi 0, %s43
    %s45 = sphi 0, %s43
    %s46 = sphi 0, %s45
    %s60 = sphi 0, %s46
    %s64 = sphi 0, %s64
    %s66 = sphi 0, %s64
    %s67 = sphi 0, %s66
    %s81 = sphi 0, %s67
    %s87 = sphi 0, %s89
    %s90 = sphi 0, %s87
    %s91 = sphi 0, %s90
    %s107 = sphi 0, %s91
  $region4: #{generalized_rcnn_forward.8} parent=0 // loop_header_branch
    %12 = sbr.rel (%p10) target = $region8
  $region5: #{generalized_rcnn_forward.8} parent=0 // loop_body
    %s14 = ssub.s32 %s9, 1
    %s15 = ssub.s32 %s9, 2
    %s16 = sadd.s32 %s9, 1
    %s17 = ssub.s32 %s9, %s16
    %p18 = scmp.eq.s32.totalorder %s17, 0
    %s20 = sadd.s32 %s19, 1
    %s21 = scalar_select %p18, %s19, %s20
    %p24 = pneg %p18
    %p25 = scmp.eq.s32.totalorder %s9, 1
    %p26 = por %p24, %p25
    %p27 = scmp.ne.s32.totalorder %s19, %s22
    %p28 = scmp.eq.s32.totalorder %s9, 0
    %p29 = por %p27, %p28
    %p30 = scmp.ne.s32.totalorder %s19, %s22
    %p31 = scmp.eq.s32.totalorder %s14, 1
    %p32 = por %p30, %p31
    %p33 = scmp.ne.s32.totalorder %s22, %s23
    %p34 = scmp.eq.s32.totalorder %s14, 0
    %p35 = por %p33, %p34
    %p36 = scmp.ne.s32.totalorder %s22, %s23
    %p37 = scmp.eq.s32.totalorder %s15, 1
    %p38 = por %p36, %p37
    %p40 = scmp.ne.s32.totalorder %s23, %s39
    %p41 = scmp.eq.s32.totalorder %s15, 0
    %p42 = por %p40, %p41
    %s44 = sadd.s32 %s43, 1
    %p47 = scmp.eq.s32.totalorder %s9, 1
    %p48 = scmp.ne.s32.totalorder %s43, %s45
    %p49 = scmp.eq.s32.totalorder %s9, 0
    %p50 = por %p48, %p49
    %p51 = scmp.ne.s32.totalorder %s43, %s45
    %p52 = scmp.eq.s32.totalorder %s14, 1
    %p53 = por %p51, %p52
    %p54 = scmp.ne.s32.totalorder %s45, %s46
    %p55 = scmp.eq.s32.totalorder %s14, 0
    %p56 = por %p54, %p55
    %p57 = scmp.ne.s32.totalorder %s45, %s46
    %p58 = scmp.eq.s32.totalorder %s15, 1
    %p59 = por %p57, %p58
    %p61 = scmp.ne.s32.totalorder %s46, %s60
    %p62 = scmp.eq.s32.totalorder %s15, 0
    %p63 = por %p61, %p62
    %s65 = sadd.s32 %s64, 1
    %p68 = scmp.eq.s32.totalorder %s9, 1
    %p69 = scmp.ne.s32.totalorder %s64, %s66
    %p70 = scmp.eq.s32.totalorder %s9, 0
    %p71 = por %p69, %p70
    %p72 = scmp.ne.s32.totalorder %s64, %s66
    %p73 = scmp.eq.s32.totalorder %s14, 1
    %p74 = por %p72, %p73
    %p75 = scmp.ne.s32.totalorder %s66, %s67
    %p76 = scmp.eq.s32.totalorder %s14, 0
    %p77 = por %p75, %p76
    %p78 = scmp.ne.s32.totalorder %s66, %s67
    %p79 = scmp.eq.s32.totalorder %s15, 1
    %p80 = por %p78, %p79
    %p82 = scmp.ne.s32.totalorder %s67, %s81
    %p83 = scmp.eq.s32.totalorder %s15, 0
    %p84 = por %p82, %p83
    %s85 = ssub.s32 %s9, %s16
    %p86 = scmp.eq.s32.totalorder %s85, 0
    %s88 = sadd.s32 %s87, 1
    %s89 = scalar_select %p86, %s87, %s88
    %p92 = pneg %p86
    %p93 = scmp.eq.s32.totalorder %s9, 1
    %p94 = por %p92, %p93
    %p95 = scmp.ne.s32.totalorder %s87, %s90
    %p96 = scmp.eq.s32.totalorder %s9, 0
    %p97 = por %p95, %p96
    %p98 = scmp.ne.s32.totalorder %s87, %s90
    %p99 = scmp.eq.s32.totalorder %s14, 1
    %p100 = por %p98, %p99
    %p101 = scmp.ne.s32.totalorder %s90, %s91
    %p102 = scmp.eq.s32.totalorder %s14, 0
    %p103 = por %p101, %p102
    %p104 = scmp.ne.s32.totalorder %s90, %s91
    %p105 = scmp.eq.s32.totalorder %s15, 1
    %p106 = por %p104, %p105
    %p108 = scmp.ne.s32.totalorder %s91, %s107
    %p109 = scmp.eq.s32.totalorder %s15, 0
    %p110 = por %p108, %p109
    %p111 = scmp.le.s32.totalorder 1, %s9
    %p112 = scmp.lt.s32.totalorder %s9, 3
    %p113 = pnand %p111, %p112
    %p114 = pneg %p113
    // Predicated region
    $region9: #{generalized_rcnn_forward.8} parent=5 // pred_check
      _
    $region10: #{generalized_rcnn_forward.8} parent=5 // pred_check_branch
      %116 = sbr.rel (%p113) target = $region12
    $region11: #{generalized_rcnn_forward.8} parent=5 // pred_region
      %s117 = ssub.s32 %s9, 1
      // Predicated region
      $region13: #{generalized_rcnn_forward.8} parent=11 // pred_check
        %p118 = pneg %p56
      $region14: #{generalized_rcnn_forward.8} parent=11 // pred_check_branch
        %120 = sbr.rel (%p118) target = $region16
      $region15: #{generalized_rcnn_forward.8} parent=11 // pred_region
        _
      $region16: #{generalized_rcnn_forward.8} parent=11 // pred_fallthru
        _
      // Predicated region
      $region17: #{generalized_rcnn_forward.8} parent=11 // pred_check
        %p121 = pneg %p77
      $region18: #{generalized_rcnn_forward.8} parent=11 // pred_check_branch
        %123 = sbr.rel (%p121) target = $region20
      $region19: #{generalized_rcnn_forward.8} parent=11 // pred_region
        _
      $region20: #{generalized_rcnn_forward.8} parent=11 // pred_fallthru
        _
    $region12: #{generalized_rcnn_forward.8} parent=5 // pred_fallthru
      _
    %p124 = scmp.lt.s32.totalorder %s9, 2
    // Predicated region
    $region21: #{generalized_rcnn_forward.8} parent=5 // pred_check
      %p125 = pneg %p124
    $region22: #{generalized_rcnn_forward.8} parent=5 // pred_check_branch
      %127 = sbr.rel (%p125) target = $region24
    $region23: #{generalized_rcnn_forward.8} parent=5 // pred_region
      // Predicated region
      $region25: #{generalized_rcnn_forward.8} parent=23 // pred_check
        %p128 = pneg %p29
      $region26: #{generalized_rcnn_forward.8} parent=23 // pred_check_branch
        %130 = sbr.rel (%p128) target = $region28
      $region27: #{generalized_rcnn_forward.8} parent=23 // pred_region
        %p131 = scmp.lt.s32.totalorder %s9, 1
        %s132 = scalar_select %p131, %s9, 1
        %s133 = smul.addr %s132, 32
        %s134 = smul.addr %s133, 4
        %s135 = scalar_lea.vmem %s0, %s134
      $region28: #{generalized_rcnn_forward.8} parent=23 // pred_fallthru
        _
    $region24: #{generalized_rcnn_forward.8} parent=5 // pred_fallthru
      _
    %p136 = scmp.le.s32.totalorder 1, %s9
    %p137 = scmp.lt.s32.totalorder %s9, 3
    %p138 = pnand %p136, %p137
    %p139 = pneg %p138
    // Predicated region
    $region29: #{generalized_rcnn_forward.8} parent=5 // pred_check
      _
    $region30: #{generalized_rcnn_forward.8} parent=5 // pred_check_branch
      %141 = sbr.rel (%p138) target = $region32
    $region31: #{generalized_rcnn_forward.8} parent=5 // pred_region
      %s142 = ssub.s32 %s9, 1
      %p143 = scmp.lt.s32.totalorder %s14, 1
      %s144 = scalar_select %p143, %s14, 1
      %s145 = smul.addr %s144, 32
      %s146 = smul.addr %s145, 4
      %s147 = scalar_lea.vmem %s0, %s146
      %p148 = pneg %p35
      %p149 = pneg %p32
      %p150 = pneg %p56
      %p151 = pneg %p53
      %p152 = pneg %p77
      %p153 = pneg %p74
      %p154 = pneg %p103
      %p155 = pneg %p100
      %p156 = scmp.lt.s32.totalorder %s14, 1
      %s157 = scalar_select %p156, %s14, 1
      %s158 = smul.addr %s157, 16
      %s159 = smul.addr %s158, 4
      %s160 = scalar_lea.vmem %s3, %s159
      %p161 = scmp.lt.s32.totalorder %s14, 1
      %s162 = scalar_select %p161, %s14, 1
      %s163 = smul.addr %s162, 32
      %s164 = smul.addr %s163, 4
      %s165 = scalar_lea.vmem %s0, %s164
      %p166 = scmp.lt.s32.totalorder %s14, 1
      %s167 = scalar_select %p166, %s14, 1
      %s168 = smul.addr %s167, 16
      %s169 = smul.addr %s168, 4
      %s170 = scalar_lea.vmem %s3, %s169
      %v172 = vld [vmem:[%s1] sm:$0xf]
      %v173 = vld [vmem:[%s1 + $0x4] sm:$0xf]
      %v174 = vld [vmem:[%s165] sm:$0xff]
      %v175 = vld [vmem:[%s165 + $0x8] sm:$0xff]
      %v176 = vld [vmem:[%s165 + $0x10] sm:$0xff]
      %v177 = vld [vmem:[%s165 + $0x18] sm:$0xff]
      %v178 = vld [vmem:[%s165 + $0x20] sm:$0xff]
      %v179 = vld [vmem:[%s165 + $0x28] sm:$0xff]
      %v180 = vld [vmem:[%s165 + $0x30] sm:$0xff]
      %v181 = vld [vmem:[%s165 + $0x38] sm:$0xff]
      %v182 = vld [vmem:[%s165 + $0x40] sm:$0xff]
      %v183 = vld [vmem:[%s165 + $0x48] sm:$0xff]
      %v184 = vld [vmem:[%s165 + $0x50] sm:$0xff]
      %v185 = vld [vmem:[%s165 + $0x58] sm:$0xff]
      %v186 = vld [vmem:[%s165 + $0x60] sm:$0x33]
      %v187 = vld [vmem:[%s165 + $0x68] sm:$0x33]
      %v188 = vld [vmem:[%s165 + $0x70] sm:$0x33]
      %v189 = vld [vmem:[%s165 + $0x78] sm:$0x33]
      %v190 = vld [vmem:[%s2] sm:$0xff]
      %v191 = vld [vmem:[%s2 + $0x8] sm:$0xff]
      %193 = vset.pattern.permute.xlu0 0
      %194 = vperm.xlu0 %193, %v190
      %v195 = vpop.permute.xlu0 %194
      %198 = vset.pattern.permute.xlu0 0
      %199 = vperm.xlu0 %198, %v191
      %v200 = vpop.permute.xlu0 %199
      %v204 = vunpack.c.l.b16 %v172
      %v205 = vunpack.c.l.b16 %v173
      %v206 = vpack.c.b16 %v205, %v204
      %v223 = vunpack.c.l.b16 %v174
      %v224 = vunpack.c.h.b16 %v174
      %v225 = vunpack.c.l.b16 %v175
      %v226 = vunpack.c.h.b16 %v175
      %v227 = vunpack.c.l.b16 %v176
      %v228 = vunpack.c.h.b16 %v176
      %v229 = vunpack.c.l.b16 %v177
      %v230 = vunpack.c.h.b16 %v177
      %v231 = vunpack.c.l.b16 %v178
      %v232 = vunpack.c.h.b16 %v178
      %v233 = vunpack.c.l.b16 %v179
      %v234 = vunpack.c.h.b16 %v179
      %v235 = vunpack.c.l.b16 %v180
      %v236 = vunpack.c.h.b16 %v180
      %v237 = vunpack.c.l.b16 %v181
      %v238 = vunpack.c.h.b16 %v181
      %v239 = vunpack.c.l.b16 %v182
      %v240 = vunpack.c.h.b16 %v182
      %v241 = vunpack.c.l.b16 %v183
      %v242 = vunpack.c.h.b16 %v183
      %v243 = vunpack.c.l.b16 %v184
      %v244 = vunpack.c.h.b16 %v184
      %v245 = vunpack.c.l.b16 %v185
      %v246 = vunpack.c.h.b16 %v185
      %v247 = vunpack.c.l.b16 %v186
      %v248 = vunpack.c.h.b16 %v186
      %v249 = vunpack.c.l.b16 %v187
      %v250 = vunpack.c.h.b16 %v187
      %v251 = vunpack.c.l.b16 %v188
      %v252 = vunpack.c.h.b16 %v188
      %v253 = vunpack.c.l.b16 %v189
      %v254 = vunpack.c.h.b16 %v189
      %v255 = vpack.c.b16 %v231, %v223
      %v256 = vpack.c.b16 %v232, %v224
      %v257 = vpack.c.b16 %v233, %v225
      %v258 = vpack.c.b16 %v234, %v226
      %v259 = vpack.c.b16 %v235, %v227
      %v260 = vpack.c.b16 %v236, %v228
      %v261 = vpack.c.b16 %v237, %v229
      %v262 = vpack.c.b16 %v238, %v230
      %v263 = vpack.c.b16 %v247, %v239
      %v264 = vpack.c.b16 %v248, %v240
      %v265 = vpack.c.b16 %v249, %v241
      %v266 = vpack.c.b16 %v250, %v242
      %v267 = vpack.c.b16 %v251, %v243
      %v268 = vpack.c.b16 %v252, %v244
      %v269 = vpack.c.b16 %v253, %v245
      %v270 = vpack.c.b16 %v254, %v246
      %vm279 = vcmask 220160
      %v281 = vsel %vm279, %v206, 0
      %vm283 = vcmask 1044480
      %vm284 = vcmask 1045504
      %v285 = vsel %vm283, 4294967295, 65535
      %v286 = vsel %vm284, %v285, 0
      %v288 = vand.u32 %v263, %v286
      %v291 = vand.u32 %v264, %v286
      %v294 = vand.u32 %v265, %v286
      %v297 = vand.u32 %v266, %v286
      %v300 = vand.u32 %v267, %v286
      %v303 = vand.u32 %v268, %v286
      %v306 = vand.u32 %v269, %v286
      %v309 = vand.u32 %v270, %v286
      %311 = vmatprep.subr.bf16.mxu0 %v256
      %312 = vmatpush1.bf16.msra.mxu0 %v255
      %313 = vmatprep.subr.bf16.mxu0 %v291
      %314 = vmatpush1.bf16.msra.mxu0 %v288
      %315 = vmatprep.subr.bf16.mxu0 0
      %316 = vmatpush1.bf16.msra.mxu0 0
      %317 = vmatprep.subr.bf16.mxu0 0
      %318 = vmatpush1.bf16.msra.mxu0 0
      %319 = vmatprep.subr.bf16.mxu0 0
      %320 = vmatpush1.bf16.msra.mxu0 0
      %321 = vmatprep.subr.bf16.mxu0 0
      %322 = vmatpush1.bf16.msra.mxu0 0
      %323 = vmatprep.subr.bf16.mxu0 0
      %324 = vmatpush1.bf16.msra.mxu0 0
      %325 = vmatprep.subr.bf16.mxu0 0
      %326 = vmatpush1.bf16.msra.mxu0 0
      %327 = vmatprep.subr.bf16.mxu0 0
      %328 = vmatpush1.bf16.msra.mxu0 0
      %329 = vmatprep.subr.bf16.mxu0 0
      %330 = vmatpush1.bf16.msra.mxu0 0
      %331 = vmatprep.subr.bf16.mxu0 0
      %332 = vmatpush1.bf16.msra.mxu0 0
      %333 = vmatprep.subr.bf16.mxu0 0
      %334 = vmatpush1.bf16.msra.mxu0 0
      %335 = vmatprep.subr.bf16.mxu0 0
      %336 = vmatpush1.bf16.msra.mxu0 0
      %337 = vmatprep.subr.bf16.mxu0 0
      %338 = vmatpush1.bf16.msra.mxu0 0
      %339 = vmatprep.subr.bf16.mxu0 0
      %340 = vmatpush1.bf16.msra.mxu0 0
      %341 = vmatprep.subr.bf16.mxu0 0
      %342 = vmatpush1.bf16.msra.mxu0 0
      %343 = vmatprep.mubr.bf16.mxu0 0
      %344 = vmatmul.mubr.bf16.gmra.mrb[0].mxu0 %v281
      %v345 = vpop.f32.mrb[0].mxu0
      %v346 = vadd.f32 %v195, %v345
      %v347 = vpop.f32.mrb[0].mxu0
      %v348 = vadd.f32 %v195, %v347
      %v349 = vpop.f32.mrb[0].mxu0
      %v350 = vadd.f32 %v200, %v349
      %v351 = vpop.f32.mrb[0].mxu0
      %v352 = vadd.f32 %v200, %v351
      %353 = vdwg.mxu0
      %354 = vmatprep.subr.bf16.mxu0 %v258
      %355 = vmatpush1.bf16.msra.mxu0 %v257
      %356 = vmatprep.subr.bf16.mxu0 %v297
      %357 = vmatpush1.bf16.msra.mxu0 %v294
      %358 = vmatprep.subr.bf16.mxu0 0
      %359 = vmatpush1.bf16.msra.mxu0 0
      %360 = vmatprep.subr.bf16.mxu0 0
      %361 = vmatpush1.bf16.msra.mxu0 0
      %362 = vmatprep.subr.bf16.mxu0 0
      %363 = vmatpush1.bf16.msra.mxu0 0
      %364 = vmatprep.subr.bf16.mxu0 0
      %365 = vmatpush1.bf16.msra.mxu0 0
      %366 = vmatprep.subr.bf16.mxu0 0
      %367 = vmatpush1.bf16.msra.mxu0 0
      %368 = vmatprep.subr.bf16.mxu0 0
      %369 = vmatpush1.bf16.msra.mxu0 0
      %370 = vmatprep.subr.bf16.mxu0 0
      %371 = vmatpush1.bf16.msra.mxu0 0
      %372 = vmatprep.subr.bf16.mxu0 0
      %373 = vmatpush1.bf16.msra.mxu0 0
      %374 = vmatprep.subr.bf16.mxu0 0
      %375 = vmatpush1.bf16.msra.mxu0 0
      %376 = vmatprep.subr.bf16.mxu0 0
      %377 = vmatpush1.bf16.msra.mxu0 0
      %378 = vmatprep.subr.bf16.mxu0 0
      %379 = vmatpush1.bf16.msra.mxu0 0
      %380 = vmatprep.subr.bf16.mxu0 0
      %381 = vmatpush1.bf16.msra.mxu0 0
      %382 = vmatprep.subr.bf16.mxu0 0
      %383 = vmatpush1.bf16.msra.mxu0 0
      %384 = vmatprep.subr.bf16.mxu0 0
      %385 = vmatpush1.bf16.msra.mxu0 0
      %386 = vmatprep.mubr.bf16.mxu0 0
      %387 = vmatmul.mubr.bf16.gmra.mrb[0].mxu0 %v281
      %v388 = vpop.f32.mrb[0].mxu0
      %v389 = vadd.f32 %v195, %v388
      %v390 = vpop.f32.mrb[0].mxu0
      %v391 = vadd.f32 %v195, %v390
      %v392 = vpop.f32.mrb[0].mxu0
      %v393 = vadd.f32 %v200, %v392
      %v394 = vpop.f32.mrb[0].mxu0
      %v395 = vadd.f32 %v200, %v394
      %396 = vdwg.mxu0
      %397 = vmatprep.subr.bf16.mxu0 %v260
      %398 = vmatpush1.bf16.msra.mxu0 %v259
      %399 = vmatprep.subr.bf16.mxu0 %v303
      %400 = vmatpush1.bf16.msra.mxu0 %v300
      %401 = vmatprep.subr.bf16.mxu0 0
      %402 = vmatpush1.bf16.msra.mxu0 0
      %403 = vmatprep.subr.bf16.mxu0 0
      %404 = vmatpush1.bf16.msra.mxu0 0
      %405 = vmatprep.subr.bf16.mxu0 0
      %406 = vmatpush1.bf16.msra.mxu0 0
      %407 = vmatprep.subr.bf16.mxu0 0
      %408 = vmatpush1.bf16.msra.mxu0 0
      %409 = vmatprep.subr.bf16.mxu0 0
      %410 = vmatpush1.bf16.msra.mxu0 0
      %411 = vmatprep.subr.bf16.mxu0 0
      %412 = vmatpush1.bf16.msra.mxu0 0
      %413 = vmatprep.subr.bf16.mxu0 0
      %414 = vmatpush1.bf16.msra.mxu0 0
      %415 = vmatprep.subr.bf16.mxu0 0
      %416 = vmatpush1.bf16.msra.mxu0 0
      %417 = vmatprep.subr.bf16.mxu0 0
      %418 = vmatpush1.bf16.msra.mxu0 0
      %419 = vmatprep.subr.bf16.mxu0 0
      %420 = vmatpush1.bf16.msra.mxu0 0
      %421 = vmatprep.subr.bf16.mxu0 0
      %422 = vmatpush1.bf16.msra.mxu0 0
      %423 = vmatprep.subr.bf16.mxu0 0
      %424 = vmatpush1.bf16.msra.mxu0 0
      %425 = vmatprep.subr.bf16.mxu0 0
      %426 = vmatpush1.bf16.msra.mxu0 0
      %427 = vmatprep.subr.bf16.mxu0 0
      %428 = vmatpush1.bf16.msra.mxu0 0
      %429 = vmatprep.mubr.bf16.mxu0 0
      %430 = vmatmul.mubr.bf16.gmra.mrb[0].mxu0 %v281
      %v431 = vpop.f32.mrb[0].mxu0
      %v432 = vadd.f32 %v195, %v431
      %v433 = vpop.f32.mrb[0].mxu0
      %v434 = vadd.f32 %v195, %v433
      %v435 = vpop.f32.mrb[0].mxu0
      %v436 = vadd.f32 %v200, %v435
      %v437 = vpop.f32.mrb[0].mxu0
      %v438 = vadd.f32 %v200, %v437
      %439 = vdwg.mxu0
      %440 = vmatprep.subr.bf16.mxu0 %v262
      %441 = vmatpush1.bf16.msra.mxu0 %v261
      %442 = vmatprep.subr.bf16.mxu0 %v309
      %443 = vmatpush1.bf16.msra.mxu0 %v306
      %444 = vmatprep.subr.bf16.mxu0 0
      %445 = vmatpush1.bf16.msra.mxu0 0
      %446 = vmatprep.subr.bf16.mxu0 0
      %447 = vmatpush1.bf16.msra.mxu0 0
      %448 = vmatprep.subr.bf16.mxu0 0
      %449 = vmatpush1.bf16.msra.mxu0 0
      %450 = vmatprep.subr.bf16.mxu0 0
      %451 = vmatpush1.bf16.msra.mxu0 0
      %452 = vmatprep.subr.bf16.mxu0 0
      %453 = vmatpush1.bf16.msra.mxu0 0
      %454 = vmatprep.subr.bf16.mxu0 0
      %455 = vmatpush1.bf16.msra.mxu0 0
      %456 = vmatprep.subr.bf16.mxu0 0
      %457 = vmatpush1.bf16.msra.mxu0 0
      %458 = vmatprep.subr.bf16.mxu0 0
      %459 = vmatpush1.bf16.msra.mxu0 0
      %460 = vmatprep.subr.bf16.mxu0 0
      %461 = vmatpush1.bf16.msra.mxu0 0
      %462 = vmatprep.subr.bf16.mxu0 0
      %463 = vmatpush1.bf16.msra.mxu0 0
      %464 = vmatprep.subr.bf16.mxu0 0
      %465 = vmatpush1.bf16.msra.mxu0 0
      %466 = vmatprep.subr.bf16.mxu0 0
      %467 = vmatpush1.bf16.msra.mxu0 0
      %468 = vmatprep.subr.bf16.mxu0 0
      %469 = vmatpush1.bf16.msra.mxu0 0
      %470 = vmatprep.subr.bf16.mxu0 0
      %471 = vmatpush1.bf16.msra.mxu0 0
      %472 = vmatprep.mubr.bf16.mxu0 0
      %473 = vmatmul.mubr.bf16.gmra.mrb[0].mxu0 %v281
      %v474 = vpop.f32.mrb[0].mxu0
      %v475 = vadd.f32 %v195, %v474
      %v476 = vpop.f32.mrb[0].mxu0
      %v477 = vadd.f32 %v195, %v476
      %v478 = vpop.f32.mrb[0].mxu0
      %v479 = vadd.f32 %v200, %v478
      %v480 = vpop.f32.mrb[0].mxu0
      %v481 = vadd.f32 %v200, %v480
      %482 = vdwg.mxu0
      %v483 = vmax.f32 %v346, 0.0
      %v484 = vmax.f32 %v348, 0.0
      %v485 = vmax.f32 %v389, 0.0
      %v486 = vmax.f32 %v391, 0.0
      %v487 = vmax.f32 %v432, 0.0
      %v488 = vmax.f32 %v434, 0.0
      %v489 = vmax.f32 %v475, 0.0
      %v490 = vmax.f32 %v477, 0.0
      %v491 = vmax.f32 %v350, 0.0
      %v492 = vmax.f32 %v352, 0.0
      %v493 = vmax.f32 %v393, 0.0
      %v494 = vmax.f32 %v395, 0.0
      %v495 = vmax.f32 %v436, 0.0
      %v496 = vmax.f32 %v438, 0.0
      %v497 = vmax.f32 %v479, 0.0
      %v498 = vmax.f32 %v481, 0.0
      %v499 = vpack.c.bf16 %v491, %v483
      %v500 = vpack.c.bf16 %v492, %v484
      %v501 = vpack.c.bf16 %v493, %v485
      %v502 = vpack.c.bf16 %v494, %v486
      %v503 = vpack.c.bf16 %v495, %v487
      %v504 = vpack.c.bf16 %v496, %v488
      %v505 = vpack.c.bf16 %v497, %v489
      %v506 = vpack.c.bf16 %v498, %v490
      %v515 = vunpack.c.l.b16 %v499
      %v516 = vunpack.c.l.b16 %v500
      %v517 = vunpack.c.l.b16 %v501
      %v518 = vunpack.c.l.b16 %v502
      %v519 = vunpack.c.l.b16 %v503
      %v520 = vunpack.c.l.b16 %v504
      %v521 = vunpack.c.l.b16 %v505
      %v522 = vunpack.c.l.b16 %v506
      %v523 = vunpack.c.h.b16 %v499
      %v524 = vunpack.c.h.b16 %v500
      %v525 = vunpack.c.h.b16 %v501
      %v526 = vunpack.c.h.b16 %v502
      %v527 = vunpack.c.h.b16 %v503
      %v528 = vunpack.c.h.b16 %v504
      %v529 = vunpack.c.h.b16 %v505
      %v530 = vunpack.c.h.b16 %v506
      %v531 = vpack.c.b16 %v516, %v515
      %v532 = vpack.c.b16 %v518, %v517
      %v533 = vpack.c.b16 %v520, %v519
      %v534 = vpack.c.b16 %v522, %v521
      %v535 = vpack.c.b16 %v524, %v523
      %v536 = vpack.c.b16 %v526, %v525
      %v537 = vpack.c.b16 %v528, %v527
      %v538 = vpack.c.b16 %v530, %v529
      %547 = vst [vmem:[%s170] sm:$0xff] %v531
      %548 = vst [vmem:[%s170 + $0x8] sm:$0xff] %v532
      %549 = vst [vmem:[%s170 + $0x10] sm:$0xff] %v533
      %550 = vst [vmem:[%s170 + $0x18] sm:$0xff] %v534
      %551 = vst [vmem:[%s170 + $0x20] sm:$0xff] %v535
      %552 = vst [vmem:[%s170 + $0x28] sm:$0xff] %v536
      %553 = vst [vmem:[%s170 + $0x30] sm:$0xff] %v537
      %554 = vst [vmem:[%s170 + $0x38] sm:$0xff] %v538
      %p555 = scmp.lt.s32.totalorder %s14, 1
      %s556 = scalar_select %p555, %s14, 1
      %s557 = smul.addr %s556, 16
      %s558 = smul.addr %s557, 4
      %s559 = scalar_lea.vmem %s3, %s558
      // Predicated region
      $region33: #{generalized_rcnn_forward.8} parent=31 // pred_check
        %p560 = pneg %p100
      $region34: #{generalized_rcnn_forward.8} parent=31 // pred_check_branch
        %562 = sbr.rel (%p560) target = $region36
      $region35: #{generalized_rcnn_forward.8} parent=31 // pred_region
        _
      $region36: #{generalized_rcnn_forward.8} parent=31 // pred_fallthru
        _
    $region32: #{generalized_rcnn_forward.8} parent=5 // pred_fallthru
      _
    %p563 = scmp.le.s32.totalorder 2, %s9
    // Predicated region
    $region37: #{generalized_rcnn_forward.8} parent=5 // pred_check
      %p564 = pneg %p563
    $region38: #{generalized_rcnn_forward.8} parent=5 // pred_check_branch
      %566 = sbr.rel (%p564) target = $region40
    $region39: #{generalized_rcnn_forward.8} parent=5 // pred_region
      %s567 = ssub.s32 %s9, 2
      // Predicated region
      $region41: #{generalized_rcnn_forward.8} parent=39 // pred_check
        %p568 = pneg %p106
      $region42: #{generalized_rcnn_forward.8} parent=39 // pred_check_branch
        %570 = sbr.rel (%p568) target = $region44
      $region43: #{generalized_rcnn_forward.8} parent=39 // pred_region
        %p571 = scmp.lt.s32.totalorder %s15, 1
        %s572 = scalar_select %p571, %s15, 1
        %s573 = smul.addr %s572, 16
        %s574 = smul.addr %s573, 4
        %s575 = scalar_lea.vmem %s3, %s574
      $region44: #{generalized_rcnn_forward.8} parent=39 // pred_fallthru
        _
    $region40: #{generalized_rcnn_forward.8} parent=5 // pred_fallthru
      _
  $region6: #{generalized_rcnn_forward.8} parent=0 // loop_footer
    %s13 = sadd.s32 1, %s9
  $region7: #{generalized_rcnn_forward.8} parent=0 // loop_footer_branch
    %8 = sbr.rel target = $region3
  $region8: #{generalized_rcnn_forward.8} parent=0 // loop_exit
    _

// kernel: generalized_rcnn_forward.9
$region0: #{generalized_rcnn_forward.9}
  #allocation0 [shape = 'u32[]', space=smem, size = 0x4, offset = 0x4, fixed_abs, tag = 'smem constant byte address 0x4 - core index']
  #allocation1 [shape = 'u32[144,128]{1,0:T(1,128)}', space=vmem, size = 0x12000, scoped, tag = 'internal scratch']
  %s0 = inlined_call_operand.vmem [shape: bf16[2,144,256], index: 0, kind: input, shape index: {}]
  %s1 = inlined_call_operand.vmem [shape: bf16[32,144], index: 1, kind: input, shape index: {}]
  %s2 = inlined_call_operand.vmem [shape: f32[32,1], index: 2, kind: input, shape index: {}]
  %s3 = inlined_call_operand.vmem [shape: bf16[2,32,256], index: 3, kind: output, shape index: {}]
  %s4 = sld [smem:[#allocation0]]
  $region45: #{generalized_rcnn_forward.9} parent=0
    _
  %s6 = ssub.s32 1, %s4
  %s7 = scalar_select 0, %s6, %s4
  loop: start=0, step=1, limit=4
  $region2: #{generalized_rcnn_forward.9} parent=0 // loop_pre_header
    _
  $region3: #{generalized_rcnn_forward.9} parent=0 // loop_header
    %s9 = sphi 0, %s13
    %p10 = scmp.ge.s32.totalorder %s9, 4
    %s19 = sphi 0, %s21
    %s22 = sphi 0, %s19
    %s23 = sphi 0, %s22
    %s39 = sphi 0, %s23
    %s43 = sphi 0, %s43
    %s45 = sphi 0, %s43
    %s46 = sphi 0, %s45
    %s60 = sphi 0, %s46
    %s64 = sphi 0, %s64
    %s66 = sphi 0, %s64
    %s67 = sphi 0, %s66
    %s81 = sphi 0, %s67
    %s87 = sphi 0, %s89
    %s90 = sphi 0, %s87
    %s91 = sphi 0, %s90
    %s107 = sphi 0, %s91
  $region4: #{generalized_rcnn_forward.9} parent=0 // loop_header_branch
    %12 = sbr.rel (%p10) target = $region8
  $region5: #{generalized_rcnn_forward.9} parent=0 // loop_body
    %s14 = ssub.s32 %s9, 1
    %s15 = ssub.s32 %s9, 2
    %s16 = sadd.s32 %s9, 1
    %s17 = ssub.s32 %s9, %s16
    %p18 = scmp.eq.s32.totalorder %s17, 0
    %s20 = sadd.s32 %s19, 1
    %s21 = scalar_select %p18, %s19, %s20
    %p24 = pneg %p18
    %p25 = scmp.eq.s32.totalorder %s9, 1
    %p26 = por %p24, %p25
    %p27 = scmp.ne.s32.totalorder %s19, %s22
    %p28 = scmp.eq.s32.totalorder %s9, 0
    %p29 = por %p27, %p28
    %p30 = scmp.ne.s32.totalorder %s19, %s22
    %p31 = scmp.eq.s32.totalorder %s14, 1
    %p32 = por %p30, %p31
    %p33 = scmp.ne.s32.totalorder %s22, %s23
    %p34 = scmp.eq.s32.totalorder %s14, 0
    %p35 = por %p33, %p34
    %p36 = scmp.ne.s32.totalorder %s22, %s23
    %p37 = scmp.eq.s32.totalorder %s15, 1
    %p38 = por %p36, %p37
    %p40 = scmp.ne.s32.totalorder %s23, %s39
    %p41 = scmp.eq.s32.totalorder %s15, 0
    %p42 = por %p40, %p41
    %s44 = sadd.s32 %s43, 1
    %p47 = scmp.eq.s32.totalorder %s9, 1
    %p48 = scmp.ne.s32.totalorder %s43, %s45
    %p49 = scmp.eq.s32.totalorder %s9, 0
    %p50 = por %p48, %p49
    %p51 = scmp.ne.s32.totalorder %s43, %s45
    %p52 = scmp.eq.s32.totalorder %s14, 1
    %p53 = por %p51, %p52
    %p54 = scmp.ne.s32.totalorder %s45, %s46
    %p55 = scmp.eq.s32.totalorder %s14, 0
    %p56 = por %p54, %p55
    %p57 = scmp.ne.s32.totalorder %s45, %s46
    %p58 = scmp.eq.s32.totalorder %s15, 1
    %p59 = por %p57, %p58
    %p61 = scmp.ne.s32.totalorder %s46, %s60
    %p62 = scmp.eq.s32.totalorder %s15, 0
    %p63 = por %p61, %p62
    %s65 = sadd.s32 %s64, 1
    %p68 = scmp.eq.s32.totalorder %s9, 1
    %p69 = scmp.ne.s32.totalorder %s64, %s66
    %p70 = scmp.eq.s32.totalorder %s9, 0
    %p71 = por %p69, %p70
    %p72 = scmp.ne.s32.totalorder %s64, %s66
    %p73 = scmp.eq.s32.totalorder %s14, 1
    %p74 = por %p72, %p73
    %p75 = scmp.ne.s32.totalorder %s66, %s67
    %p76 = scmp.eq.s32.totalorder %s14, 0
    %p77 = por %p75, %p76
    %p78 = scmp.ne.s32.totalorder %s66, %s67
    %p79 = scmp.eq.s32.totalorder %s15, 1
    %p80 = por %p78, %p79
    %p82 = scmp.ne.s32.totalorder %s67, %s81
    %p83 = scmp.eq.s32.totalorder %s15, 0
    %p84 = por %p82, %p83
    %s85 = ssub.s32 %s9, %s16
    %p86 = scmp.eq.s32.totalorder %s85, 0
    %s88 = sadd.s32 %s87, 1
    %s89 = scalar_select %p86, %s87, %s88
    %p92 = pneg %p86
    %p93 = scmp.eq.s32.totalorder %s9, 1
    %p94 = por %p92, %p93
    %p95 = scmp.ne.s32.totalorder %s87, %s90
    %p96 = scmp.eq.s32.totalorder %s9, 0
    %p97 = por %p95, %p96
    %p98 = scmp.ne.s32.totalorder %s87, %s90
    %p99 = scmp.eq.s32.totalorder %s14, 1
    %p100 = por %p98, %p99
    %p101 = scmp.ne.s32.totalorder %s90, %s91
    %p102 = scmp.eq.s32.totalorder %s14, 0
    %p103 = por %p101, %p102
    %p104 = scmp.ne.s32.totalorder %s90, %s91
    %p105 = scmp.eq.s32.totalorder %s15, 1
    %p106 = por %p104, %p105
    %p108 = scmp.ne.s32.totalorder %s91, %s107
    %p109 = scmp.eq.s32.totalorder %s15, 0
    %p110 = por %p108, %p109
    %p111 = scmp.le.s32.totalorder 1, %s9
    %p112 = scmp.lt.s32.totalorder %s9, 3
    %p113 = pnand %p111, %p112
    %p114 = pneg %p113
    // Predicated region
    $region9: #{generalized_rcnn_forward.9} parent=5 // pred_check
      _
    $region10: #{generalized_rcnn_forward.9} parent=5 // pred_check_branch
      %116 = sbr.rel (%p113) target = $region12
    $region11: #{generalized_rcnn_forward.9} parent=5 // pred_region
      %s117 = ssub.s32 %s9, 1
      // Predicated region
      $region13: #{generalized_rcnn_forward.9} parent=11 // pred_check
        %p118 = pneg %p56
      $region14: #{generalized_rcnn_forward.9} parent=11 // pred_check_branch
        %120 = sbr.rel (%p118) target = $region16
      $region15: #{generalized_rcnn_forward.9} parent=11 // pred_region
        _
      $region16: #{generalized_rcnn_forward.9} parent=11 // pred_fallthru
        _
      // Predicated region
      $region17: #{generalized_rcnn_forward.9} parent=11 // pred_check
        %p121 = pneg %p77
      $region18: #{generalized_rcnn_forward.9} parent=11 // pred_check_branch
        %123 = sbr.rel (%p121) target = $region20
      $region19: #{generalized_rcnn_forward.9} parent=11 // pred_region
        _
      $region20: #{generalized_rcnn_forward.9} parent=11 // pred_fallthru
        _
    $region12: #{generalized_rcnn_forward.9} parent=5 // pred_fallthru
      _
    %p124 = scmp.lt.s32.totalorder %s9, 2
    // Predicated region
    $region21: #{generalized_rcnn_forward.9} parent=5 // pred_check
      %p125 = pneg %p124
    $region22: #{generalized_rcnn_forward.9} parent=5 // pred_check_branch
      %127 = sbr.rel (%p125) target = $region24
    $region23: #{generalized_rcnn_forward.9} parent=5 // pred_region
      // Predicated region
      $region25: #{generalized_rcnn_forward.9} parent=23 // pred_check
        %p128 = pneg %p29
      $region26: #{generalized_rcnn_forward.9} parent=23 // pred_check_branch
        %130 = sbr.rel (%p128) target = $region28
      $region27: #{generalized_rcnn_forward.9} parent=23 // pred_region
        %p131 = scmp.lt.s32.totalorder %s9, 1
        %s132 = scalar_select %p131, %s9, 1
        %s133 = smul.addr %s132, 36
        %s134 = smul.addr %s133, 4
        %s135 = scalar_lea.vmem %s0, %s134
      $region28: #{generalized_rcnn_forward.9} parent=23 // pred_fallthru
        _
    $region24: #{generalized_rcnn_forward.9} parent=5 // pred_fallthru
      _
    %p136 = scmp.le.s32.totalorder 1, %s9
    %p137 = scmp.lt.s32.totalorder %s9, 3
    %p138 = pnand %p136, %p137
    %p139 = pneg %p138
    // Predicated region
    $region29: #{generalized_rcnn_forward.9} parent=5 // pred_check
      _
    $region30: #{generalized_rcnn_forward.9} parent=5 // pred_check_branch
      %141 = sbr.rel (%p138) target = $region32
    $region31: #{generalized_rcnn_forward.9} parent=5 // pred_region
      %s142 = ssub.s32 %s9, 1
      %p143 = scmp.lt.s32.totalorder %s14, 1
      %s144 = scalar_select %p143, %s14, 1
      %s145 = smul.addr %s144, 36
      %s146 = smul.addr %s145, 4
      %s147 = scalar_lea.vmem %s0, %s146
      %p148 = pneg %p35
      %p149 = pneg %p32
      %p150 = pneg %p56
      %p151 = pneg %p53
      %p152 = pneg %p77
      %p153 = pneg %p74
      %p154 = pneg %p103
      %p155 = pneg %p100
      %p156 = scmp.lt.s32.totalorder %s14, 1
      %s157 = scalar_select %p156, %s14, 1
      %s158 = smul.addr %s157, 8
      %s159 = smul.addr %s158, 4
      %s160 = scalar_lea.vmem %s3, %s159
      %p161 = scmp.lt.s32.totalorder %s14, 1
      %s162 = scalar_select %p161, %s14, 1
      %s163 = smul.addr %s162, 36
      %s164 = smul.addr %s163, 4
      %s165 = scalar_lea.vmem %s0, %s164
      %p166 = scmp.lt.s32.totalorder %s14, 1
      %s167 = scalar_select %p166, %s14, 1
      %s168 = smul.addr %s167, 8
      %s169 = smul.addr %s168, 4
      %s170 = scalar_lea.vmem %s3, %s169
      %v172 = vld [vmem:[%s1] sm:$0xff]
      %v173 = vld [vmem:[%s1 + $0x8] sm:$0xff]
      %v174 = vld [vmem:[%s1 + $0x10] sm:$0xff]
      %v175 = vld [vmem:[%s1 + $0x18] sm:$0xff]
      %v176 = vld [vmem:[%s165] sm:$0xff]
      %v177 = vld [vmem:[%s165 + $0x8] sm:$0xff]
      %v178 = vld [vmem:[%s165 + $0x10] sm:$0xff]
      %v179 = vld [vmem:[%s165 + $0x18] sm:$0xff]
      %v180 = vld [vmem:[%s165 + $0x20] sm:$0xff]
      %v181 = vld [vmem:[%s165 + $0x28] sm:$0xff]
      %v182 = vld [vmem:[%s165 + $0x30] sm:$0xff]
      %v183 = vld [vmem:[%s165 + $0x38] sm:$0xff]
      %v184 = vld [vmem:[%s165 + $0x40] sm:$0xff]
      %v185 = vld [vmem:[%s165 + $0x48] sm:$0xff]
      %v186 = vld [vmem:[%s165 + $0x50] sm:$0xff]
      %v187 = vld [vmem:[%s165 + $0x58] sm:$0xff]
      %v188 = vld [vmem:[%s165 + $0x60] sm:$0xff]
      %v189 = vld [vmem:[%s165 + $0x68] sm:$0xff]
      %v190 = vld [vmem:[%s165 + $0x70] sm:$0xff]
      %v191 = vld [vmem:[%s165 + $0x78] sm:$0xff]
      %v192 = vld [vmem:[%s165 + $0x80] sm:$0xff]
      %v193 = vld [vmem:[%s165 + $0x88] sm:$0xff]
      %v194 = vld [vmem:[%s2] sm:$0xff]
      %v195 = vld [vmem:[%s2 + $0x8] sm:$0xff]
      %v196 = vld [vmem:[%s2 + $0x10] sm:$0xff]
      %v197 = vld [vmem:[%s2 + $0x18] sm:$0xff]
      %199 = vset.pattern.permute.xlu0 0
      %200 = vperm.xlu0 %199, %v194
      %v201 = vpop.permute.xlu0 %200
      %204 = vset.pattern.permute.xlu0 0
      %205 = vperm.xlu0 %204, %v195
      %v206 = vpop.permute.xlu0 %205
      %209 = vset.pattern.permute.xlu0 0
      %210 = vperm.xlu0 %209, %v196
      %v211 = vpop.permute.xlu0 %210
      %214 = vset.pattern.permute.xlu0 0
      %215 = vperm.xlu0 %214, %v197
      %v216 = vpop.permute.xlu0 %215
      %v222 = vunpack.c.l.b16 %v172
      %v223 = vunpack.c.h.b16 %v172
      %v224 = vunpack.c.l.b16 %v173
      %v225 = vunpack.c.h.b16 %v173
      %v226 = vunpack.c.l.b16 %v174
      %v227 = vunpack.c.h.b16 %v174
      %v228 = vunpack.c.l.b16 %v175
      %v229 = vunpack.c.h.b16 %v175
      %v230 = vpack.c.b16 %v224, %v222
      %v231 = vpack.c.b16 %v225, %v223
      %v232 = vpack.c.b16 %v228, %v226
      %v233 = vpack.c.b16 %v229, %v227
      %v254 = vunpack.c.l.b16 %v176
      %v255 = vunpack.c.h.b16 %v176
      %v256 = vunpack.c.l.b16 %v177
      %v257 = vunpack.c.h.b16 %v177
      %v258 = vunpack.c.l.b16 %v178
      %v259 = vunpack.c.h.b16 %v178
      %v260 = vunpack.c.l.b16 %v179
      %v261 = vunpack.c.h.b16 %v179
      %v262 = vunpack.c.l.b16 %v180
      %v263 = vunpack.c.h.b16 %v180
      %v264 = vunpack.c.l.b16 %v181
      %v265 = vunpack.c.h.b16 %v181
      %v266 = vunpack.c.l.b16 %v182
      %v267 = vunpack.c.h.b16 %v182
      %v268 = vunpack.c.l.b16 %v183
      %v269 = vunpack.c.h.b16 %v183
      %v270 = vunpack.c.l.b16 %v184
      %v271 = vunpack.c.h.b16 %v184
      %v272 = vunpack.c.l.b16 %v185
      %v273 = vunpack.c.h.b16 %v185
      %v274 = vunpack.c.l.b16 %v186
      %v275 = vunpack.c.h.b16 %v186
      %v276 = vunpack.c.l.b16 %v187
      %v277 = vunpack.c.h.b16 %v187
      %v278 = vunpack.c.l.b16 %v188
      %v279 = vunpack.c.h.b16 %v188
      %v280 = vunpack.c.l.b16 %v189
      %v281 = vunpack.c.h.b16 %v189
      %v282 = vunpack.c.l.b16 %v190
      %v283 = vunpack.c.h.b16 %v190
      %v284 = vunpack.c.l.b16 %v191
      %v285 = vunpack.c.h.b16 %v191
      %v286 = vunpack.c.l.b16 %v192
      %v287 = vunpack.c.h.b16 %v192
      %v288 = vunpack.c.l.b16 %v193
      %v289 = vunpack.c.h.b16 %v193
      %v290 = vpack.c.b16 %v256, %v254
      %v291 = vpack.c.b16 %v257, %v255
      %v292 = vpack.c.b16 %v260, %v258
      %v293 = vpack.c.b16 %v261, %v259
      %v294 = vpack.c.b16 %v264, %v262
      %v295 = vpack.c.b16 %v265, %v263
      %v296 = vpack.c.b16 %v268, %v266
      %v297 = vpack.c.b16 %v269, %v267
      %v298 = vpack.c.b16 %v272, %v270
      %v299 = vpack.c.b16 %v273, %v271
      %v300 = vpack.c.b16 %v276, %v274
      %v301 = vpack.c.b16 %v277, %v275
      %v302 = vpack.c.b16 %v280, %v278
      %v303 = vpack.c.b16 %v281, %v279
      %v304 = vpack.c.b16 %v284, %v282
      %v305 = vpack.c.b16 %v285, %v283
      %v306 = vpack.c.b16 %v288, %v286
      %v307 = vpack.c.b16 %v289, %v287
      %vm326 = vcmask 130048
      %v328 = vsel %vm326, %v231, 0
      %v331 = vsel %vm326, %v233, 0
      %333 = vmatprep.subr.bf16.mxu0 %v291
      %334 = vmatpush1.bf16.msra.mxu0 %v290
      %335 = vmatprep.subr.bf16.mxu0 %v293
      %336 = vmatpush1.bf16.msra.mxu0 %v292
      %337 = vmatprep.subr.bf16.mxu0 %v295
      %338 = vmatpush1.bf16.msra.mxu0 %v294
      %339 = vmatprep.subr.bf16.mxu0 %v297
      %340 = vmatpush1.bf16.msra.mxu0 %v296
      %341 = vmatprep.subr.bf16.mxu0 %v299
      %342 = vmatpush1.bf16.msra.mxu0 %v298
      %343 = vmatprep.subr.bf16.mxu0 %v301
      %344 = vmatpush1.bf16.msra.mxu0 %v300
      %345 = vmatprep.subr.bf16.mxu0 %v303
      %346 = vmatpush1.bf16.msra.mxu0 %v302
      %347 = vmatprep.subr.bf16.mxu0 %v305
      %348 = vmatpush1.bf16.msra.mxu0 %v304
      %349 = vmatprep.subr.bf16.mxu0 %v307
      %350 = vmatpush1.bf16.msra.mxu0 %v306
      %351 = vmatprep.subr.bf16.mxu0 0
      %352 = vmatpush1.bf16.msra.mxu0 0
      %353 = vmatprep.subr.bf16.mxu0 0
      %354 = vmatpush1.bf16.msra.mxu0 0
      %355 = vmatprep.subr.bf16.mxu0 0
      %356 = vmatpush1.bf16.msra.mxu0 0
      %357 = vmatprep.subr.bf16.mxu0 0
      %358 = vmatpush1.bf16.msra.mxu0 0
      %359 = vmatprep.subr.bf16.mxu0 0
      %360 = vmatpush1.bf16.msra.mxu0 0
      %361 = vmatprep.subr.bf16.mxu0 0
      %362 = vmatpush1.bf16.msra.mxu0 0
      %363 = vmatprep.subr.bf16.mxu0 0
      %364 = vmatpush1.bf16.msra.mxu0 0
      %365 = vmatprep.mubr.bf16.mxu0 %v328
      %366 = vmatmul.mubr.bf16.gmra.mrb[0].mxu0 %v230
      %v367 = vpop.f32.mrb[0].mxu0
      %v368 = vadd.f32 %v201, %v367
      %v369 = vpop.f32.mrb[0].mxu0
      %v370 = vadd.f32 %v201, %v369
      %v371 = vpop.f32.mrb[0].mxu0
      %v372 = vadd.f32 %v206, %v371
      %v373 = vpop.f32.mrb[0].mxu0
      %v374 = vadd.f32 %v206, %v373
      %375 = vmatprep.mubr.bf16.mxu0 %v331
      %376 = vmatmul.mubr.bf16.gmra.mrb[0].mxu0 %v232
      %v377 = vpop.f32.mrb[0].mxu0
      %v378 = vadd.f32 %v211, %v377
      %v379 = vpop.f32.mrb[0].mxu0
      %v380 = vadd.f32 %v211, %v379
      %v381 = vpop.f32.mrb[0].mxu0
      %v382 = vadd.f32 %v216, %v381
      %v383 = vpop.f32.mrb[0].mxu0
      %v384 = vadd.f32 %v216, %v383
      %385 = vdwg.mxu0
      %v386 = vmax.f32 %v368, 0.0
      %v387 = vmax.f32 %v370, 0.0
      %v388 = vmax.f32 %v372, 0.0
      %v389 = vmax.f32 %v374, 0.0
      %v390 = vmax.f32 %v378, 0.0
      %v391 = vmax.f32 %v380, 0.0
      %v392 = vmax.f32 %v382, 0.0
      %v393 = vmax.f32 %v384, 0.0
      %v394 = vpack.c.bf16 %v388, %v386
      %v395 = vpack.c.bf16 %v389, %v387
      %v396 = vpack.c.bf16 %v392, %v390
      %v397 = vpack.c.bf16 %v393, %v391
      %v402 = vunpack.c.l.b16 %v394
      %v403 = vunpack.c.l.b16 %v395
      %v404 = vunpack.c.h.b16 %v394
      %v405 = vunpack.c.h.b16 %v395
      %v406 = vunpack.c.l.b16 %v396
      %v407 = vunpack.c.l.b16 %v397
      %v408 = vunpack.c.h.b16 %v396
      %v409 = vunpack.c.h.b16 %v397
      %v410 = vpack.c.b16 %v403, %v402
      %v411 = vpack.c.b16 %v405, %v404
      %v412 = vpack.c.b16 %v407, %v406
      %v413 = vpack.c.b16 %v409, %v408
      %418 = vst [vmem:[%s170] sm:$0xff] %v410
      %419 = vst [vmem:[%s170 + $0x8] sm:$0xff] %v411
      %420 = vst [vmem:[%s170 + $0x10] sm:$0xff] %v412
      %421 = vst [vmem:[%s170 + $0x18] sm:$0xff] %v413
      %p422 = scmp.lt.s32.totalorder %s14, 1
      %s423 = scalar_select %p422, %s14, 1
      %s424 = smul.addr %s423, 8
      %s425 = smul.addr %s424, 4
      %s426 = scalar_lea.vmem %s3, %s425
      // Predicated region
      $region33: #{generalized_rcnn_forward.9} parent=31 // pred_check
        %p427 = pneg %p100
      $region34: #{generalized_rcnn_forward.9} parent=31 // pred_check_branch
        %429 = sbr.rel (%p427) target = $region36
      $region35: #{generalized_rcnn_forward.9} parent=31 // pred_region
        _
      $region36: #{generalized_rcnn_forward.9} parent=31 // pred_fallthru
        _
    $region32: #{generalized_rcnn_forward.9} parent=5 // pred_fallthru
      _
    %p430 = scmp.le.s32.totalorder 2, %s9
    // Predicated region
    $region37: #{generalized_rcnn_forward.9} parent=5 // pred_check
      %p431 = pneg %p430
    $region38: #{generalized_rcnn_forward.9} parent=5 // pred_check_branch
      %433 = sbr.rel (%p431) target = $region40
    $region39: #{generalized_rcnn_forward.9} parent=5 // pred_region
      %s434 = ssub.s32 %s9, 2
      // Predicated region
      $region41: #{generalized_rcnn_forward.9} parent=39 // pred_check
        %p435 = pneg %p106
      $region42: #{generalized_rcnn_forward.9} parent=39 // pred_check_branch
        %437 = sbr.rel (%p435) target = $region44
      $region43: #{generalized_rcnn_forward.9} parent=39 // pred_region
        %p438 = scmp.lt.s32.totalorder %s15, 1
        %s439 = scalar_select %p438, %s15, 1
        %s440 = smul.addr %s439, 8
        %s441 = smul.addr %s440, 4
        %s442 = scalar_lea.vmem %s3, %s441
      $region44: #{generalized_rcnn_forward.9} parent=39 // pred_fallthru
        _
    $region40: #{generalized_rcnn_forward.9} parent=5 // pred_fallthru
      _
  $region6: #{generalized_rcnn_forward.9} parent=0 // loop_footer
    %s13 = sadd.s32 1, %s9
  $region7: #{generalized_rcnn_forward.9} parent=0 // loop_footer_branch
    %8 = sbr.rel target = $region3
  $region8: #{generalized_rcnn_forward.9} parent=0 // loop_exit
    _

// kernel: generalized_rcnn_forward.10
$region0: #{generalized_rcnn_forward.10}
  #allocation0 [shape = 'u32[]', space=smem, size = 0x4, offset = 0x4, fixed_abs, tag = 'smem constant byte address 0x4 - core index']
  #allocation1 [shape = 'u32[144,128]{1,0:T(1,128)}', space=vmem, size = 0x12000, scoped, tag = 'internal scratch']
  %s0 = inlined_call_operand.vmem [shape: bf16[2,288,64], index: 0, kind: input, shape index: {}]
  %s1 = inlined_call_operand.vmem [shape: bf16[32,288], index: 1, kind: input, shape index: {}]
  %s2 = inlined_call_operand.vmem [shape: f32[32,1], index: 2, kind: input, shape index: {}]
  %s3 = inlined_call_operand.vmem [shape: bf16[2,32,64], index: 3, kind: output, shape index: {}]
  %s4 = sld [smem:[#allocation0]]
  $region45: #{generalized_rcnn_forward.10} parent=0
    _
  %s6 = ssub.s32 1, %s4
  %s7 = scalar_select 0, %s6, %s4
  loop: start=0, step=1, limit=4
  $region2: #{generalized_rcnn_forward.10} parent=0 // loop_pre_header
    _
  $region3: #{generalized_rcnn_forward.10} parent=0 // loop_header
    %s9 = sphi 0, %s13
    %p10 = scmp.ge.s32.totalorder %s9, 4
    %s19 = sphi 0, %s21
    %s22 = sphi 0, %s19
    %s23 = sphi 0, %s22
    %s39 = sphi 0, %s23
    %s43 = sphi 0, %s43
    %s45 = sphi 0, %s43
    %s46 = sphi 0, %s45
    %s60 = sphi 0, %s46
    %s64 = sphi 0, %s64
    %s66 = sphi 0, %s64
    %s67 = sphi 0, %s66
    %s81 = sphi 0, %s67
    %s87 = sphi 0, %s89
    %s90 = sphi 0, %s87
    %s91 = sphi 0, %s90
    %s107 = sphi 0, %s91
  $region4: #{generalized_rcnn_forward.10} parent=0 // loop_header_branch
    %12 = sbr.rel (%p10) target = $region8
  $region5: #{generalized_rcnn_forward.10} parent=0 // loop_body
    %s14 = ssub.s32 %s9, 1
    %s15 = ssub.s32 %s9, 2
    %s16 = sadd.s32 %s9, 1
    %s17 = ssub.s32 %s9, %s16
    %p18 = scmp.eq.s32.totalorder %s17, 0
    %s20 = sadd.s32 %s19, 1
    %s21 = scalar_select %p18, %s19, %s20
    %p24 = pneg %p18
    %p25 = scmp.eq.s32.totalorder %s9, 1
    %p26 = por %p24, %p25
    %p27 = scmp.ne.s32.totalorder %s19, %s22
    %p28 = scmp.eq.s32.totalorder %s9, 0
    %p29 = por %p27, %p28
    %p30 = scmp.ne.s32.totalorder %s19, %s22
    %p31 = scmp.eq.s32.totalorder %s14, 1
    %p32 = por %p30, %p31
    %p33 = scmp.ne.s32.totalorder %s22, %s23
    %p34 = scmp.eq.s32.totalorder %s14, 0
    %p35 = por %p33, %p34
    %p36 = scmp.ne.s32.totalorder %s22, %s23
    %p37 = scmp.eq.s32.totalorder %s15, 1
    %p38 = por %p36, %p37
    %p40 = scmp.ne.s32.totalorder %s23, %s39
    %p41 = scmp.eq.s32.totalorder %s15, 0
    %p42 = por %p40, %p41
    %s44 = sadd.s32 %s43, 1
    %p47 = scmp.eq.s32.totalorder %s9, 1
    %p48 = scmp.ne.s32.totalorder %s43, %s45
    %p49 = scmp.eq.s32.totalorder %s9, 0
    %p50 = por %p48, %p49
    %p51 = scmp.ne.s32.totalorder %s43, %s45
    %p52 = scmp.eq.s32.totalorder %s14, 1
    %p53 = por %p51, %p52
    %p54 = scmp.ne.s32.totalorder %s45, %s46
    %p55 = scmp.eq.s32.totalorder %s14, 0
    %p56 = por %p54, %p55
    %p57 = scmp.ne.s32.totalorder %s45, %s46
    %p58 = scmp.eq.s32.totalorder %s15, 1
    %p59 = por %p57, %p58
    %p61 = scmp.ne.s32.totalorder %s46, %s60
    %p62 = scmp.eq.s32.totalorder %s15, 0
    %p63 = por %p61, %p62
    %s65 = sadd.s32 %s64, 1
    %p68 = scmp.eq.s32.totalorder %s9, 1
    %p69 = scmp.ne.s32.totalorder %s64, %s66
    %p70 = scmp.eq.s32.totalorder %s9, 0
    %p71 = por %p69, %p70
    %p72 = scmp.ne.s32.totalorder %s64, %s66
    %p73 = scmp.eq.s32.totalorder %s14, 1
    %p74 = por %p72, %p73
    %p75 = scmp.ne.s32.totalorder %s66, %s67
    %p76 = scmp.eq.s32.totalorder %s14, 0
    %p77 = por %p75, %p76
    %p78 = scmp.ne.s32.totalorder %s66, %s67
    %p79 = scmp.eq.s32.totalorder %s15, 1
    %p80 = por %p78, %p79
    %p82 = scmp.ne.s32.totalorder %s67, %s81
    %p83 = scmp.eq.s32.totalorder %s15, 0
    %p84 = por %p82, %p83
    %s85 = ssub.s32 %s9, %s16
    %p86 = scmp.eq.s32.totalorder %s85, 0
    %s88 = sadd.s32 %s87, 1
    %s89 = scalar_select %p86, %s87, %s88
    %p92 = pneg %p86
    %p93 = scmp.eq.s32.totalorder %s9, 1
    %p94 = por %p92, %p93
    %p95 = scmp.ne.s32.totalorder %s87, %s90
    %p96 = scmp.eq.s32.totalorder %s9, 0
    %p97 = por %p95, %p96
    %p98 = scmp.ne.s32.totalorder %s87, %s90
    %p99 = scmp.eq.s32.totalorder %s14, 1
    %p100 = por %p98, %p99
    %p101 = scmp.ne.s32.totalorder %s90, %s91
    %p102 = scmp.eq.s32.totalorder %s14, 0
    %p103 = por %p101, %p102
    %p104 = scmp.ne.s32.totalorder %s90, %s91
    %p105 = scmp.eq.s32.totalorder %s15, 1
    %p106 = por %p104, %p105
    %p108 = scmp.ne.s32.totalorder %s91, %s107
    %p109 = scmp.eq.s32.totalorder %s15, 0
    %p110 = por %p108, %p109
    %p111 = scmp.le.s32.totalorder 1, %s9
    %p112 = scmp.lt.s32.totalorder %s9, 3
    %p113 = pnand %p111, %p112
    %p114 = pneg %p113
    // Predicated region
    $region9: #{generalized_rcnn_forward.10} parent=5 // pred_check
      _
    $region10: #{generalized_rcnn_forward.10} parent=5 // pred_check_branch
      %116 = sbr.rel (%p113) target = $region12
    $region11: #{generalized_rcnn_forward.10} parent=5 // pred_region
      %s117 = ssub.s32 %s9, 1
      // Predicated region
      $region13: #{generalized_rcnn_forward.10} parent=11 // pred_check
        %p118 = pneg %p56
      $region14: #{generalized_rcnn_forward.10} parent=11 // pred_check_branch
        %120 = sbr.rel (%p118) target = $region16
      $region15: #{generalized_rcnn_forward.10} parent=11 // pred_region
        _
      $region16: #{generalized_rcnn_forward.10} parent=11 // pred_fallthru
        _
      // Predicated region
      $region17: #{generalized_rcnn_forward.10} parent=11 // pred_check
        %p121 = pneg %p77
      $region18: #{generalized_rcnn_forward.10} parent=11 // pred_check_branch
        %123 = sbr.rel (%p121) target = $region20
      $region19: #{generalized_rcnn_forward.10} parent=11 // pred_region
        _
      $region20: #{generalized_rcnn_forward.10} parent=11 // pred_fallthru
        _
    $region12: #{generalized_rcnn_forward.10} parent=5 // pred_fallthru
      _
    %p124 = scmp.lt.s32.totalorder %s9, 2
    // Predicated region
    $region21: #{generalized_rcnn_forward.10} parent=5 // pred_check
      %p125 = pneg %p124
    $region22: #{generalized_rcnn_forward.10} parent=5 // pred_check_branch
      %127 = sbr.rel (%p125) target = $region24
    $region23: #{generalized_rcnn_forward.10} parent=5 // pred_region
      // Predicated region
      $region25: #{generalized_rcnn_forward.10} parent=23 // pred_check
        %p128 = pneg %p29
      $region26: #{generalized_rcnn_forward.10} parent=23 // pred_check_branch
        %130 = sbr.rel (%p128) target = $region28
      $region27: #{generalized_rcnn_forward.10} parent=23 // pred_region
        %p131 = scmp.lt.s32.totalorder %s9, 1
        %s132 = scalar_select %p131, %s9, 1
        %s133 = smul.addr %s132, 36
        %s134 = smul.addr %s133, 4
        %s135 = scalar_lea.vmem %s0, %s134
      $region28: #{generalized_rcnn_forward.10} parent=23 // pred_fallthru
        _
    $region24: #{generalized_rcnn_forward.10} parent=5 // pred_fallthru
      _
    %p136 = scmp.le.s32.totalorder 1, %s9
    %p137 = scmp.lt.s32.totalorder %s9, 3
    %p138 = pnand %p136, %p137
    %p139 = pneg %p138
    // Predicated region
    $region29: #{generalized_rcnn_forward.10} parent=5 // pred_check
      _
    $region30: #{generalized_rcnn_forward.10} parent=5 // pred_check_branch
      %141 = sbr.rel (%p138) target = $region32
    $region31: #{generalized_rcnn_forward.10} parent=5 // pred_region
      %s142 = ssub.s32 %s9, 1
      %p143 = scmp.lt.s32.totalorder %s14, 1
      %s144 = scalar_select %p143, %s14, 1
      %s145 = smul.addr %s144, 36
      %s146 = smul.addr %s145, 4
      %s147 = scalar_lea.vmem %s0, %s146
      %p148 = pneg %p35
      %p149 = pneg %p32
      %p150 = pneg %p56
      %p151 = pneg %p53
      %p152 = pneg %p77
      %p153 = pneg %p74
      %p154 = pneg %p103
      %p155 = pneg %p100
      %p156 = scmp.lt.s32.totalorder %s14, 1
      %s157 = scalar_select %p156, %s14, 1
      %s158 = smul.addr %s157, 4
      %s159 = smul.addr %s158, 4
      %s160 = scalar_lea.vmem %s3, %s159
      %p161 = scmp.lt.s32.totalorder %s14, 1
      %s162 = scalar_select %p161, %s14, 1
      %s163 = smul.addr %s162, 36
      %s164 = smul.addr %s163, 4
      %s165 = scalar_lea.vmem %s0, %s164
      %p166 = scmp.lt.s32.totalorder %s14, 1
      %s167 = scalar_select %p166, %s14, 1
      %s168 = smul.addr %s167, 4
      %s169 = smul.addr %s168, 4
      %s170 = scalar_lea.vmem %s3, %s169
      %v172 = vld [vmem:[%s1] sm:$0xff]
      %v173 = vld [vmem:[%s1 + $0x8] sm:$0xf]
      %v174 = vld [vmem:[%s1 + $0xc] sm:$0xff]
      %v175 = vld [vmem:[%s1 + $0x14] sm:$0xf]
      %v176 = vld [vmem:[%s1 + $0x18] sm:$0xff]
      %v177 = vld [vmem:[%s1 + $0x20] sm:$0xf]
      %v178 = vld [vmem:[%s1 + $0x24] sm:$0xff]
      %v179 = vld [vmem:[%s1 + $0x2c] sm:$0xf]
      %v180 = vld [vmem:[%s165] sm:$0xf]
      %v181 = vld [vmem:[%s165 + $0x4] sm:$0xf]
      %v182 = vld [vmem:[%s165 + $0x8] sm:$0xf]
      %v183 = vld [vmem:[%s165 + $0xc] sm:$0xf]
      %v184 = vld [vmem:[%s165 + $0x10] sm:$0xf]
      %v185 = vld [vmem:[%s165 + $0x14] sm:$0xf]
      %v186 = vld [vmem:[%s165 + $0x18] sm:$0xf]
      %v187 = vld [vmem:[%s165 + $0x1c] sm:$0xf]
      %v188 = vld [vmem:[%s165 + $0x20] sm:$0xf]
      %v189 = vld [vmem:[%s165 + $0x24] sm:$0xf]
      %v190 = vld [vmem:[%s165 + $0x28] sm:$0xf]
      %v191 = vld [vmem:[%s165 + $0x2c] sm:$0xf]
      %v192 = vld [vmem:[%s165 + $0x30] sm:$0xf]
      %v193 = vld [vmem:[%s165 + $0x34] sm:$0xf]
      %v194 = vld [vmem:[%s165 + $0x38] sm:$0xf]
      %v195 = vld [vmem:[%s165 + $0x3c] sm:$0xf]
      %v196 = vld [vmem:[%s165 + $0x40] sm:$0xf]
      %v197 = vld [vmem:[%s165 + $0x44] sm:$0xf]
      %v198 = vld [vmem:[%s165 + $0x48] sm:$0xf]
      %v199 = vld [vmem:[%s165 + $0x4c] sm:$0xf]
      %v200 = vld [vmem:[%s165 + $0x50] sm:$0xf]
      %v201 = vld [vmem:[%s165 + $0x54] sm:$0xf]
      %v202 = vld [vmem:[%s165 + $0x58] sm:$0xf]
      %v203 = vld [vmem:[%s165 + $0x5c] sm:$0xf]
      %v204 = vld [vmem:[%s165 + $0x60] sm:$0xf]
      %v205 = vld [vmem:[%s165 + $0x64] sm:$0xf]
      %v206 = vld [vmem:[%s165 + $0x68] sm:$0xf]
      %v207 = vld [vmem:[%s165 + $0x6c] sm:$0xf]
      %v208 = vld [vmem:[%s165 + $0x70] sm:$0xf]
      %v209 = vld [vmem:[%s165 + $0x74] sm:$0xf]
      %v210 = vld [vmem:[%s165 + $0x78] sm:$0xf]
      %v211 = vld [vmem:[%s165 + $0x7c] sm:$0xf]
      %v212 = vld [vmem:[%s165 + $0x80] sm:$0xf]
      %v213 = vld [vmem:[%s165 + $0x84] sm:$0xf]
      %v214 = vld [vmem:[%s165 + $0x88] sm:$0xf]
      %v215 = vld [vmem:[%s165 + $0x8c] sm:$0xf]
      %v216 = vld [vmem:[%s2] sm:$0xff]
      %v217 = vld [vmem:[%s2 + $0x8] sm:$0xff]
      %v218 = vld [vmem:[%s2 + $0x10] sm:$0xff]
      %v219 = vld [vmem:[%s2 + $0x18] sm:$0xff]
      %221 = vset.pattern.permute.xlu0 0
      %222 = vperm.xlu0 %221, %v216
      %v223 = vpop.permute.xlu0 %222
      %226 = vset.pattern.permute.xlu0 0
      %227 = vperm.xlu0 %226, %v217
      %v228 = vpop.permute.xlu0 %227
      %231 = vset.pattern.permute.xlu0 0
      %232 = vperm.xlu0 %231, %v218
      %v233 = vpop.permute.xlu0 %232
      %236 = vset.pattern.permute.xlu0 0
      %237 = vperm.xlu0 %236, %v219
      %v238 = vpop.permute.xlu0 %237
      %v248 = vunpack.c.l.b16 %v172
      %v249 = vunpack.c.h.b16 %v172
      %v250 = vunpack.c.l.b16 %v173
      %v251 = vunpack.c.l.b16 %v174
      %v252 = vunpack.c.h.b16 %v174
      %v253 = vunpack.c.l.b16 %v175
      %v254 = vunpack.c.l.b16 %v176
      %v255 = vunpack.c.h.b16 %v176
      %v256 = vunpack.c.l.b16 %v177
      %v257 = vunpack.c.l.b16 %v178
      %v258 = vunpack.c.h.b16 %v178
      %v259 = vunpack.c.l.b16 %v179
      %v260 = vpack.c.b16 %v251, %v248
      %v261 = vpack.c.b16 %v252, %v249
      %v262 = vpack.c.b16 %v253, %v250
      %v263 = vpack.c.b16 %v257, %v254
      %v264 = vpack.c.b16 %v258, %v255
      %v265 = vpack.c.b16 %v259, %v256
      %v306 = vunpack.c.l.b16 %v180
      %v307 = vunpack.c.l.b16 %v181
      %v308 = vunpack.c.l.b16 %v182
      %v309 = vunpack.c.l.b16 %v183
      %v310 = vunpack.c.l.b16 %v184
      %v311 = vunpack.c.l.b16 %v185
      %v312 = vunpack.c.l.b16 %v186
      %v313 = vunpack.c.l.b16 %v187
      %v314 = vunpack.c.l.b16 %v188
      %v315 = vunpack.c.l.b16 %v189
      %v316 = vunpack.c.l.b16 %v190
      %v317 = vunpack.c.l.b16 %v191
      %v318 = vunpack.c.l.b16 %v192
      %v319 = vunpack.c.l.b16 %v193
      %v320 = vunpack.c.l.b16 %v194
      %v321 = vunpack.c.l.b16 %v195
      %v322 = vunpack.c.l.b16 %v196
      %v323 = vunpack.c.l.b16 %v197
      %v324 = vunpack.c.l.b16 %v198
      %v325 = vunpack.c.l.b16 %v199
      %v326 = vunpack.c.l.b16 %v200
      %v327 = vunpack.c.l.b16 %v201
      %v328 = vunpack.c.l.b16 %v202
      %v329 = vunpack.c.l.b16 %v203
      %v330 = vunpack.c.l.b16 %v204
      %v331 = vunpack.c.l.b16 %v205
      %v332 = vunpack.c.l.b16 %v206
      %v333 = vunpack.c.l.b16 %v207
      %v334 = vunpack.c.l.b16 %v208
      %v335 = vunpack.c.l.b16 %v209
      %v336 = vunpack.c.l.b16 %v210
      %v337 = vunpack.c.l.b16 %v211
      %v338 = vunpack.c.l.b16 %v212
      %v339 = vunpack.c.l.b16 %v213
      %v340 = vunpack.c.l.b16 %v214
      %v341 = vunpack.c.l.b16 %v215
      %v342 = vpack.c.b16 %v307, %v306
      %v343 = vpack.c.b16 %v309, %v308
      %v344 = vpack.c.b16 %v311, %v310
      %v345 = vpack.c.b16 %v313, %v312
      %v346 = vpack.c.b16 %v315, %v314
      %v347 = vpack.c.b16 %v317, %v316
      %v348 = vpack.c.b16 %v319, %v318
      %v349 = vpack.c.b16 %v321, %v320
      %v350 = vpack.c.b16 %v323, %v322
      %v351 = vpack.c.b16 %v325, %v324
      %v352 = vpack.c.b16 %v327, %v326
      %v353 = vpack.c.b16 %v329, %v328
      %v354 = vpack.c.b16 %v331, %v330
      %v355 = vpack.c.b16 %v333, %v332
      %v356 = vpack.c.b16 %v335, %v334
      %v357 = vpack.c.b16 %v337, %v336
      %v358 = vpack.c.b16 %v339, %v338
      %v359 = vpack.c.b16 %v341, %v340
      %vm378 = vcmask 261120
      %v380 = vsel %vm378, %v262, 0
      %v383 = vsel %vm378, %v265, 0
      %385 = vmatprep.subr.bf16.mxu0 0
      %386 = vmatpush1.bf16.msra.mxu0 %v342
      %387 = vmatprep.subr.bf16.mxu0 0
      %388 = vmatpush1.bf16.msra.mxu0 %v343
      %389 = vmatprep.subr.bf16.mxu0 0
      %390 = vmatpush1.bf16.msra.mxu0 %v344
      %391 = vmatprep.subr.bf16.mxu0 0
      %392 = vmatpush1.bf16.msra.mxu0 %v345
      %393 = vmatprep.subr.bf16.mxu0 0
      %394 = vmatpush1.bf16.msra.mxu0 %v346
      %395 = vmatprep.subr.bf16.mxu0 0
      %396 = vmatpush1.bf16.msra.mxu0 %v347
      %397 = vmatprep.subr.bf16.mxu0 0
      %398 = vmatpush1.bf16.msra.mxu0 %v348
      %399 = vmatprep.subr.bf16.mxu0 0
      %400 = vmatpush1.bf16.msra.mxu0 %v349
      %401 = vmatprep.subr.bf16.mxu0 0
      %402 = vmatpush1.bf16.msra.mxu0 %v350
      %403 = vmatprep.subr.bf16.mxu0 0
      %404 = vmatpush1.bf16.msra.mxu0 %v351
      %405 = vmatprep.subr.bf16.mxu0 0
      %406 = vmatpush1.bf16.msra.mxu0 %v352
      %407 = vmatprep.subr.bf16.mxu0 0
      %408 = vmatpush1.bf16.msra.mxu0 %v353
      %409 = vmatprep.subr.bf16.mxu0 0
      %410 = vmatpush1.bf16.msra.mxu0 %v354
      %411 = vmatprep.subr.bf16.mxu0 0
      %412 = vmatpush1.bf16.msra.mxu0 %v355
      %413 = vmatprep.subr.bf16.mxu0 0
      %414 = vmatpush1.bf16.msra.mxu0 %v356
      %415 = vmatprep.subr.bf16.mxu0 0
      %416 = vmatpush1.bf16.msra.mxu0 %v357
      %417 = vmatprep.mubr.bf16.mxu0 %v261
      %418 = vmatmul.mubr.bf16.gmra.mrb[0].mxu0 %v260
      %v419 = vpop.f32.mrb[0].mxu0
      %v420 = vadd.f32 %v223, %v419
      %v421 = vpop.f32.mrb[0].mxu0
      %v422 = vpop.f32.mrb[0].mxu0
      %v423 = vadd.f32 %v228, %v422
      %v424 = vpop.f32.mrb[0].mxu0
      %425 = vmatprep.mubr.bf16.mxu0 %v264
      %426 = vmatmul.mubr.bf16.gmra.mrb[0].mxu0 %v263
      %v427 = vpop.f32.mrb[0].mxu0
      %v428 = vadd.f32 %v233, %v427
      %v429 = vpop.f32.mrb[0].mxu0
      %v430 = vpop.f32.mrb[0].mxu0
      %v431 = vadd.f32 %v238, %v430
      %v432 = vpop.f32.mrb[0].mxu0
      %433 = vdwg.mxu0
      %434 = vmatprep.subr.bf16.mxu0 0
      %435 = vmatpush1.bf16.msra.mxu0 %v358
      %436 = vmatprep.subr.bf16.mxu0 0
      %437 = vmatpush1.bf16.msra.mxu0 %v359
      %438 = vmatprep.subr.bf16.mxu0 0
      %439 = vmatpush1.bf16.msra.mxu0 0
      %440 = vmatprep.subr.bf16.mxu0 0
      %441 = vmatpush1.bf16.msra.mxu0 0
      %442 = vmatprep.subr.bf16.mxu0 0
      %443 = vmatpush1.bf16.msra.mxu0 0
      %444 = vmatprep.subr.bf16.mxu0 0
      %445 = vmatpush1.bf16.msra.mxu0 0
      %446 = vmatprep.subr.bf16.mxu0 0
      %447 = vmatpush1.bf16.msra.mxu0 0
      %448 = vmatprep.subr.bf16.mxu0 0
      %449 = vmatpush1.bf16.msra.mxu0 0
      %450 = vmatprep.subr.bf16.mxu0 0
      %451 = vmatpush1.bf16.msra.mxu0 0
      %452 = vmatprep.subr.bf16.mxu0 0
      %453 = vmatpush1.bf16.msra.mxu0 0
      %454 = vmatprep.subr.bf16.mxu0 0
      %455 = vmatpush1.bf16.msra.mxu0 0
      %456 = vmatprep.subr.bf16.mxu0 0
      %457 = vmatpush1.bf16.msra.mxu0 0
      %458 = vmatprep.subr.bf16.mxu0 0
      %459 = vmatpush1.bf16.msra.mxu0 0
      %460 = vmatprep.subr.bf16.mxu0 0
      %461 = vmatpush1.bf16.msra.mxu0 0
      %462 = vmatprep.subr.bf16.mxu0 0
      %463 = vmatpush1.bf16.msra.mxu0 0
      %464 = vmatprep.subr.bf16.mxu0 0
      %465 = vmatpush1.bf16.msra.mxu0 0
      %466 = vmatprep.mubr.bf16.mxu0 0
      %467 = vmatmul.mubr.bf16.gmra.mrb[0].mxu0 %v380
      %v468 = vpop.f32.mrb[0].mxu0
      %v469 = vadd.f32 %v420, %v468
      %v470 = vpop.f32.mrb[0].mxu0
      %v471 = vpop.f32.mrb[0].mxu0
      %v472 = vadd.f32 %v423, %v471
      %v473 = vpop.f32.mrb[0].mxu0
      %474 = vmatprep.mubr.bf16.mxu0 0
      %475 = vmatmul.mubr.bf16.gmra.mrb[0].mxu0 %v383
      %v476 = vpop.f32.mrb[0].mxu0
      %v477 = vadd.f32 %v428, %v476
      %v478 = vpop.f32.mrb[0].mxu0
      %v479 = vpop.f32.mrb[0].mxu0
      %v480 = vadd.f32 %v431, %v479
      %v481 = vpop.f32.mrb[0].mxu0
      %482 = vdwg.mxu0
      %v483 = vmax.f32 %v469, 0.0
      %v484 = vmax.f32 %v472, 0.0
      %v485 = vmax.f32 %v477, 0.0
      %v486 = vmax.f32 %v480, 0.0
      %v487 = vpack.c.bf16 %v484, %v483
      %v488 = vpack.c.bf16 %v486, %v485
      %v491 = vunpack.c.l.b16 %v487
      %v492 = vunpack.c.h.b16 %v487
      %v493 = vunpack.c.l.b16 %v488
      %v494 = vunpack.c.h.b16 %v488
      %v495 = vpack.c.b16 %v491, %v491
      %v496 = vpack.c.b16 %v492, %v492
      %v497 = vpack.c.b16 %v493, %v493
      %v498 = vpack.c.b16 %v494, %v494
      %vm503 = vcmask 519168
      %504 = vst.msk [vmem:[%s170] sm:$0xf] %vm503, %v495
      %505 = vst.msk [vmem:[%s170 + $0x4] sm:$0xf] %vm503, %v496
      %506 = vst.msk [vmem:[%s170 + $0x8] sm:$0xf] %vm503, %v497
      %507 = vst.msk [vmem:[%s170 + $0xc] sm:$0xf] %vm503, %v498
      %p508 = scmp.lt.s32.totalorder %s14, 1
      %s509 = scalar_select %p508, %s14, 1
      %s510 = smul.addr %s509, 4
      %s511 = smul.addr %s510, 4
      %s512 = scalar_lea.vmem %s3, %s511
      // Predicated region
      $region33: #{generalized_rcnn_forward.10} parent=31 // pred_check
        %p513 = pneg %p100
      $region34: #{generalized_rcnn_forward.10} parent=31 // pred_check_branch
        %515 = sbr.rel (%p513) target = $region36
      $region35: #{generalized_rcnn_forward.10} parent=31 // pred_region
        _
      $region36: #{generalized_rcnn_forward.10} parent=31 // pred_fallthru
        _
    $region32: #{generalized_rcnn_forward.10} parent=5 // pred_fallthru
      _
    %p516 = scmp.le.s32.totalorder 2, %s9
    // Predicated region
    $region37: #{generalized_rcnn_forward.10} parent=5 // pred_check
      %p517 = pneg %p516
    $region38: #{generalized_rcnn_forward.10} parent=5 // pred_check_branch
      %519 = sbr.rel (%p517) target = $region40
    $region39: #{generalized_rcnn_forward.10} parent=5 // pred_region
      %s520 = ssub.s32 %s9, 2
      // Predicated region
      $region41: #{generalized_rcnn_forward.10} parent=39 // pred_check
        %p521 = pneg %p106
      $region42: #{generalized_rcnn_forward.10} parent=39 // pred_check_branch
        %523 = sbr.rel (%p521) target = $region44
      $region43: #{generalized_rcnn_forward.10} parent=39 // pred_region
        %p524 = scmp.lt.s32.totalorder %s15, 1
        %s525 = scalar_select %p524, %s15, 1
        %s526 = smul.addr %s525, 4
        %s527 = smul.addr %s526, 4
        %s528 = scalar_lea.vmem %s3, %s527
      $region44: #{generalized_rcnn_forward.10} parent=39 // pred_fallthru
        _
    $region40: #{generalized_rcnn_forward.10} parent=5 // pred_fallthru
      _
  $region6: #{generalized_rcnn_forward.10} parent=0 // loop_footer
    %s13 = sadd.s32 1, %s9
  $region7: #{generalized_rcnn_forward.10} parent=0 // loop_footer_branch
    %8 = sbr.rel target = $region3
  $region8: #{generalized_rcnn_forward.10} parent=0 // loop_exit
    _

// kernel: generalized_rcnn_forward.11
$region0: #{generalized_rcnn_forward.11}
  #allocation0 [shape = 'u32[]', space=smem, size = 0x4, offset = 0x4, fixed_abs, tag = 'smem constant byte address 0x4 - core index']
  #allocation1 [shape = 'u32[144,128]{1,0:T(1,128)}', space=vmem, size = 0x12000, scoped, tag = 'internal scratch']
  %s0 = inlined_call_operand.vmem [shape: bf16[2,288,16], index: 0, kind: input, shape index: {}]
  %s1 = inlined_call_operand.vmem [shape: bf16[32,288], index: 1, kind: input, shape index: {}]
  %s2 = inlined_call_operand.vmem [shape: f32[32,1], index: 2, kind: input, shape index: {}]
  %s3 = inlined_call_operand.vmem [shape: bf16[2,32,16], index: 3, kind: output, shape index: {}]
  %s4 = sld [smem:[#allocation0]]
  $region45: #{generalized_rcnn_forward.11} parent=0
    _
  %s6 = ssub.s32 1, %s4
  %s7 = scalar_select 0, %s6, %s4
  loop: start=0, step=1, limit=4
  $region2: #{generalized_rcnn_forward.11} parent=0 // loop_pre_header
    _
  $region3: #{generalized_rcnn_forward.11} parent=0 // loop_header
    %s9 = sphi 0, %s13
    %p10 = scmp.ge.s32.totalorder %s9, 4
    %s19 = sphi 0, %s21
    %s22 = sphi 0, %s19
    %s23 = sphi 0, %s22
    %s39 = sphi 0, %s23
    %s43 = sphi 0, %s43
    %s45 = sphi 0, %s43
    %s46 = sphi 0, %s45
    %s60 = sphi 0, %s46
    %s64 = sphi 0, %s64
    %s66 = sphi 0, %s64
    %s67 = sphi 0, %s66
    %s81 = sphi 0, %s67
    %s87 = sphi 0, %s89
    %s90 = sphi 0, %s87
    %s91 = sphi 0, %s90
    %s107 = sphi 0, %s91
  $region4: #{generalized_rcnn_forward.11} parent=0 // loop_header_branch
    %12 = sbr.rel (%p10) target = $region8
  $region5: #{generalized_rcnn_forward.11} parent=0 // loop_body
    %s14 = ssub.s32 %s9, 1
    %s15 = ssub.s32 %s9, 2
    %s16 = sadd.s32 %s9, 1
    %s17 = ssub.s32 %s9, %s16
    %p18 = scmp.eq.s32.totalorder %s17, 0
    %s20 = sadd.s32 %s19, 1
    %s21 = scalar_select %p18, %s19, %s20
    %p24 = pneg %p18
    %p25 = scmp.eq.s32.totalorder %s9, 1
    %p26 = por %p24, %p25
    %p27 = scmp.ne.s32.totalorder %s19, %s22
    %p28 = scmp.eq.s32.totalorder %s9, 0
    %p29 = por %p27, %p28
    %p30 = scmp.ne.s32.totalorder %s19, %s22
    %p31 = scmp.eq.s32.totalorder %s14, 1
    %p32 = por %p30, %p31
    %p33 = scmp.ne.s32.totalorder %s22, %s23
    %p34 = scmp.eq.s32.totalorder %s14, 0
    %p35 = por %p33, %p34
    %p36 = scmp.ne.s32.totalorder %s22, %s23
    %p37 = scmp.eq.s32.totalorder %s15, 1
    %p38 = por %p36, %p37
    %p40 = scmp.ne.s32.totalorder %s23, %s39
    %p41 = scmp.eq.s32.totalorder %s15, 0
    %p42 = por %p40, %p41
    %s44 = sadd.s32 %s43, 1
    %p47 = scmp.eq.s32.totalorder %s9, 1
    %p48 = scmp.ne.s32.totalorder %s43, %s45
    %p49 = scmp.eq.s32.totalorder %s9, 0
    %p50 = por %p48, %p49
    %p51 = scmp.ne.s32.totalorder %s43, %s45
    %p52 = scmp.eq.s32.totalorder %s14, 1
    %p53 = por %p51, %p52
    %p54 = scmp.ne.s32.totalorder %s45, %s46
    %p55 = scmp.eq.s32.totalorder %s14, 0
    %p56 = por %p54, %p55
    %p57 = scmp.ne.s32.totalorder %s45, %s46
    %p58 = scmp.eq.s32.totalorder %s15, 1
    %p59 = por %p57, %p58
    %p61 = scmp.ne.s32.totalorder %s46, %s60
    %p62 = scmp.eq.s32.totalorder %s15, 0
    %p63 = por %p61, %p62
    %s65 = sadd.s32 %s64, 1
    %p68 = scmp.eq.s32.totalorder %s9, 1
    %p69 = scmp.ne.s32.totalorder %s64, %s66
    %p70 = scmp.eq.s32.totalorder %s9, 0
    %p71 = por %p69, %p70
    %p72 = scmp.ne.s32.totalorder %s64, %s66
    %p73 = scmp.eq.s32.totalorder %s14, 1
    %p74 = por %p72, %p73
    %p75 = scmp.ne.s32.totalorder %s66, %s67
    %p76 = scmp.eq.s32.totalorder %s14, 0
    %p77 = por %p75, %p76
    %p78 = scmp.ne.s32.totalorder %s66, %s67
    %p79 = scmp.eq.s32.totalorder %s15, 1
    %p80 = por %p78, %p79
    %p82 = scmp.ne.s32.totalorder %s67, %s81
    %p83 = scmp.eq.s32.totalorder %s15, 0
    %p84 = por %p82, %p83
    %s85 = ssub.s32 %s9, %s16
    %p86 = scmp.eq.s32.totalorder %s85, 0
    %s88 = sadd.s32 %s87, 1
    %s89 = scalar_select %p86, %s87, %s88
    %p92 = pneg %p86
    %p93 = scmp.eq.s32.totalorder %s9, 1
    %p94 = por %p92, %p93
    %p95 = scmp.ne.s32.totalorder %s87, %s90
    %p96 = scmp.eq.s32.totalorder %s9, 0
    %p97 = por %p95, %p96
    %p98 = scmp.ne.s32.totalorder %s87, %s90
    %p99 = scmp.eq.s32.totalorder %s14, 1
    %p100 = por %p98, %p99
    %p101 = scmp.ne.s32.totalorder %s90, %s91
    %p102 = scmp.eq.s32.totalorder %s14, 0
    %p103 = por %p101, %p102
    %p104 = scmp.ne.s32.totalorder %s90, %s91
    %p105 = scmp.eq.s32.totalorder %s15, 1
    %p106 = por %p104, %p105
    %p108 = scmp.ne.s32.totalorder %s91, %s107
    %p109 = scmp.eq.s32.totalorder %s15, 0
    %p110 = por %p108, %p109
    %p111 = scmp.le.s32.totalorder 1, %s9
    %p112 = scmp.lt.s32.totalorder %s9, 3
    %p113 = pnand %p111, %p112
    %p114 = pneg %p113
    // Predicated region
    $region9: #{generalized_rcnn_forward.11} parent=5 // pred_check
      _
    $region10: #{generalized_rcnn_forward.11} parent=5 // pred_check_branch
      %116 = sbr.rel (%p113) target = $region12
    $region11: #{generalized_rcnn_forward.11} parent=5 // pred_region
      %s117 = ssub.s32 %s9, 1
      // Predicated region
      $region13: #{generalized_rcnn_forward.11} parent=11 // pred_check
        %p118 = pneg %p56
      $region14: #{generalized_rcnn_forward.11} parent=11 // pred_check_branch
        %120 = sbr.rel (%p118) target = $region16
      $region15: #{generalized_rcnn_forward.11} parent=11 // pred_region
        _
      $region16: #{generalized_rcnn_forward.11} parent=11 // pred_fallthru
        _
      // Predicated region
      $region17: #{generalized_rcnn_forward.11} parent=11 // pred_check
        %p121 = pneg %p77
      $region18: #{generalized_rcnn_forward.11} parent=11 // pred_check_branch
        %123 = sbr.rel (%p121) target = $region20
      $region19: #{generalized_rcnn_forward.11} parent=11 // pred_region
        _
      $region20: #{generalized_rcnn_forward.11} parent=11 // pred_fallthru
        _
    $region12: #{generalized_rcnn_forward.11} parent=5 // pred_fallthru
      _
    %p124 = scmp.lt.s32.totalorder %s9, 2
    // Predicated region
    $region21: #{generalized_rcnn_forward.11} parent=5 // pred_check
      %p125 = pneg %p124
    $region22: #{generalized_rcnn_forward.11} parent=5 // pred_check_branch
      %127 = sbr.rel (%p125) target = $region24
    $region23: #{generalized_rcnn_forward.11} parent=5 // pred_region
      // Predicated region
      $region25: #{generalized_rcnn_forward.11} parent=23 // pred_check
        %p128 = pneg %p29
      $region26: #{generalized_rcnn_forward.11} parent=23 // pred_check_branch
        %130 = sbr.rel (%p128) target = $region28
      $region27: #{generalized_rcnn_forward.11} parent=23 // pred_region
        %p131 = scmp.lt.s32.totalorder %s9, 1
        %s132 = scalar_select %p131, %s9, 1
        %s133 = smul.addr %s132, 36
        %s134 = smul.addr %s133, 4
        %s135 = scalar_lea.vmem %s0, %s134
      $region28: #{generalized_rcnn_forward.11} parent=23 // pred_fallthru
        _
    $region24: #{generalized_rcnn_forward.11} parent=5 // pred_fallthru
      _
    %p136 = scmp.le.s32.totalorder 1, %s9
    %p137 = scmp.lt.s32.totalorder %s9, 3
    %p138 = pnand %p136, %p137
    %p139 = pneg %p138
    // Predicated region
    $region29: #{generalized_rcnn_forward.11} parent=5 // pred_check
      _
    $region30: #{generalized_rcnn_forward.11} parent=5 // pred_check_branch
      %141 = sbr.rel (%p138) target = $region32
    $region31: #{generalized_rcnn_forward.11} parent=5 // pred_region
      %s142 = ssub.s32 %s9, 1
      %p143 = scmp.lt.s32.totalorder %s14, 1
      %s144 = scalar_select %p143, %s14, 1
      %s145 = smul.addr %s144, 36
      %s146 = smul.addr %s145, 4
      %s147 = scalar_lea.vmem %s0, %s146
      %p148 = pneg %p35
      %p149 = pneg %p32
      %p150 = pneg %p56
      %p151 = pneg %p53
      %p152 = pneg %p77
      %p153 = pneg %p74
      %p154 = pneg %p103
      %p155 = pneg %p100
      %p156 = scmp.lt.s32.totalorder %s14, 1
      %s157 = scalar_select %p156, %s14, 1
      %s158 = smul.addr %s157, 4
      %s159 = smul.addr %s158, 4
      %s160 = scalar_lea.vmem %s3, %s159
      %p161 = scmp.lt.s32.totalorder %s14, 1
      %s162 = scalar_select %p161, %s14, 1
      %s163 = smul.addr %s162, 36
      %s164 = smul.addr %s163, 4
      %s165 = scalar_lea.vmem %s0, %s164
      %p166 = scmp.lt.s32.totalorder %s14, 1
      %s167 = scalar_select %p166, %s14, 1
      %s168 = smul.addr %s167, 4
      %s169 = smul.addr %s168, 4
      %s170 = scalar_lea.vmem %s3, %s169
      %v172 = vld [vmem:[%s1] sm:$0xff]
      %v173 = vld [vmem:[%s1 + $0x8] sm:$0xf]
      %v174 = vld [vmem:[%s1 + $0xc] sm:$0xff]
      %v175 = vld [vmem:[%s1 + $0x14] sm:$0xf]
      %v176 = vld [vmem:[%s1 + $0x18] sm:$0xff]
      %v177 = vld [vmem:[%s1 + $0x20] sm:$0xf]
      %v178 = vld [vmem:[%s1 + $0x24] sm:$0xff]
      %v179 = vld [vmem:[%s1 + $0x2c] sm:$0xf]
      %v180 = vld [vmem:[%s165] sm:$0xf]
      %v181 = vld [vmem:[%s165 + $0x4] sm:$0xf]
      %v182 = vld [vmem:[%s165 + $0x8] sm:$0xf]
      %v183 = vld [vmem:[%s165 + $0xc] sm:$0xf]
      %v184 = vld [vmem:[%s165 + $0x10] sm:$0xf]
      %v185 = vld [vmem:[%s165 + $0x14] sm:$0xf]
      %v186 = vld [vmem:[%s165 + $0x18] sm:$0xf]
      %v187 = vld [vmem:[%s165 + $0x1c] sm:$0xf]
      %v188 = vld [vmem:[%s165 + $0x20] sm:$0xf]
      %v189 = vld [vmem:[%s165 + $0x24] sm:$0xf]
      %v190 = vld [vmem:[%s165 + $0x28] sm:$0xf]
      %v191 = vld [vmem:[%s165 + $0x2c] sm:$0xf]
      %v192 = vld [vmem:[%s165 + $0x30] sm:$0xf]
      %v193 = vld [vmem:[%s165 + $0x34] sm:$0xf]
      %v194 = vld [vmem:[%s165 + $0x38] sm:$0xf]
      %v195 = vld [vmem:[%s165 + $0x3c] sm:$0xf]
      %v196 = vld [vmem:[%s165 + $0x40] sm:$0xf]
      %v197 = vld [vmem:[%s165 + $0x44] sm:$0xf]
      %v198 = vld [vmem:[%s165 + $0x48] sm:$0xf]
      %v199 = vld [vmem:[%s165 + $0x4c] sm:$0xf]
      %v200 = vld [vmem:[%s165 + $0x50] sm:$0xf]
      %v201 = vld [vmem:[%s165 + $0x54] sm:$0xf]
      %v202 = vld [vmem:[%s165 + $0x58] sm:$0xf]
      %v203 = vld [vmem:[%s165 + $0x5c] sm:$0xf]
      %v204 = vld [vmem:[%s165 + $0x60] sm:$0xf]
      %v205 = vld [vmem:[%s165 + $0x64] sm:$0xf]
      %v206 = vld [vmem:[%s165 + $0x68] sm:$0xf]
      %v207 = vld [vmem:[%s165 + $0x6c] sm:$0xf]
      %v208 = vld [vmem:[%s165 + $0x70] sm:$0xf]
      %v209 = vld [vmem:[%s165 + $0x74] sm:$0xf]
      %v210 = vld [vmem:[%s165 + $0x78] sm:$0xf]
      %v211 = vld [vmem:[%s165 + $0x7c] sm:$0xf]
      %v212 = vld [vmem:[%s165 + $0x80] sm:$0xf]
      %v213 = vld [vmem:[%s165 + $0x84] sm:$0xf]
      %v214 = vld [vmem:[%s165 + $0x88] sm:$0xf]
      %v215 = vld [vmem:[%s165 + $0x8c] sm:$0xf]
      %v216 = vld [vmem:[%s2] sm:$0xff]
      %v217 = vld [vmem:[%s2 + $0x8] sm:$0xff]
      %v218 = vld [vmem:[%s2 + $0x10] sm:$0xff]
      %v219 = vld [vmem:[%s2 + $0x18] sm:$0xff]
      %221 = vset.pattern.permute.xlu0 0
      %222 = vperm.xlu0 %221, %v216
      %v223 = vpop.permute.xlu0 %222
      %226 = vset.pattern.permute.xlu0 0
      %227 = vperm.xlu0 %226, %v217
      %v228 = vpop.permute.xlu0 %227
      %231 = vset.pattern.permute.xlu0 0
      %232 = vperm.xlu0 %231, %v218
      %v233 = vpop.permute.xlu0 %232
      %236 = vset.pattern.permute.xlu0 0
      %237 = vperm.xlu0 %236, %v219
      %v238 = vpop.permute.xlu0 %237
      %v248 = vunpack.c.l.b16 %v172
      %v249 = vunpack.c.h.b16 %v172
      %v250 = vunpack.c.l.b16 %v173
      %v251 = vunpack.c.l.b16 %v174
      %v252 = vunpack.c.h.b16 %v174
      %v253 = vunpack.c.l.b16 %v175
      %v254 = vunpack.c.l.b16 %v176
      %v255 = vunpack.c.h.b16 %v176
      %v256 = vunpack.c.l.b16 %v177
      %v257 = vunpack.c.l.b16 %v178
      %v258 = vunpack.c.h.b16 %v178
      %v259 = vunpack.c.l.b16 %v179
      %v260 = vpack.c.b16 %v251, %v248
      %v261 = vpack.c.b16 %v252, %v249
      %v262 = vpack.c.b16 %v253, %v250
      %v263 = vpack.c.b16 %v257, %v254
      %v264 = vpack.c.b16 %v258, %v255
      %v265 = vpack.c.b16 %v259, %v256
      %v306 = vunpack.c.l.b16 %v180
      %v307 = vunpack.c.l.b16 %v181
      %v308 = vunpack.c.l.b16 %v182
      %v309 = vunpack.c.l.b16 %v183
      %v310 = vunpack.c.l.b16 %v184
      %v311 = vunpack.c.l.b16 %v185
      %v312 = vunpack.c.l.b16 %v186
      %v313 = vunpack.c.l.b16 %v187
      %v314 = vunpack.c.l.b16 %v188
      %v315 = vunpack.c.l.b16 %v189
      %v316 = vunpack.c.l.b16 %v190
      %v317 = vunpack.c.l.b16 %v191
      %v318 = vunpack.c.l.b16 %v192
      %v319 = vunpack.c.l.b16 %v193
      %v320 = vunpack.c.l.b16 %v194
      %v321 = vunpack.c.l.b16 %v195
      %v322 = vunpack.c.l.b16 %v196
      %v323 = vunpack.c.l.b16 %v197
      %v324 = vunpack.c.l.b16 %v198
      %v325 = vunpack.c.l.b16 %v199
      %v326 = vunpack.c.l.b16 %v200
      %v327 = vunpack.c.l.b16 %v201
      %v328 = vunpack.c.l.b16 %v202
      %v329 = vunpack.c.l.b16 %v203
      %v330 = vunpack.c.l.b16 %v204
      %v331 = vunpack.c.l.b16 %v205
      %v332 = vunpack.c.l.b16 %v206
      %v333 = vunpack.c.l.b16 %v207
      %v334 = vunpack.c.l.b16 %v208
      %v335 = vunpack.c.l.b16 %v209
      %v336 = vunpack.c.l.b16 %v210
      %v337 = vunpack.c.l.b16 %v211
      %v338 = vunpack.c.l.b16 %v212
      %v339 = vunpack.c.l.b16 %v213
      %v340 = vunpack.c.l.b16 %v214
      %v341 = vunpack.c.l.b16 %v215
      %v342 = vpack.c.b16 %v307, %v306
      %v343 = vpack.c.b16 %v309, %v308
      %v344 = vpack.c.b16 %v311, %v310
      %v345 = vpack.c.b16 %v313, %v312
      %v346 = vpack.c.b16 %v315, %v314
      %v347 = vpack.c.b16 %v317, %v316
      %v348 = vpack.c.b16 %v319, %v318
      %v349 = vpack.c.b16 %v321, %v320
      %v350 = vpack.c.b16 %v323, %v322
      %v351 = vpack.c.b16 %v325, %v324
      %v352 = vpack.c.b16 %v327, %v326
      %v353 = vpack.c.b16 %v329, %v328
      %v354 = vpack.c.b16 %v331, %v330
      %v355 = vpack.c.b16 %v333, %v332
      %v356 = vpack.c.b16 %v335, %v334
      %v357 = vpack.c.b16 %v337, %v336
      %v358 = vpack.c.b16 %v339, %v338
      %v359 = vpack.c.b16 %v341, %v340
      %vm378 = vcmask 261120
      %v380 = vsel %vm378, %v262, 0
      %v383 = vsel %vm378, %v265, 0
      %385 = vmatprep.subr.bf16.mxu0 0
      %386 = vmatpush1.bf16.msra.mxu0 %v342
      %387 = vmatprep.subr.bf16.mxu0 0
      %388 = vmatpush1.bf16.msra.mxu0 %v343
      %389 = vmatprep.subr.bf16.mxu0 0
      %390 = vmatpush1.bf16.msra.mxu0 %v344
      %391 = vmatprep.subr.bf16.mxu0 0
      %392 = vmatpush1.bf16.msra.mxu0 %v345
      %393 = vmatprep.subr.bf16.mxu0 0
      %394 = vmatpush1.bf16.msra.mxu0 %v346
      %395 = vmatprep.subr.bf16.mxu0 0
      %396 = vmatpush1.bf16.msra.mxu0 %v347
      %397 = vmatprep.subr.bf16.mxu0 0
      %398 = vmatpush1.bf16.msra.mxu0 %v348
      %399 = vmatprep.subr.bf16.mxu0 0
      %400 = vmatpush1.bf16.msra.mxu0 %v349
      %401 = vmatprep.subr.bf16.mxu0 0
      %402 = vmatpush1.bf16.msra.mxu0 %v350
      %403 = vmatprep.subr.bf16.mxu0 0
      %404 = vmatpush1.bf16.msra.mxu0 %v351
      %405 = vmatprep.subr.bf16.mxu0 0
      %406 = vmatpush1.bf16.msra.mxu0 %v352
      %407 = vmatprep.subr.bf16.mxu0 0
      %408 = vmatpush1.bf16.msra.mxu0 %v353
      %409 = vmatprep.subr.bf16.mxu0 0
      %410 = vmatpush1.bf16.msra.mxu0 %v354
      %411 = vmatprep.subr.bf16.mxu0 0
      %412 = vmatpush1.bf16.msra.mxu0 %v355
      %413 = vmatprep.subr.bf16.mxu0 0
      %414 = vmatpush1.bf16.msra.mxu0 %v356
      %415 = vmatprep.subr.bf16.mxu0 0
      %416 = vmatpush1.bf16.msra.mxu0 %v357
      %417 = vmatprep.mubr.bf16.mxu0 %v261
      %418 = vmatmul.mubr.bf16.gmra.mrb[0].mxu0 %v260
      %v419 = vpop.f32.mrb[0].mxu0
      %v420 = vadd.f32 %v223, %v419
      %v421 = vpop.f32.mrb[0].mxu0
      %v422 = vpop.f32.mrb[0].mxu0
      %v423 = vadd.f32 %v228, %v422
      %v424 = vpop.f32.mrb[0].mxu0
      %425 = vmatprep.mubr.bf16.mxu0 %v264
      %426 = vmatmul.mubr.bf16.gmra.mrb[0].mxu0 %v263
      %v427 = vpop.f32.mrb[0].mxu0
      %v428 = vadd.f32 %v233, %v427
      %v429 = vpop.f32.mrb[0].mxu0
      %v430 = vpop.f32.mrb[0].mxu0
      %v431 = vadd.f32 %v238, %v430
      %v432 = vpop.f32.mrb[0].mxu0
      %433 = vdwg.mxu0
      %434 = vmatprep.subr.bf16.mxu0 0
      %435 = vmatpush1.bf16.msra.mxu0 %v358
      %436 = vmatprep.subr.bf16.mxu0 0
      %437 = vmatpush1.bf16.msra.mxu0 %v359
      %438 = vmatprep.subr.bf16.mxu0 0
      %439 = vmatpush1.bf16.msra.mxu0 0
      %440 = vmatprep.subr.bf16.mxu0 0
      %441 = vmatpush1.bf16.msra.mxu0 0
      %442 = vmatprep.subr.bf16.mxu0 0
      %443 = vmatpush1.bf16.msra.mxu0 0
      %444 = vmatprep.subr.bf16.mxu0 0
      %445 = vmatpush1.bf16.msra.mxu0 0
      %446 = vmatprep.subr.bf16.mxu0 0
      %447 = vmatpush1.bf16.msra.mxu0 0
      %448 = vmatprep.subr.bf16.mxu0 0
      %449 = vmatpush1.bf16.msra.mxu0 0
      %450 = vmatprep.subr.bf16.mxu0 0
      %451 = vmatpush1.bf16.msra.mxu0 0
      %452 = vmatprep.subr.bf16.mxu0 0
      %453 = vmatpush1.bf16.msra.mxu0 0
      %454 = vmatprep.subr.bf16.mxu0 0
      %455 = vmatpush1.bf16.msra.mxu0 0
      %456 = vmatprep.subr.bf16.mxu0 0
      %457 = vmatpush1.bf16.msra.mxu0 0
      %458 = vmatprep.subr.bf16.mxu0 0
      %459 = vmatpush1.bf16.msra.mxu0 0
      %460 = vmatprep.subr.bf16.mxu0 0
      %461 = vmatpush1.bf16.msra.mxu0 0
      %462 = vmatprep.subr.bf16.mxu0 0
      %463 = vmatpush1.bf16.msra.mxu0 0
      %464 = vmatprep.subr.bf16.mxu0 0
      %465 = vmatpush1.bf16.msra.mxu0 0
      %466 = vmatprep.mubr.bf16.mxu0 0
      %467 = vmatmul.mubr.bf16.gmra.mrb[0].mxu0 %v380
      %v468 = vpop.f32.mrb[0].mxu0
      %v469 = vadd.f32 %v420, %v468
      %v470 = vpop.f32.mrb[0].mxu0
      %v471 = vpop.f32.mrb[0].mxu0
      %v472 = vadd.f32 %v423, %v471
      %v473 = vpop.f32.mrb[0].mxu0
      %474 = vmatprep.mubr.bf16.mxu0 0
      %475 = vmatmul.mubr.bf16.gmra.mrb[0].mxu0 %v383
      %v476 = vpop.f32.mrb[0].mxu0
      %v477 = vadd.f32 %v428, %v476
      %v478 = vpop.f32.mrb[0].mxu0
      %v479 = vpop.f32.mrb[0].mxu0
      %v480 = vadd.f32 %v431, %v479
      %v481 = vpop.f32.mrb[0].mxu0
      %482 = vdwg.mxu0
      %v483 = vmax.f32 %v469, 0.0
      %v484 = vmax.f32 %v472, 0.0
      %v485 = vmax.f32 %v477, 0.0
      %v486 = vmax.f32 %v480, 0.0
      %v487 = vpack.c.bf16 %v484, %v483
      %v488 = vpack.c.bf16 %v486, %v485
      %v491 = vunpack.c.l.b16 %v487
      %v492 = vunpack.c.h.b16 %v487
      %v493 = vunpack.c.l.b16 %v488
      %v494 = vunpack.c.h.b16 %v488
      %v495 = vpack.c.b16 %v491, %v491
      %v496 = vpack.c.b16 %v492, %v492
      %v497 = vpack.c.b16 %v493, %v493
      %v498 = vpack.c.b16 %v494, %v494
      %vm503 = vcmask 125952
      %504 = vst.msk [vmem:[%s170] sm:$0xf] %vm503, %v495
      %505 = vst.msk [vmem:[%s170 + $0x4] sm:$0xf] %vm503, %v496
      %506 = vst.msk [vmem:[%s170 + $0x8] sm:$0xf] %vm503, %v497
      %507 = vst.msk [vmem:[%s170 + $0xc] sm:$0xf] %vm503, %v498
      %p508 = scmp.lt.s32.totalorder %s14, 1
      %s509 = scalar_select %p508, %s14, 1
      %s510 = smul.addr %s509, 4
      %s511 = smul.addr %s510, 4
      %s512 = scalar_lea.vmem %s3, %s511
      // Predicated region
      $region33: #{generalized_rcnn_forward.11} parent=31 // pred_check
        %p513 = pneg %p100
      $region34: #{generalized_rcnn_forward.11} parent=31 // pred_check_branch
        %515 = sbr.rel (%p513) target = $region36
      $region35: #{generalized_rcnn_forward.11} parent=31 // pred_region
        _
      $region36: #{generalized_rcnn_forward.11} parent=31 // pred_fallthru
        _
    $region32: #{generalized_rcnn_forward.11} parent=5 // pred_fallthru
      _
    %p516 = scmp.le.s32.totalorder 2, %s9
    // Predicated region
    $region37: #{generalized_rcnn_forward.11} parent=5 // pred_check
      %p517 = pneg %p516
    $region38: #{generalized_rcnn_forward.11} parent=5 // pred_check_branch
      %519 = sbr.rel (%p517) target = $region40
    $region39: #{generalized_rcnn_forward.11} parent=5 // pred_region
      %s520 = ssub.s32 %s9, 2
      // Predicated region
      $region41: #{generalized_rcnn_forward.11} parent=39 // pred_check
        %p521 = pneg %p106
      $region42: #{generalized_rcnn_forward.11} parent=39 // pred_check_branch
        %523 = sbr.rel (%p521) target = $region44
      $region43: #{generalized_rcnn_forward.11} parent=39 // pred_region
        %p524 = scmp.lt.s32.totalorder %s15, 1
        %s525 = scalar_select %p524, %s15, 1
        %s526 = smul.addr %s525, 4
        %s527 = smul.addr %s526, 4
        %s528 = scalar_lea.vmem %s3, %s527
      $region44: #{generalized_rcnn_forward.11} parent=39 // pred_fallthru
        _
    $region40: #{generalized_rcnn_forward.11} parent=5 // pred_fallthru
      _
  $region6: #{generalized_rcnn_forward.11} parent=0 // loop_footer
    %s13 = sadd.s32 1, %s9
  $region7: #{generalized_rcnn_forward.11} parent=0 // loop_footer_branch
    %8 = sbr.rel target = $region3
  $region8: #{generalized_rcnn_forward.11} parent=0 // loop_exit
    _

// kernel: generalized_rcnn_forward.12
$region0: #{generalized_rcnn_forward.12}
  #allocation0 [shape = 'u32[]', space=smem, size = 0x4, offset = 0x4, fixed_abs, tag = 'smem constant byte address 0x4 - core index']
  #allocation1 [shape = 'u32[144,128]{1,0:T(1,128)}', space=vmem, size = 0x12000, scoped, tag = 'internal scratch']
  %s0 = inlined_call_operand.vmem [shape: bf16[2,288,8], index: 0, kind: input, shape index: {}]
  %s1 = inlined_call_operand.vmem [shape: bf16[32,288], index: 1, kind: input, shape index: {}]
  %s2 = inlined_call_operand.vmem [shape: f32[32,1], index: 2, kind: input, shape index: {}]
  %s3 = inlined_call_operand.vmem [shape: bf16[2,32,8], index: 3, kind: output, shape index: {}]
  %s4 = sld [smem:[#allocation0]]
  $region45: #{generalized_rcnn_forward.12} parent=0
    _
  %s6 = ssub.s32 1, %s4
  %s7 = scalar_select 0, %s6, %s4
  loop: start=0, step=1, limit=4
  $region2: #{generalized_rcnn_forward.12} parent=0 // loop_pre_header
    _
  $region3: #{generalized_rcnn_forward.12} parent=0 // loop_header
    %s9 = sphi 0, %s13
    %p10 = scmp.ge.s32.totalorder %s9, 4
    %s19 = sphi 0, %s21
    %s22 = sphi 0, %s19
    %s23 = sphi 0, %s22
    %s39 = sphi 0, %s23
    %s43 = sphi 0, %s43
    %s45 = sphi 0, %s43
    %s46 = sphi 0, %s45
    %s60 = sphi 0, %s46
    %s64 = sphi 0, %s64
    %s66 = sphi 0, %s64
    %s67 = sphi 0, %s66
    %s81 = sphi 0, %s67
    %s87 = sphi 0, %s89
    %s90 = sphi 0, %s87
    %s91 = sphi 0, %s90
    %s107 = sphi 0, %s91
  $region4: #{generalized_rcnn_forward.12} parent=0 // loop_header_branch
    %12 = sbr.rel (%p10) target = $region8
  $region5: #{generalized_rcnn_forward.12} parent=0 // loop_body
    %s14 = ssub.s32 %s9, 1
    %s15 = ssub.s32 %s9, 2
    %s16 = sadd.s32 %s9, 1
    %s17 = ssub.s32 %s9, %s16
    %p18 = scmp.eq.s32.totalorder %s17, 0
    %s20 = sadd.s32 %s19, 1
    %s21 = scalar_select %p18, %s19, %s20
    %p24 = pneg %p18
    %p25 = scmp.eq.s32.totalorder %s9, 1
    %p26 = por %p24, %p25
    %p27 = scmp.ne.s32.totalorder %s19, %s22
    %p28 = scmp.eq.s32.totalorder %s9, 0
    %p29 = por %p27, %p28
    %p30 = scmp.ne.s32.totalorder %s19, %s22
    %p31 = scmp.eq.s32.totalorder %s14, 1
    %p32 = por %p30, %p31
    %p33 = scmp.ne.s32.totalorder %s22, %s23
    %p34 = scmp.eq.s32.totalorder %s14, 0
    %p35 = por %p33, %p34
    %p36 = scmp.ne.s32.totalorder %s22, %s23
    %p37 = scmp.eq.s32.totalorder %s15, 1
    %p38 = por %p36, %p37
    %p40 = scmp.ne.s32.totalorder %s23, %s39
    %p41 = scmp.eq.s32.totalorder %s15, 0
    %p42 = por %p40, %p41
    %s44 = sadd.s32 %s43, 1
    %p47 = scmp.eq.s32.totalorder %s9, 1
    %p48 = scmp.ne.s32.totalorder %s43, %s45
    %p49 = scmp.eq.s32.totalorder %s9, 0
    %p50 = por %p48, %p49
    %p51 = scmp.ne.s32.totalorder %s43, %s45
    %p52 = scmp.eq.s32.totalorder %s14, 1
    %p53 = por %p51, %p52
    %p54 = scmp.ne.s32.totalorder %s45, %s46
    %p55 = scmp.eq.s32.totalorder %s14, 0
    %p56 = por %p54, %p55
    %p57 = scmp.ne.s32.totalorder %s45, %s46
    %p58 = scmp.eq.s32.totalorder %s15, 1
    %p59 = por %p57, %p58
    %p61 = scmp.ne.s32.totalorder %s46, %s60
    %p62 = scmp.eq.s32.totalorder %s15, 0
    %p63 = por %p61, %p62
    %s65 = sadd.s32 %s64, 1
    %p68 = scmp.eq.s32.totalorder %s9, 1
    %p69 = scmp.ne.s32.totalorder %s64, %s66
    %p70 = scmp.eq.s32.totalorder %s9, 0
    %p71 = por %p69, %p70
    %p72 = scmp.ne.s32.totalorder %s64, %s66
    %p73 = scmp.eq.s32.totalorder %s14, 1
    %p74 = por %p72, %p73
    %p75 = scmp.ne.s32.totalorder %s66, %s67
    %p76 = scmp.eq.s32.totalorder %s14, 0
    %p77 = por %p75, %p76
    %p78 = scmp.ne.s32.totalorder %s66, %s67
    %p79 = scmp.eq.s32.totalorder %s15, 1
    %p80 = por %p78, %p79
    %p82 = scmp.ne.s32.totalorder %s67, %s81
    %p83 = scmp.eq.s32.totalorder %s15, 0
    %p84 = por %p82, %p83
    %s85 = ssub.s32 %s9, %s16
    %p86 = scmp.eq.s32.totalorder %s85, 0
    %s88 = sadd.s32 %s87, 1
    %s89 = scalar_select %p86, %s87, %s88
    %p92 = pneg %p86
    %p93 = scmp.eq.s32.totalorder %s9, 1
    %p94 = por %p92, %p93
    %p95 = scmp.ne.s32.totalorder %s87, %s90
    %p96 = scmp.eq.s32.totalorder %s9, 0
    %p97 = por %p95, %p96
    %p98 = scmp.ne.s32.totalorder %s87, %s90
    %p99 = scmp.eq.s32.totalorder %s14, 1
    %p100 = por %p98, %p99
    %p101 = scmp.ne.s32.totalorder %s90, %s91
    %p102 = scmp.eq.s32.totalorder %s14, 0
    %p103 = por %p101, %p102
    %p104 = scmp.ne.s32.totalorder %s90, %s91
    %p105 = scmp.eq.s32.totalorder %s15, 1
    %p106 = por %p104, %p105
    %p108 = scmp.ne.s32.totalorder %s91, %s107
    %p109 = scmp.eq.s32.totalorder %s15, 0
    %p110 = por %p108, %p109
    %p111 = scmp.le.s32.totalorder 1, %s9
    %p112 = scmp.lt.s32.totalorder %s9, 3
    %p113 = pnand %p111, %p112
    %p114 = pneg %p113
    // Predicated region
    $region9: #{generalized_rcnn_forward.12} parent=5 // pred_check
      _
    $region10: #{generalized_rcnn_forward.12} parent=5 // pred_check_branch
      %116 = sbr.rel (%p113) target = $region12
    $region11: #{generalized_rcnn_forward.12} parent=5 // pred_region
      %s117 = ssub.s32 %s9, 1
      // Predicated region
      $region13: #{generalized_rcnn_forward.12} parent=11 // pred_check
        %p118 = pneg %p56
      $region14: #{generalized_rcnn_forward.12} parent=11 // pred_check_branch
        %120 = sbr.rel (%p118) target = $region16
      $region15: #{generalized_rcnn_forward.12} parent=11 // pred_region
        _
      $region16: #{generalized_rcnn_forward.12} parent=11 // pred_fallthru
        _
      // Predicated region
      $region17: #{generalized_rcnn_forward.12} parent=11 // pred_check
        %p121 = pneg %p77
      $region18: #{generalized_rcnn_forward.12} parent=11 // pred_check_branch
        %123 = sbr.rel (%p121) target = $region20
      $region19: #{generalized_rcnn_forward.12} parent=11 // pred_region
        _
      $region20: #{generalized_rcnn_forward.12} parent=11 // pred_fallthru
        _
    $region12: #{generalized_rcnn_forward.12} parent=5 // pred_fallthru
      _
    %p124 = scmp.lt.s32.totalorder %s9, 2
    // Predicated region
    $region21: #{generalized_rcnn_forward.12} parent=5 // pred_check
      %p125 = pneg %p124
    $region22: #{generalized_rcnn_forward.12} parent=5 // pred_check_branch
      %127 = sbr.rel (%p125) target = $region24
    $region23: #{generalized_rcnn_forward.12} parent=5 // pred_region
      // Predicated region
      $region25: #{generalized_rcnn_forward.12} parent=23 // pred_check
        %p128 = pneg %p29
      $region26: #{generalized_rcnn_forward.12} parent=23 // pred_check_branch
        %130 = sbr.rel (%p128) target = $region28
      $region27: #{generalized_rcnn_forward.12} parent=23 // pred_region
        %p131 = scmp.lt.s32.totalorder %s9, 1
        %s132 = scalar_select %p131, %s9, 1
        %s133 = smul.addr %s132, 36
        %s134 = smul.addr %s133, 4
        %s135 = scalar_lea.vmem %s0, %s134
      $region28: #{generalized_rcnn_forward.12} parent=23 // pred_fallthru
        _
    $region24: #{generalized_rcnn_forward.12} parent=5 // pred_fallthru
      _
    %p136 = scmp.le.s32.totalorder 1, %s9
    %p137 = scmp.lt.s32.totalorder %s9, 3
    %p138 = pnand %p136, %p137
    %p139 = pneg %p138
    // Predicated region
    $region29: #{generalized_rcnn_forward.12} parent=5 // pred_check
      _
    $region30: #{generalized_rcnn_forward.12} parent=5 // pred_check_branch
      %141 = sbr.rel (%p138) target = $region32
    $region31: #{generalized_rcnn_forward.12} parent=5 // pred_region
      %s142 = ssub.s32 %s9, 1
      %p143 = scmp.lt.s32.totalorder %s14, 1
      %s144 = scalar_select %p143, %s14, 1
      %s145 = smul.addr %s144, 36
      %s146 = smul.addr %s145, 4
      %s147 = scalar_lea.vmem %s0, %s146
      %p148 = pneg %p35
      %p149 = pneg %p32
      %p150 = pneg %p56
      %p151 = pneg %p53
      %p152 = pneg %p77
      %p153 = pneg %p74
      %p154 = pneg %p103
      %p155 = pneg %p100
      %p156 = scmp.lt.s32.totalorder %s14, 1
      %s157 = scalar_select %p156, %s14, 1
      %s158 = smul.addr %s157, 4
      %s159 = smul.addr %s158, 4
      %s160 = scalar_lea.vmem %s3, %s159
      %p161 = scmp.lt.s32.totalorder %s14, 1
      %s162 = scalar_select %p161, %s14, 1
      %s163 = smul.addr %s162, 36
      %s164 = smul.addr %s163, 4
      %s165 = scalar_lea.vmem %s0, %s164
      %p166 = scmp.lt.s32.totalorder %s14, 1
      %s167 = scalar_select %p166, %s14, 1
      %s168 = smul.addr %s167, 4
      %s169 = smul.addr %s168, 4
      %s170 = scalar_lea.vmem %s3, %s169
      %v172 = vld [vmem:[%s1] sm:$0xff]
      %v173 = vld [vmem:[%s1 + $0x8] sm:$0xf]
      %v174 = vld [vmem:[%s1 + $0xc] sm:$0xff]
      %v175 = vld [vmem:[%s1 + $0x14] sm:$0xf]
      %v176 = vld [vmem:[%s1 + $0x18] sm:$0xff]
      %v177 = vld [vmem:[%s1 + $0x20] sm:$0xf]
      %v178 = vld [vmem:[%s1 + $0x24] sm:$0xff]
      %v179 = vld [vmem:[%s1 + $0x2c] sm:$0xf]
      %v180 = vld [vmem:[%s165] sm:$0xf]
      %v181 = vld [vmem:[%s165 + $0x4] sm:$0xf]
      %v182 = vld [vmem:[%s165 + $0x8] sm:$0xf]
      %v183 = vld [vmem:[%s165 + $0xc] sm:$0xf]
      %v184 = vld [vmem:[%s165 + $0x10] sm:$0xf]
      %v185 = vld [vmem:[%s165 + $0x14] sm:$0xf]
      %v186 = vld [vmem:[%s165 + $0x18] sm:$0xf]
      %v187 = vld [vmem:[%s165 + $0x1c] sm:$0xf]
      %v188 = vld [vmem:[%s165 + $0x20] sm:$0xf]
      %v189 = vld [vmem:[%s165 + $0x24] sm:$0xf]
      %v190 = vld [vmem:[%s165 + $0x28] sm:$0xf]
      %v191 = vld [vmem:[%s165 + $0x2c] sm:$0xf]
      %v192 = vld [vmem:[%s165 + $0x30] sm:$0xf]
      %v193 = vld [vmem:[%s165 + $0x34] sm:$0xf]
      %v194 = vld [vmem:[%s165 + $0x38] sm:$0xf]
      %v195 = vld [vmem:[%s165 + $0x3c] sm:$0xf]
      %v196 = vld [vmem:[%s165 + $0x40] sm:$0xf]
      %v197 = vld [vmem:[%s165 + $0x44] sm:$0xf]
      %v198 = vld [vmem:[%s165 + $0x48] sm:$0xf]
      %v199 = vld [vmem:[%s165 + $0x4c] sm:$0xf]
      %v200 = vld [vmem:[%s165 + $0x50] sm:$0xf]
      %v201 = vld [vmem:[%s165 + $0x54] sm:$0xf]
      %v202 = vld [vmem:[%s165 + $0x58] sm:$0xf]
      %v203 = vld [vmem:[%s165 + $0x5c] sm:$0xf]
      %v204 = vld [vmem:[%s165 + $0x60] sm:$0xf]
      %v205 = vld [vmem:[%s165 + $0x64] sm:$0xf]
      %v206 = vld [vmem:[%s165 + $0x68] sm:$0xf]
      %v207 = vld [vmem:[%s165 + $0x6c] sm:$0xf]
      %v208 = vld [vmem:[%s165 + $0x70] sm:$0xf]
      %v209 = vld [vmem:[%s165 + $0x74] sm:$0xf]
      %v210 = vld [vmem:[%s165 + $0x78] sm:$0xf]
      %v211 = vld [vmem:[%s165 + $0x7c] sm:$0xf]
      %v212 = vld [vmem:[%s165 + $0x80] sm:$0xf]
      %v213 = vld [vmem:[%s165 + $0x84] sm:$0xf]
      %v214 = vld [vmem:[%s165 + $0x88] sm:$0xf]
      %v215 = vld [vmem:[%s165 + $0x8c] sm:$0xf]
      %v216 = vld [vmem:[%s2] sm:$0xff]
      %v217 = vld [vmem:[%s2 + $0x8] sm:$0xff]
      %v218 = vld [vmem:[%s2 + $0x10] sm:$0xff]
      %v219 = vld [vmem:[%s2 + $0x18] sm:$0xff]
      %221 = vset.pattern.permute.xlu0 0
      %222 = vperm.xlu0 %221, %v216
      %v223 = vpop.permute.xlu0 %222
      %226 = vset.pattern.permute.xlu0 0
      %227 = vperm.xlu0 %226, %v217
      %v228 = vpop.permute.xlu0 %227
      %231 = vset.pattern.permute.xlu0 0
      %232 = vperm.xlu0 %231, %v218
      %v233 = vpop.permute.xlu0 %232
      %236 = vset.pattern.permute.xlu0 0
      %237 = vperm.xlu0 %236, %v219
      %v238 = vpop.permute.xlu0 %237
      %v248 = vunpack.c.l.b16 %v172
      %v249 = vunpack.c.h.b16 %v172
      %v250 = vunpack.c.l.b16 %v173
      %v251 = vunpack.c.l.b16 %v174
      %v252 = vunpack.c.h.b16 %v174
      %v253 = vunpack.c.l.b16 %v175
      %v254 = vunpack.c.l.b16 %v176
      %v255 = vunpack.c.h.b16 %v176
      %v256 = vunpack.c.l.b16 %v177
      %v257 = vunpack.c.l.b16 %v178
      %v258 = vunpack.c.h.b16 %v178
      %v259 = vunpack.c.l.b16 %v179
      %v260 = vpack.c.b16 %v251, %v248
      %v261 = vpack.c.b16 %v252, %v249
      %v262 = vpack.c.b16 %v253, %v250
      %v263 = vpack.c.b16 %v257, %v254
      %v264 = vpack.c.b16 %v258, %v255
      %v265 = vpack.c.b16 %v259, %v256
      %v306 = vunpack.c.l.b16 %v180
      %v307 = vunpack.c.l.b16 %v181
      %v308 = vunpack.c.l.b16 %v182
      %v309 = vunpack.c.l.b16 %v183
      %v310 = vunpack.c.l.b16 %v184
      %v311 = vunpack.c.l.b16 %v185
      %v312 = vunpack.c.l.b16 %v186
      %v313 = vunpack.c.l.b16 %v187
      %v314 = vunpack.c.l.b16 %v188
      %v315 = vunpack.c.l.b16 %v189
      %v316 = vunpack.c.l.b16 %v190
      %v317 = vunpack.c.l.b16 %v191
      %v318 = vunpack.c.l.b16 %v192
      %v319 = vunpack.c.l.b16 %v193
      %v320 = vunpack.c.l.b16 %v194
      %v321 = vunpack.c.l.b16 %v195
      %v322 = vunpack.c.l.b16 %v196
      %v323 = vunpack.c.l.b16 %v197
      %v324 = vunpack.c.l.b16 %v198
      %v325 = vunpack.c.l.b16 %v199
      %v326 = vunpack.c.l.b16 %v200
      %v327 = vunpack.c.l.b16 %v201
      %v328 = vunpack.c.l.b16 %v202
      %v329 = vunpack.c.l.b16 %v203
      %v330 = vunpack.c.l.b16 %v204
      %v331 = vunpack.c.l.b16 %v205
      %v332 = vunpack.c.l.b16 %v206
      %v333 = vunpack.c.l.b16 %v207
      %v334 = vunpack.c.l.b16 %v208
      %v335 = vunpack.c.l.b16 %v209
      %v336 = vunpack.c.l.b16 %v210
      %v337 = vunpack.c.l.b16 %v211
      %v338 = vunpack.c.l.b16 %v212
      %v339 = vunpack.c.l.b16 %v213
      %v340 = vunpack.c.l.b16 %v214
      %v341 = vunpack.c.l.b16 %v215
      %v342 = vpack.c.b16 %v307, %v306
      %v343 = vpack.c.b16 %v309, %v308
      %v344 = vpack.c.b16 %v311, %v310
      %v345 = vpack.c.b16 %v313, %v312
      %v346 = vpack.c.b16 %v315, %v314
      %v347 = vpack.c.b16 %v317, %v316
      %v348 = vpack.c.b16 %v319, %v318
      %v349 = vpack.c.b16 %v321, %v320
      %v350 = vpack.c.b16 %v323, %v322
      %v351 = vpack.c.b16 %v325, %v324
      %v352 = vpack.c.b16 %v327, %v326
      %v353 = vpack.c.b16 %v329, %v328
      %v354 = vpack.c.b16 %v331, %v330
      %v355 = vpack.c.b16 %v333, %v332
      %v356 = vpack.c.b16 %v335, %v334
      %v357 = vpack.c.b16 %v337, %v336
      %v358 = vpack.c.b16 %v339, %v338
      %v359 = vpack.c.b16 %v341, %v340
      %vm378 = vcmask 261120
      %v380 = vsel %vm378, %v262, 0
      %v383 = vsel %vm378, %v265, 0
      %385 = vmatprep.subr.bf16.mxu0 0
      %386 = vmatpush1.bf16.msra.mxu0 %v342
      %387 = vmatprep.subr.bf16.mxu0 0
      %388 = vmatpush1.bf16.msra.mxu0 %v343
      %389 = vmatprep.subr.bf16.mxu0 0
      %390 = vmatpush1.bf16.msra.mxu0 %v344
      %391 = vmatprep.subr.bf16.mxu0 0
      %392 = vmatpush1.bf16.msra.mxu0 %v345
      %393 = vmatprep.subr.bf16.mxu0 0
      %394 = vmatpush1.bf16.msra.mxu0 %v346
      %395 = vmatprep.subr.bf16.mxu0 0
      %396 = vmatpush1.bf16.msra.mxu0 %v347
      %397 = vmatprep.subr.bf16.mxu0 0
      %398 = vmatpush1.bf16.msra.mxu0 %v348
      %399 = vmatprep.subr.bf16.mxu0 0
      %400 = vmatpush1.bf16.msra.mxu0 %v349
      %401 = vmatprep.subr.bf16.mxu0 0
      %402 = vmatpush1.bf16.msra.mxu0 %v350
      %403 = vmatprep.subr.bf16.mxu0 0
      %404 = vmatpush1.bf16.msra.mxu0 %v351
      %405 = vmatprep.subr.bf16.mxu0 0
      %406 = vmatpush1.bf16.msra.mxu0 %v352
      %407 = vmatprep.subr.bf16.mxu0 0
      %408 = vmatpush1.bf16.msra.mxu0 %v353
      %409 = vmatprep.subr.bf16.mxu0 0
      %410 = vmatpush1.bf16.msra.mxu0 %v354
      %411 = vmatprep.subr.bf16.mxu0 0
      %412 = vmatpush1.bf16.msra.mxu0 %v355
      %413 = vmatprep.subr.bf16.mxu0 0
      %414 = vmatpush1.bf16.msra.mxu0 %v356
      %415 = vmatprep.subr.bf16.mxu0 0
      %416 = vmatpush1.bf16.msra.mxu0 %v357
      %417 = vmatprep.mubr.bf16.mxu0 %v261
      %418 = vmatmul.mubr.bf16.gmra.mrb[0].mxu0 %v260
      %v419 = vpop.f32.mrb[0].mxu0
      %v420 = vadd.f32 %v223, %v419
      %v421 = vpop.f32.mrb[0].mxu0
      %v422 = vpop.f32.mrb[0].mxu0
      %v423 = vadd.f32 %v228, %v422
      %v424 = vpop.f32.mrb[0].mxu0
      %425 = vmatprep.mubr.bf16.mxu0 %v264
      %426 = vmatmul.mubr.bf16.gmra.mrb[0].mxu0 %v263
      %v427 = vpop.f32.mrb[0].mxu0
      %v428 = vadd.f32 %v233, %v427
      %v429 = vpop.f32.mrb[0].mxu0
      %v430 = vpop.f32.mrb[0].mxu0
      %v431 = vadd.f32 %v238, %v430
      %v432 = vpop.f32.mrb[0].mxu0
      %433 = vdwg.mxu0
      %434 = vmatprep.subr.bf16.mxu0 0
      %435 = vmatpush1.bf16.msra.mxu0 %v358
      %436 = vmatprep.subr.bf16.mxu0 0
      %437 = vmatpush1.bf16.msra.mxu0 %v359
      %438 = vmatprep.subr.bf16.mxu0 0
      %439 = vmatpush1.bf16.msra.mxu0 0
      %440 = vmatprep.subr.bf16.mxu0 0
      %441 = vmatpush1.bf16.msra.mxu0 0
      %442 = vmatprep.subr.bf16.mxu0 0
      %443 = vmatpush1.bf16.msra.mxu0 0
      %444 = vmatprep.subr.bf16.mxu0 0
      %445 = vmatpush1.bf16.msra.mxu0 0
      %446 = vmatprep.subr.bf16.mxu0 0
      %447 = vmatpush1.bf16.msra.mxu0 0
      %448 = vmatprep.subr.bf16.mxu0 0
      %449 = vmatpush1.bf16.msra.mxu0 0
      %450 = vmatprep.subr.bf16.mxu0 0
      %451 = vmatpush1.bf16.msra.mxu0 0
      %452 = vmatprep.subr.bf16.mxu0 0
      %453 = vmatpush1.bf16.msra.mxu0 0
      %454 = vmatprep.subr.bf16.mxu0 0
      %455 = vmatpush1.bf16.msra.mxu0 0
      %456 = vmatprep.subr.bf16.mxu0 0
      %457 = vmatpush1.bf16.msra.mxu0 0
      %458 = vmatprep.subr.bf16.mxu0 0
      %459 = vmatpush1.bf16.msra.mxu0 0
      %460 = vmatprep.subr.bf16.mxu0 0
      %461 = vmatpush1.bf16.msra.mxu0 0
      %462 = vmatprep.subr.bf16.mxu0 0
      %463 = vmatpush1.bf16.msra.mxu0 0
      %464 = vmatprep.subr.bf16.mxu0 0
      %465 = vmatpush1.bf16.msra.mxu0 0
      %466 = vmatprep.mubr.bf16.mxu0 0
      %467 = vmatmul.mubr.bf16.gmra.mrb[0].mxu0 %v380
      %v468 = vpop.f32.mrb[0].mxu0
      %v469 = vadd.f32 %v420, %v468
      %v470 = vpop.f32.mrb[0].mxu0
      %v471 = vpop.f32.mrb[0].mxu0
      %v472 = vadd.f32 %v423, %v471
      %v473 = vpop.f32.mrb[0].mxu0
      %474 = vmatprep.mubr.bf16.mxu0 0
      %475 = vmatmul.mubr.bf16.gmra.mrb[0].mxu0 %v383
      %v476 = vpop.f32.mrb[0].mxu0
      %v477 = vadd.f32 %v428, %v476
      %v478 = vpop.f32.mrb[0].mxu0
      %v479 = vpop.f32.mrb[0].mxu0
      %v480 = vadd.f32 %v431, %v479
      %v481 = vpop.f32.mrb[0].mxu0
      %482 = vdwg.mxu0
      %v483 = vmax.f32 %v469, 0.0
      %v484 = vmax.f32 %v472, 0.0
      %v485 = vmax.f32 %v477, 0.0
      %v486 = vmax.f32 %v480, 0.0
      %v487 = vpack.c.bf16 %v484, %v483
      %v488 = vpack.c.bf16 %v486, %v485
      %v491 = vunpack.c.l.b16 %v487
      %v492 = vunpack.c.h.b16 %v487
      %v493 = vunpack.c.l.b16 %v488
      %v494 = vunpack.c.h.b16 %v488
      %v495 = vpack.c.b16 %v491, %v491
      %v496 = vpack.c.b16 %v492, %v492
      %v497 = vpack.c.b16 %v493, %v493
      %v498 = vpack.c.b16 %v494, %v494
      %vm503 = vcmask 60416
      %504 = vst.msk [vmem:[%s170] sm:$0xf] %vm503, %v495
      %505 = vst.msk [vmem:[%s170 + $0x4] sm:$0xf] %vm503, %v496
      %506 = vst.msk [vmem:[%s170 + $0x8] sm:$0xf] %vm503, %v497
      %507 = vst.msk [vmem:[%s170 + $0xc] sm:$0xf] %vm503, %v498
      %p508 = scmp.lt.s32.totalorder %s14, 1
      %s509 = scalar_select %p508, %s14, 1
      %s510 = smul.addr %s509, 4
      %s511 = smul.addr %s510, 4
      %s512 = scalar_lea.vmem %s3, %s511
      // Predicated region
      $region33: #{generalized_rcnn_forward.12} parent=31 // pred_check
        %p513 = pneg %p100
      $region34: #{generalized_rcnn_forward.12} parent=31 // pred_check_branch
        %515 = sbr.rel (%p513) target = $region36
      $region35: #{generalized_rcnn_forward.12} parent=31 // pred_region
        _
      $region36: #{generalized_rcnn_forward.12} parent=31 // pred_fallthru
        _
    $region32: #{generalized_rcnn_forward.12} parent=5 // pred_fallthru
      _
    %p516 = scmp.le.s32.totalorder 2, %s9
    // Predicated region
    $region37: #{generalized_rcnn_forward.12} parent=5 // pred_check
      %p517 = pneg %p516
    $region38: #{generalized_rcnn_forward.12} parent=5 // pred_check_branch
      %519 = sbr.rel (%p517) target = $region40
    $region39: #{generalized_rcnn_forward.12} parent=5 // pred_region
      %s520 = ssub.s32 %s9, 2
      // Predicated region
      $region41: #{generalized_rcnn_forward.12} parent=39 // pred_check
        %p521 = pneg %p106
      $region42: #{generalized_rcnn_forward.12} parent=39 // pred_check_branch
        %523 = sbr.rel (%p521) target = $region44
      $region43: #{generalized_rcnn_forward.12} parent=39 // pred_region
        %p524 = scmp.lt.s32.totalorder %s15, 1
        %s525 = scalar_select %p524, %s15, 1
        %s526 = smul.addr %s525, 4
        %s527 = smul.addr %s526, 4
        %s528 = scalar_lea.vmem %s3, %s527
      $region44: #{generalized_rcnn_forward.12} parent=39 // pred_fallthru
        _
    $region40: #{generalized_rcnn_forward.12} parent=5 // pred_fallthru
      _
  $region6: #{generalized_rcnn_forward.12} parent=0 // loop_footer
    %s13 = sadd.s32 1, %s9
  $region7: #{generalized_rcnn_forward.12} parent=0 // loop_footer_branch
    %8 = sbr.rel target = $region3
  $region8: #{generalized_rcnn_forward.12} parent=0 // loop_exit
    _

// kernel: generalized_rcnn_forward.14
$region0: #{generalized_rcnn_forward.14}
  #allocation0 [shape = 'u32[]', space=smem, size = 0x4, offset = 0x4, fixed_abs, tag = 'smem constant byte address 0x4 - core index']
  #allocation1 [shape = 'u32[144,128]{1,0:T(1,128)}', space=vmem, size = 0x12000, scoped, tag = 'internal scratch']
  %s0 = inlined_call_operand.vmem [shape: bf16[2,288,344], index: 0, kind: input, shape index: {}]
  %s1 = inlined_call_operand.vmem [shape: bf16[32,288], index: 1, kind: input, shape index: {}]
  %s2 = inlined_call_operand.vmem [shape: f32[32,1], index: 2, kind: input, shape index: {}]
  %s3 = inlined_call_operand.vmem [shape: bf16[16,32], index: 3, kind: input, shape index: {}]
  %s4 = inlined_call_operand.vmem [shape: f32[16,1], index: 4, kind: input, shape index: {}]
  %s5 = inlined_call_operand.vmem [shape: f32[2,16,344], index: 5, kind: output, shape index: {}]
  %s6 = sld [smem:[#allocation0]]
  $region53: #{generalized_rcnn_forward.14} parent=0
    _
  %s8 = ssub.s32 1, %s6
  %s9 = scalar_select 0, %s8, %s6
  loop: start=0, step=1, limit=4
  $region2: #{generalized_rcnn_forward.14} parent=0 // loop_pre_header
    _
  $region3: #{generalized_rcnn_forward.14} parent=0 // loop_header
    %s11 = sphi 0, %s15
    %p12 = scmp.ge.s32.totalorder %s11, 4
    %s21 = sphi 0, %s23
    %s24 = sphi 0, %s21
    %s25 = sphi 0, %s24
    %s41 = sphi 0, %s25
    %s45 = sphi 0, %s45
    %s47 = sphi 0, %s45
    %s48 = sphi 0, %s47
    %s62 = sphi 0, %s48
    %s66 = sphi 0, %s66
    %s68 = sphi 0, %s66
    %s69 = sphi 0, %s68
    %s83 = sphi 0, %s69
    %s87 = sphi 0, %s87
    %s89 = sphi 0, %s87
    %s90 = sphi 0, %s89
    %s104 = sphi 0, %s90
    %s108 = sphi 0, %s108
    %s110 = sphi 0, %s108
    %s111 = sphi 0, %s110
    %s125 = sphi 0, %s111
    %s131 = sphi 0, %s133
    %s134 = sphi 0, %s131
    %s135 = sphi 0, %s134
    %s151 = sphi 0, %s135
  $region4: #{generalized_rcnn_forward.14} parent=0 // loop_header_branch
    %14 = sbr.rel (%p12) target = $region8
  $region5: #{generalized_rcnn_forward.14} parent=0 // loop_body
    %s16 = ssub.s32 %s11, 1
    %s17 = ssub.s32 %s11, 2
    %s18 = sadd.s32 %s11, 1
    %s19 = ssub.s32 %s11, %s18
    %p20 = scmp.eq.s32.totalorder %s19, 0
    %s22 = sadd.s32 %s21, 1
    %s23 = scalar_select %p20, %s21, %s22
    %p26 = pneg %p20
    %p27 = scmp.eq.s32.totalorder %s11, 1
    %p28 = por %p26, %p27
    %p29 = scmp.ne.s32.totalorder %s21, %s24
    %p30 = scmp.eq.s32.totalorder %s11, 0
    %p31 = por %p29, %p30
    %p32 = scmp.ne.s32.totalorder %s21, %s24
    %p33 = scmp.eq.s32.totalorder %s16, 1
    %p34 = por %p32, %p33
    %p35 = scmp.ne.s32.totalorder %s24, %s25
    %p36 = scmp.eq.s32.totalorder %s16, 0
    %p37 = por %p35, %p36
    %p38 = scmp.ne.s32.totalorder %s24, %s25
    %p39 = scmp.eq.s32.totalorder %s17, 1
    %p40 = por %p38, %p39
    %p42 = scmp.ne.s32.totalorder %s25, %s41
    %p43 = scmp.eq.s32.totalorder %s17, 0
    %p44 = por %p42, %p43
    %s46 = sadd.s32 %s45, 1
    %p49 = scmp.eq.s32.totalorder %s11, 1
    %p50 = scmp.ne.s32.totalorder %s45, %s47
    %p51 = scmp.eq.s32.totalorder %s11, 0
    %p52 = por %p50, %p51
    %p53 = scmp.ne.s32.totalorder %s45, %s47
    %p54 = scmp.eq.s32.totalorder %s16, 1
    %p55 = por %p53, %p54
    %p56 = scmp.ne.s32.totalorder %s47, %s48
    %p57 = scmp.eq.s32.totalorder %s16, 0
    %p58 = por %p56, %p57
    %p59 = scmp.ne.s32.totalorder %s47, %s48
    %p60 = scmp.eq.s32.totalorder %s17, 1
    %p61 = por %p59, %p60
    %p63 = scmp.ne.s32.totalorder %s48, %s62
    %p64 = scmp.eq.s32.totalorder %s17, 0
    %p65 = por %p63, %p64
    %s67 = sadd.s32 %s66, 1
    %p70 = scmp.eq.s32.totalorder %s11, 1
    %p71 = scmp.ne.s32.totalorder %s66, %s68
    %p72 = scmp.eq.s32.totalorder %s11, 0
    %p73 = por %p71, %p72
    %p74 = scmp.ne.s32.totalorder %s66, %s68
    %p75 = scmp.eq.s32.totalorder %s16, 1
    %p76 = por %p74, %p75
    %p77 = scmp.ne.s32.totalorder %s68, %s69
    %p78 = scmp.eq.s32.totalorder %s16, 0
    %p79 = por %p77, %p78
    %p80 = scmp.ne.s32.totalorder %s68, %s69
    %p81 = scmp.eq.s32.totalorder %s17, 1
    %p82 = por %p80, %p81
    %p84 = scmp.ne.s32.totalorder %s69, %s83
    %p85 = scmp.eq.s32.totalorder %s17, 0
    %p86 = por %p84, %p85
    %s88 = sadd.s32 %s87, 1
    %p91 = scmp.eq.s32.totalorder %s11, 1
    %p92 = scmp.ne.s32.totalorder %s87, %s89
    %p93 = scmp.eq.s32.totalorder %s11, 0
    %p94 = por %p92, %p93
    %p95 = scmp.ne.s32.totalorder %s87, %s89
    %p96 = scmp.eq.s32.totalorder %s16, 1
    %p97 = por %p95, %p96
    %p98 = scmp.ne.s32.totalorder %s89, %s90
    %p99 = scmp.eq.s32.totalorder %s16, 0
    %p100 = por %p98, %p99
    %p101 = scmp.ne.s32.totalorder %s89, %s90
    %p102 = scmp.eq.s32.totalorder %s17, 1
    %p103 = por %p101, %p102
    %p105 = scmp.ne.s32.totalorder %s90, %s104
    %p106 = scmp.eq.s32.totalorder %s17, 0
    %p107 = por %p105, %p106
    %s109 = sadd.s32 %s108, 1
    %p112 = scmp.eq.s32.totalorder %s11, 1
    %p113 = scmp.ne.s32.totalorder %s108, %s110
    %p114 = scmp.eq.s32.totalorder %s11, 0
    %p115 = por %p113, %p114
    %p116 = scmp.ne.s32.totalorder %s108, %s110
    %p117 = scmp.eq.s32.totalorder %s16, 1
    %p118 = por %p116, %p117
    %p119 = scmp.ne.s32.totalorder %s110, %s111
    %p120 = scmp.eq.s32.totalorder %s16, 0
    %p121 = por %p119, %p120
    %p122 = scmp.ne.s32.totalorder %s110, %s111
    %p123 = scmp.eq.s32.totalorder %s17, 1
    %p124 = por %p122, %p123
    %p126 = scmp.ne.s32.totalorder %s111, %s125
    %p127 = scmp.eq.s32.totalorder %s17, 0
    %p128 = por %p126, %p127
    %s129 = ssub.s32 %s11, %s18
    %p130 = scmp.eq.s32.totalorder %s129, 0
    %s132 = sadd.s32 %s131, 1
    %s133 = scalar_select %p130, %s131, %s132
    %p136 = pneg %p130
    %p137 = scmp.eq.s32.totalorder %s11, 1
    %p138 = por %p136, %p137
    %p139 = scmp.ne.s32.totalorder %s131, %s134
    %p140 = scmp.eq.s32.totalorder %s11, 0
    %p141 = por %p139, %p140
    %p142 = scmp.ne.s32.totalorder %s131, %s134
    %p143 = scmp.eq.s32.totalorder %s16, 1
    %p144 = por %p142, %p143
    %p145 = scmp.ne.s32.totalorder %s134, %s135
    %p146 = scmp.eq.s32.totalorder %s16, 0
    %p147 = por %p145, %p146
    %p148 = scmp.ne.s32.totalorder %s134, %s135
    %p149 = scmp.eq.s32.totalorder %s17, 1
    %p150 = por %p148, %p149
    %p152 = scmp.ne.s32.totalorder %s135, %s151
    %p153 = scmp.eq.s32.totalorder %s17, 0
    %p154 = por %p152, %p153
    %p155 = scmp.le.s32.totalorder 1, %s11
    %p156 = scmp.lt.s32.totalorder %s11, 3
    %p157 = pnand %p155, %p156
    %p158 = pneg %p157
    // Predicated region
    $region9: #{generalized_rcnn_forward.14} parent=5 // pred_check
      _
    $region10: #{generalized_rcnn_forward.14} parent=5 // pred_check_branch
      %160 = sbr.rel (%p157) target = $region12
    $region11: #{generalized_rcnn_forward.14} parent=5 // pred_region
      %s161 = ssub.s32 %s11, 1
      // Predicated region
      $region13: #{generalized_rcnn_forward.14} parent=11 // pred_check
        %p162 = pneg %p58
      $region14: #{generalized_rcnn_forward.14} parent=11 // pred_check_branch
        %164 = sbr.rel (%p162) target = $region16
      $region15: #{generalized_rcnn_forward.14} parent=11 // pred_region
        _
      $region16: #{generalized_rcnn_forward.14} parent=11 // pred_fallthru
        _
      // Predicated region
      $region17: #{generalized_rcnn_forward.14} parent=11 // pred_check
        %p165 = pneg %p79
      $region18: #{generalized_rcnn_forward.14} parent=11 // pred_check_branch
        %167 = sbr.rel (%p165) target = $region20
      $region19: #{generalized_rcnn_forward.14} parent=11 // pred_region
        _
      $region20: #{generalized_rcnn_forward.14} parent=11 // pred_fallthru
        _
      // Predicated region
      $region21: #{generalized_rcnn_forward.14} parent=11 // pred_check
        %p168 = pneg %p100
      $region22: #{generalized_rcnn_forward.14} parent=11 // pred_check_branch
        %170 = sbr.rel (%p168) target = $region24
      $region23: #{generalized_rcnn_forward.14} parent=11 // pred_region
        _
      $region24: #{generalized_rcnn_forward.14} parent=11 // pred_fallthru
        _
      // Predicated region
      $region25: #{generalized_rcnn_forward.14} parent=11 // pred_check
        %p171 = pneg %p121
      $region26: #{generalized_rcnn_forward.14} parent=11 // pred_check_branch
        %173 = sbr.rel (%p171) target = $region28
      $region27: #{generalized_rcnn_forward.14} parent=11 // pred_region
        _
      $region28: #{generalized_rcnn_forward.14} parent=11 // pred_fallthru
        _
    $region12: #{generalized_rcnn_forward.14} parent=5 // pred_fallthru
      _
    %p174 = scmp.lt.s32.totalorder %s11, 2
    // Predicated region
    $region29: #{generalized_rcnn_forward.14} parent=5 // pred_check
      %p175 = pneg %p174
    $region30: #{generalized_rcnn_forward.14} parent=5 // pred_check_branch
      %177 = sbr.rel (%p175) target = $region32
    $region31: #{generalized_rcnn_forward.14} parent=5 // pred_region
      // Predicated region
      $region33: #{generalized_rcnn_forward.14} parent=31 // pred_check
        %p178 = pneg %p31
      $region34: #{generalized_rcnn_forward.14} parent=31 // pred_check_branch
        %180 = sbr.rel (%p178) target = $region36
      $region35: #{generalized_rcnn_forward.14} parent=31 // pred_region
        %p181 = scmp.lt.s32.totalorder %s11, 1
        %s182 = scalar_select %p181, %s11, 1
        %s183 = smul.addr %s182, 108
        %s184 = smul.addr %s183, 4
        %s185 = scalar_lea.vmem %s0, %s184
      $region36: #{generalized_rcnn_forward.14} parent=31 // pred_fallthru
        _
    $region32: #{generalized_rcnn_forward.14} parent=5 // pred_fallthru
      _
    %p186 = scmp.le.s32.totalorder 1, %s11
    %p187 = scmp.lt.s32.totalorder %s11, 3
    %p188 = pnand %p186, %p187
    %p189 = pneg %p188
    // Predicated region
    $region37: #{generalized_rcnn_forward.14} parent=5 // pred_check
      _
    $region38: #{generalized_rcnn_forward.14} parent=5 // pred_check_branch
      %191 = sbr.rel (%p188) target = $region40
    $region39: #{generalized_rcnn_forward.14} parent=5 // pred_region
      %s192 = ssub.s32 %s11, 1
      %p193 = scmp.lt.s32.totalorder %s16, 1
      %s194 = scalar_select %p193, %s16, 1
      %s195 = smul.addr %s194, 108
      %s196 = smul.addr %s195, 4
      %s197 = scalar_lea.vmem %s0, %s196
      %p198 = pneg %p37
      %p199 = pneg %p34
      %p200 = pneg %p58
      %p201 = pneg %p55
      %p202 = pneg %p79
      %p203 = pneg %p76
      %p204 = pneg %p100
      %p205 = pneg %p97
      %p206 = pneg %p121
      %p207 = pneg %p118
      %p208 = pneg %p147
      %p209 = pneg %p144
      %p210 = scmp.lt.s32.totalorder %s16, 1
      %s211 = scalar_select %p210, %s16, 1
      %s212 = smul.addr %s211, 6
      %s213 = smul.addr %s212, 8
      %s214 = scalar_lea.vmem %s5, %s213
      %p215 = scmp.lt.s32.totalorder %s16, 1
      %s216 = scalar_select %p215, %s16, 1
      %s217 = smul.addr %s216, 108
      %s218 = smul.addr %s217, 4
      %s219 = scalar_lea.vmem %s0, %s218
      %p220 = scmp.lt.s32.totalorder %s16, 1
      %s221 = scalar_select %p220, %s16, 1
      %s222 = smul.addr %s221, 6
      %s223 = smul.addr %s222, 8
      %s224 = scalar_lea.vmem %s5, %s223
      %v226 = vld [vmem:[%s1] sm:$0xff]
      %v227 = vld [vmem:[%s1 + $0x8] sm:$0xf]
      %v228 = vld [vmem:[%s1 + $0xc] sm:$0xff]
      %v229 = vld [vmem:[%s1 + $0x14] sm:$0xf]
      %v230 = vld [vmem:[%s1 + $0x18] sm:$0xff]
      %v231 = vld [vmem:[%s1 + $0x20] sm:$0xf]
      %v232 = vld [vmem:[%s1 + $0x24] sm:$0xff]
      %v233 = vld [vmem:[%s1 + $0x2c] sm:$0xf]
      %v234 = vld [vmem:[%s219] sm:$0xff]
      %v235 = vld [vmem:[%s219 + $0x8] sm:$0xf]
      %v236 = vld [vmem:[%s219 + $0xc] sm:$0xff]
      %v237 = vld [vmem:[%s219 + $0x14] sm:$0xf]
      %v238 = vld [vmem:[%s219 + $0x18] sm:$0xff]
      %v239 = vld [vmem:[%s219 + $0x20] sm:$0xf]
      %v240 = vld [vmem:[%s219 + $0x24] sm:$0xff]
      %v241 = vld [vmem:[%s219 + $0x2c] sm:$0xf]
      %v242 = vld [vmem:[%s219 + $0x30] sm:$0xff]
      %v243 = vld [vmem:[%s219 + $0x38] sm:$0xf]
      %v244 = vld [vmem:[%s219 + $0x3c] sm:$0xff]
      %v245 = vld [vmem:[%s219 + $0x44] sm:$0xf]
      %v246 = vld [vmem:[%s219 + $0x48] sm:$0xff]
      %v247 = vld [vmem:[%s219 + $0x50] sm:$0xf]
      %v248 = vld [vmem:[%s219 + $0x54] sm:$0xff]
      %v249 = vld [vmem:[%s219 + $0x5c] sm:$0xf]
      %v250 = vld [vmem:[%s219 + $0x60] sm:$0xff]
      %v251 = vld [vmem:[%s219 + $0x68] sm:$0xf]
      %v252 = vld [vmem:[%s219 + $0x6c] sm:$0xff]
      %v253 = vld [vmem:[%s219 + $0x74] sm:$0xf]
      %v254 = vld [vmem:[%s219 + $0x78] sm:$0xff]
      %v255 = vld [vmem:[%s219 + $0x80] sm:$0xf]
      %v256 = vld [vmem:[%s219 + $0x84] sm:$0xff]
      %v257 = vld [vmem:[%s219 + $0x8c] sm:$0xf]
      %v258 = vld [vmem:[%s219 + $0x90] sm:$0xff]
      %v259 = vld [vmem:[%s219 + $0x98] sm:$0xf]
      %v260 = vld [vmem:[%s219 + $0x9c] sm:$0xff]
      %v261 = vld [vmem:[%s219 + $0xa4] sm:$0xf]
      %v262 = vld [vmem:[%s219 + $0xa8] sm:$0xff]
      %v263 = vld [vmem:[%s219 + $0xb0] sm:$0xf]
      %v264 = vld [vmem:[%s219 + $0xb4] sm:$0xff]
      %v265 = vld [vmem:[%s219 + $0xbc] sm:$0xf]
      %v266 = vld [vmem:[%s219 + $0xc0] sm:$0xff]
      %v267 = vld [vmem:[%s219 + $0xc8] sm:$0xf]
      %v268 = vld [vmem:[%s219 + $0xcc] sm:$0xff]
      %v269 = vld [vmem:[%s219 + $0xd4] sm:$0xf]
      %v270 = vld [vmem:[%s219 + $0xd8] sm:$0xff]
      %v271 = vld [vmem:[%s219 + $0xe0] sm:$0xf]
      %v272 = vld [vmem:[%s219 + $0xe4] sm:$0xff]
      %v273 = vld [vmem:[%s219 + $0xec] sm:$0xf]
      %v274 = vld [vmem:[%s219 + $0xf0] sm:$0xff]
      %v275 = vld [vmem:[%s219 + $0xf8] sm:$0xf]
      %v276 = vld [vmem:[%s219 + $0xfc] sm:$0xff]
      %v277 = vld [vmem:[%s219 + $0x104] sm:$0xf]
      %v278 = vld [vmem:[%s219 + $0x108] sm:$0xff]
      %v279 = vld [vmem:[%s219 + $0x110] sm:$0xf]
      %v280 = vld [vmem:[%s219 + $0x114] sm:$0xff]
      %v281 = vld [vmem:[%s219 + $0x11c] sm:$0xf]
      %v282 = vld [vmem:[%s219 + $0x120] sm:$0xff]
      %v283 = vld [vmem:[%s219 + $0x128] sm:$0xf]
      %v284 = vld [vmem:[%s219 + $0x12c] sm:$0xff]
      %v285 = vld [vmem:[%s219 + $0x134] sm:$0xf]
      %v286 = vld [vmem:[%s219 + $0x138] sm:$0xff]
      %v287 = vld [vmem:[%s219 + $0x140] sm:$0xf]
      %v288 = vld [vmem:[%s219 + $0x144] sm:$0xff]
      %v289 = vld [vmem:[%s219 + $0x14c] sm:$0xf]
      %v290 = vld [vmem:[%s219 + $0x150] sm:$0xff]
      %v291 = vld [vmem:[%s219 + $0x158] sm:$0xf]
      %v292 = vld [vmem:[%s219 + $0x15c] sm:$0xff]
      %v293 = vld [vmem:[%s219 + $0x164] sm:$0xf]
      %v294 = vld [vmem:[%s219 + $0x168] sm:$0xff]
      %v295 = vld [vmem:[%s219 + $0x170] sm:$0xf]
      %v296 = vld [vmem:[%s219 + $0x174] sm:$0xff]
      %v297 = vld [vmem:[%s219 + $0x17c] sm:$0xf]
      %v298 = vld [vmem:[%s219 + $0x180] sm:$0xff]
      %v299 = vld [vmem:[%s219 + $0x188] sm:$0xf]
      %v300 = vld [vmem:[%s219 + $0x18c] sm:$0xff]
      %v301 = vld [vmem:[%s219 + $0x194] sm:$0xf]
      %v302 = vld [vmem:[%s219 + $0x198] sm:$0xff]
      %v303 = vld [vmem:[%s219 + $0x1a0] sm:$0xf]
      %v304 = vld [vmem:[%s219 + $0x1a4] sm:$0xff]
      %v305 = vld [vmem:[%s219 + $0x1ac] sm:$0xf]
      %v306 = vld [vmem:[%s2] sm:$0xff]
      %v307 = vld [vmem:[%s2 + $0x8] sm:$0xff]
      %v308 = vld [vmem:[%s2 + $0x10] sm:$0xff]
      %v309 = vld [vmem:[%s2 + $0x18] sm:$0xff]
      %311 = vset.pattern.permute.xlu0 0
      %312 = vperm.xlu0 %311, %v306
      %v313 = vpop.permute.xlu0 %312
      %316 = vset.pattern.permute.xlu0 0
      %317 = vperm.xlu0 %316, %v307
      %v318 = vpop.permute.xlu0 %317
      %321 = vset.pattern.permute.xlu0 0
      %322 = vperm.xlu0 %321, %v308
      %v323 = vpop.permute.xlu0 %322
      %326 = vset.pattern.permute.xlu0 0
      %327 = vperm.xlu0 %326, %v309
      %v328 = vpop.permute.xlu0 %327
      %v338 = vunpack.c.l.b16 %v226
      %v339 = vunpack.c.h.b16 %v226
      %v340 = vunpack.c.l.b16 %v227
      %v341 = vunpack.c.l.b16 %v228
      %v342 = vunpack.c.h.b16 %v228
      %v343 = vunpack.c.l.b16 %v229
      %v344 = vunpack.c.l.b16 %v230
      %v345 = vunpack.c.h.b16 %v230
      %v346 = vunpack.c.l.b16 %v231
      %v347 = vunpack.c.l.b16 %v232
      %v348 = vunpack.c.h.b16 %v232
      %v349 = vunpack.c.l.b16 %v233
      %v350 = vpack.c.b16 %v341, %v338
      %v351 = vpack.c.b16 %v342, %v339
      %v352 = vpack.c.b16 %v343, %v340
      %v353 = vpack.c.b16 %v347, %v344
      %v354 = vpack.c.b16 %v348, %v345
      %v355 = vpack.c.b16 %v349, %v346
      %v432 = vunpack.c.l.b16 %v234
      %v433 = vunpack.c.h.b16 %v234
      %v434 = vunpack.c.l.b16 %v235
      %v435 = vunpack.c.l.b16 %v236
      %v436 = vunpack.c.h.b16 %v236
      %v437 = vunpack.c.l.b16 %v237
      %v438 = vunpack.c.l.b16 %v238
      %v439 = vunpack.c.h.b16 %v238
      %v440 = vunpack.c.l.b16 %v239
      %v441 = vunpack.c.l.b16 %v240
      %v442 = vunpack.c.h.b16 %v240
      %v443 = vunpack.c.l.b16 %v241
      %v444 = vunpack.c.l.b16 %v242
      %v445 = vunpack.c.h.b16 %v242
      %v446 = vunpack.c.l.b16 %v243
      %v447 = vunpack.c.l.b16 %v244
      %v448 = vunpack.c.h.b16 %v244
      %v449 = vunpack.c.l.b16 %v245
      %v450 = vunpack.c.l.b16 %v246
      %v451 = vunpack.c.h.b16 %v246
      %v452 = vunpack.c.l.b16 %v247
      %v453 = vunpack.c.l.b16 %v248
      %v454 = vunpack.c.h.b16 %v248
      %v455 = vunpack.c.l.b16 %v249
      %v456 = vunpack.c.l.b16 %v250
      %v457 = vunpack.c.h.b16 %v250
      %v458 = vunpack.c.l.b16 %v251
      %v459 = vunpack.c.l.b16 %v252
      %v460 = vunpack.c.h.b16 %v252
      %v461 = vunpack.c.l.b16 %v253
      %v462 = vunpack.c.l.b16 %v254
      %v463 = vunpack.c.h.b16 %v254
      %v464 = vunpack.c.l.b16 %v255
      %v465 = vunpack.c.l.b16 %v256
      %v466 = vunpack.c.h.b16 %v256
      %v467 = vunpack.c.l.b16 %v257
      %v468 = vunpack.c.l.b16 %v258
      %v469 = vunpack.c.h.b16 %v258
      %v470 = vunpack.c.l.b16 %v259
      %v471 = vunpack.c.l.b16 %v260
      %v472 = vunpack.c.h.b16 %v260
      %v473 = vunpack.c.l.b16 %v261
      %v474 = vunpack.c.l.b16 %v262
      %v475 = vunpack.c.h.b16 %v262
      %v476 = vunpack.c.l.b16 %v263
      %v477 = vunpack.c.l.b16 %v264
      %v478 = vunpack.c.h.b16 %v264
      %v479 = vunpack.c.l.b16 %v265
      %v480 = vunpack.c.l.b16 %v266
      %v481 = vunpack.c.h.b16 %v266
      %v482 = vunpack.c.l.b16 %v267
      %v483 = vunpack.c.l.b16 %v268
      %v484 = vunpack.c.h.b16 %v268
      %v485 = vunpack.c.l.b16 %v269
      %v486 = vunpack.c.l.b16 %v270
      %v487 = vunpack.c.h.b16 %v270
      %v488 = vunpack.c.l.b16 %v271
      %v489 = vunpack.c.l.b16 %v272
      %v490 = vunpack.c.h.b16 %v272
      %v491 = vunpack.c.l.b16 %v273
      %v492 = vunpack.c.l.b16 %v274
      %v493 = vunpack.c.h.b16 %v274
      %v494 = vunpack.c.l.b16 %v275
      %v495 = vunpack.c.l.b16 %v276
      %v496 = vunpack.c.h.b16 %v276
      %v497 = vunpack.c.l.b16 %v277
      %v498 = vunpack.c.l.b16 %v278
      %v499 = vunpack.c.h.b16 %v278
      %v500 = vunpack.c.l.b16 %v279
      %v501 = vunpack.c.l.b16 %v280
      %v502 = vunpack.c.h.b16 %v280
      %v503 = vunpack.c.l.b16 %v281
      %v504 = vunpack.c.l.b16 %v282
      %v505 = vunpack.c.h.b16 %v282
      %v506 = vunpack.c.l.b16 %v283
      %v507 = vunpack.c.l.b16 %v284
      %v508 = vunpack.c.h.b16 %v284
      %v509 = vunpack.c.l.b16 %v285
      %v510 = vunpack.c.l.b16 %v286
      %v511 = vunpack.c.h.b16 %v286
      %v512 = vunpack.c.l.b16 %v287
      %v513 = vunpack.c.l.b16 %v288
      %v514 = vunpack.c.h.b16 %v288
      %v515 = vunpack.c.l.b16 %v289
      %v516 = vunpack.c.l.b16 %v290
      %v517 = vunpack.c.h.b16 %v290
      %v518 = vunpack.c.l.b16 %v291
      %v519 = vunpack.c.l.b16 %v292
      %v520 = vunpack.c.h.b16 %v292
      %v521 = vunpack.c.l.b16 %v293
      %v522 = vunpack.c.l.b16 %v294
      %v523 = vunpack.c.h.b16 %v294
      %v524 = vunpack.c.l.b16 %v295
      %v525 = vunpack.c.l.b16 %v296
      %v526 = vunpack.c.h.b16 %v296
      %v527 = vunpack.c.l.b16 %v297
      %v528 = vunpack.c.l.b16 %v298
      %v529 = vunpack.c.h.b16 %v298
      %v530 = vunpack.c.l.b16 %v299
      %v531 = vunpack.c.l.b16 %v300
      %v532 = vunpack.c.h.b16 %v300
      %v533 = vunpack.c.l.b16 %v301
      %v534 = vunpack.c.l.b16 %v302
      %v535 = vunpack.c.h.b16 %v302
      %v536 = vunpack.c.l.b16 %v303
      %v537 = vunpack.c.l.b16 %v304
      %v538 = vunpack.c.h.b16 %v304
      %v539 = vunpack.c.l.b16 %v305
      %v540 = vpack.c.b16 %v435, %v432
      %v541 = vpack.c.b16 %v436, %v433
      %v542 = vpack.c.b16 %v437, %v434
      %v543 = vpack.c.b16 %v441, %v438
      %v544 = vpack.c.b16 %v442, %v439
      %v545 = vpack.c.b16 %v443, %v440
      %v546 = vpack.c.b16 %v447, %v444
      %v547 = vpack.c.b16 %v448, %v445
      %v548 = vpack.c.b16 %v449, %v446
      %v549 = vpack.c.b16 %v453, %v450
      %v550 = vpack.c.b16 %v454, %v451
      %v551 = vpack.c.b16 %v455, %v452
      %v552 = vpack.c.b16 %v459, %v456
      %v553 = vpack.c.b16 %v460, %v457
      %v554 = vpack.c.b16 %v461, %v458
      %v555 = vpack.c.b16 %v465, %v462
      %v556 = vpack.c.b16 %v466, %v463
      %v557 = vpack.c.b16 %v467, %v464
      %v558 = vpack.c.b16 %v471, %v468
      %v559 = vpack.c.b16 %v472, %v469
      %v560 = vpack.c.b16 %v473, %v470
      %v561 = vpack.c.b16 %v477, %v474
      %v562 = vpack.c.b16 %v478, %v475
      %v563 = vpack.c.b16 %v479, %v476
      %v564 = vpack.c.b16 %v483, %v480
      %v565 = vpack.c.b16 %v484, %v481
      %v566 = vpack.c.b16 %v485, %v482
      %v567 = vpack.c.b16 %v489, %v486
      %v568 = vpack.c.b16 %v490, %v487
      %v569 = vpack.c.b16 %v491, %v488
      %v570 = vpack.c.b16 %v495, %v492
      %v571 = vpack.c.b16 %v496, %v493
      %v572 = vpack.c.b16 %v497, %v494
      %v573 = vpack.c.b16 %v501, %v498
      %v574 = vpack.c.b16 %v502, %v499
      %v575 = vpack.c.b16 %v503, %v500
      %v576 = vpack.c.b16 %v507, %v504
      %v577 = vpack.c.b16 %v508, %v505
      %v578 = vpack.c.b16 %v509, %v506
      %v579 = vpack.c.b16 %v513, %v510
      %v580 = vpack.c.b16 %v514, %v511
      %v581 = vpack.c.b16 %v515, %v512
      %v582 = vpack.c.b16 %v519, %v516
      %v583 = vpack.c.b16 %v520, %v517
      %v584 = vpack.c.b16 %v521, %v518
      %v585 = vpack.c.b16 %v525, %v522
      %v586 = vpack.c.b16 %v526, %v523
      %v587 = vpack.c.b16 %v527, %v524
      %v588 = vpack.c.b16 %v531, %v528
      %v589 = vpack.c.b16 %v532, %v529
      %v590 = vpack.c.b16 %v533, %v530
      %v591 = vpack.c.b16 %v537, %v534
      %v592 = vpack.c.b16 %v538, %v535
      %v593 = vpack.c.b16 %v539, %v536
      %vm648 = vcmask 261120
      %v650 = vsel %vm648, %v352, 0
      %v653 = vsel %vm648, %v355, 0
      %655 = vmatprep.subr.bf16.mxu0 %v541
      %656 = vmatpush1.bf16.msra.mxu0 %v540
      %657 = vmatprep.subr.bf16.mxu0 %v544
      %658 = vmatpush1.bf16.msra.mxu0 %v543
      %659 = vmatprep.subr.bf16.mxu0 %v547
      %660 = vmatpush1.bf16.msra.mxu0 %v546
      %661 = vmatprep.subr.bf16.mxu0 %v550
      %662 = vmatpush1.bf16.msra.mxu0 %v549
      %663 = vmatprep.subr.bf16.mxu0 %v553
      %664 = vmatpush1.bf16.msra.mxu0 %v552
      %665 = vmatprep.subr.bf16.mxu0 %v556
      %666 = vmatpush1.bf16.msra.mxu0 %v555
      %667 = vmatprep.subr.bf16.mxu0 %v559
      %668 = vmatpush1.bf16.msra.mxu0 %v558
      %669 = vmatprep.subr.bf16.mxu0 %v562
      %670 = vmatpush1.bf16.msra.mxu0 %v561
      %671 = vmatprep.subr.bf16.mxu0 %v565
      %672 = vmatpush1.bf16.msra.mxu0 %v564
      %673 = vmatprep.subr.bf16.mxu0 %v568
      %674 = vmatpush1.bf16.msra.mxu0 %v567
      %675 = vmatprep.subr.bf16.mxu0 %v571
      %676 = vmatpush1.bf16.msra.mxu0 %v570
      %677 = vmatprep.subr.bf16.mxu0 %v574
      %678 = vmatpush1.bf16.msra.mxu0 %v573
      %679 = vmatprep.subr.bf16.mxu0 %v577
      %680 = vmatpush1.bf16.msra.mxu0 %v576
      %681 = vmatprep.subr.bf16.mxu0 %v580
      %682 = vmatpush1.bf16.msra.mxu0 %v579
      %683 = vmatprep.subr.bf16.mxu0 %v583
      %684 = vmatpush1.bf16.msra.mxu0 %v582
      %685 = vmatprep.subr.bf16.mxu0 %v586
      %686 = vmatpush1.bf16.msra.mxu0 %v585
      %687 = vmatprep.mubr.bf16.mxu0 %v351
      %688 = vmatmul.mubr.bf16.gmra.mrb[0].mxu0 %v350
      %v689 = vpop.f32.mrb[0].mxu0
      %v690 = vadd.f32 %v313, %v689
      %v691 = vpop.f32.mrb[0].mxu0
      %v692 = vadd.f32 %v313, %v691
      %v693 = vpop.f32.mrb[0].mxu0
      %v694 = vadd.f32 %v318, %v693
      %v695 = vpop.f32.mrb[0].mxu0
      %v696 = vadd.f32 %v318, %v695
      %697 = vmatprep.mubr.bf16.mxu0 %v354
      %698 = vmatmul.mubr.bf16.gmra.mrb[0].mxu0 %v353
      %v699 = vpop.f32.mrb[0].mxu0
      %v700 = vadd.f32 %v323, %v699
      %v701 = vpop.f32.mrb[0].mxu0
      %v702 = vadd.f32 %v323, %v701
      %v703 = vpop.f32.mrb[0].mxu0
      %v704 = vadd.f32 %v328, %v703
      %v705 = vpop.f32.mrb[0].mxu0
      %v706 = vadd.f32 %v328, %v705
      %707 = vdwg.mxu0
      %708 = vmatprep.subr.bf16.mxu0 %v589
      %709 = vmatpush1.bf16.msra.mxu0 %v588
      %710 = vmatprep.subr.bf16.mxu0 %v592
      %711 = vmatpush1.bf16.msra.mxu0 %v591
      %712 = vmatprep.subr.bf16.mxu0 0
      %713 = vmatpush1.bf16.msra.mxu0 0
      %714 = vmatprep.subr.bf16.mxu0 0
      %715 = vmatpush1.bf16.msra.mxu0 0
      %716 = vmatprep.subr.bf16.mxu0 0
      %717 = vmatpush1.bf16.msra.mxu0 0
      %718 = vmatprep.subr.bf16.mxu0 0
      %719 = vmatpush1.bf16.msra.mxu0 0
      %720 = vmatprep.subr.bf16.mxu0 0
      %721 = vmatpush1.bf16.msra.mxu0 0
      %722 = vmatprep.subr.bf16.mxu0 0
      %723 = vmatpush1.bf16.msra.mxu0 0
      %724 = vmatprep.subr.bf16.mxu0 0
      %725 = vmatpush1.bf16.msra.mxu0 0
      %726 = vmatprep.subr.bf16.mxu0 0
      %727 = vmatpush1.bf16.msra.mxu0 0
      %728 = vmatprep.subr.bf16.mxu0 0
      %729 = vmatpush1.bf16.msra.mxu0 0
      %730 = vmatprep.subr.bf16.mxu0 0
      %731 = vmatpush1.bf16.msra.mxu0 0
      %732 = vmatprep.subr.bf16.mxu0 0
      %733 = vmatpush1.bf16.msra.mxu0 0
      %734 = vmatprep.subr.bf16.mxu0 0
      %735 = vmatpush1.bf16.msra.mxu0 0
      %736 = vmatprep.subr.bf16.mxu0 0
      %737 = vmatpush1.bf16.msra.mxu0 0
      %738 = vmatprep.subr.bf16.mxu0 0
      %739 = vmatpush1.bf16.msra.mxu0 0
      %740 = vmatprep.mubr.bf16.mxu0 0
      %741 = vmatmul.mubr.bf16.gmra.mrb[0].mxu0 %v650
      %v742 = vpop.f32.mrb[0].mxu0
      %v743 = vadd.f32 %v690, %v742
      %v744 = vpop.f32.mrb[0].mxu0
      %v745 = vadd.f32 %v692, %v744
      %v746 = vpop.f32.mrb[0].mxu0
      %v747 = vadd.f32 %v694, %v746
      %v748 = vpop.f32.mrb[0].mxu0
      %v749 = vadd.f32 %v696, %v748
      %750 = vmatprep.mubr.bf16.mxu0 0
      %751 = vmatmul.mubr.bf16.gmra.mrb[0].mxu0 %v653
      %v752 = vpop.f32.mrb[0].mxu0
      %v753 = vadd.f32 %v700, %v752
      %v754 = vpop.f32.mrb[0].mxu0
      %v755 = vadd.f32 %v702, %v754
      %v756 = vpop.f32.mrb[0].mxu0
      %v757 = vadd.f32 %v704, %v756
      %v758 = vpop.f32.mrb[0].mxu0
      %v759 = vadd.f32 %v706, %v758
      %760 = vdwg.mxu0
      %761 = vmatprep.subr.bf16.mxu0 0
      %762 = vmatpush1.bf16.msra.mxu0 %v542
      %763 = vmatprep.subr.bf16.mxu0 0
      %764 = vmatpush1.bf16.msra.mxu0 %v545
      %765 = vmatprep.subr.bf16.mxu0 0
      %766 = vmatpush1.bf16.msra.mxu0 %v548
      %767 = vmatprep.subr.bf16.mxu0 0
      %768 = vmatpush1.bf16.msra.mxu0 %v551
      %769 = vmatprep.subr.bf16.mxu0 0
      %770 = vmatpush1.bf16.msra.mxu0 %v554
      %771 = vmatprep.subr.bf16.mxu0 0
      %772 = vmatpush1.bf16.msra.mxu0 %v557
      %773 = vmatprep.subr.bf16.mxu0 0
      %774 = vmatpush1.bf16.msra.mxu0 %v560
      %775 = vmatprep.subr.bf16.mxu0 0
      %776 = vmatpush1.bf16.msra.mxu0 %v563
      %777 = vmatprep.subr.bf16.mxu0 0
      %778 = vmatpush1.bf16.msra.mxu0 %v566
      %779 = vmatprep.subr.bf16.mxu0 0
      %780 = vmatpush1.bf16.msra.mxu0 %v569
      %781 = vmatprep.subr.bf16.mxu0 0
      %782 = vmatpush1.bf16.msra.mxu0 %v572
      %783 = vmatprep.subr.bf16.mxu0 0
      %784 = vmatpush1.bf16.msra.mxu0 %v575
      %785 = vmatprep.subr.bf16.mxu0 0
      %786 = vmatpush1.bf16.msra.mxu0 %v578
      %787 = vmatprep.subr.bf16.mxu0 0
      %788 = vmatpush1.bf16.msra.mxu0 %v581
      %789 = vmatprep.subr.bf16.mxu0 0
      %790 = vmatpush1.bf16.msra.mxu0 %v584
      %791 = vmatprep.subr.bf16.mxu0 0
      %792 = vmatpush1.bf16.msra.mxu0 %v587
      %793 = vmatprep.mubr.bf16.mxu0 %v351
      %794 = vmatmul.mubr.bf16.gmra.mrb[0].mxu0 %v350
      %v795 = vpop.f32.mrb[0].mxu0
      %v796 = vadd.f32 %v313, %v795
      %v797 = vpop.f32.mrb[0].mxu0
      %v798 = vpop.f32.mrb[0].mxu0
      %v799 = vadd.f32 %v318, %v798
      %v800 = vpop.f32.mrb[0].mxu0
      %801 = vmatprep.mubr.bf16.mxu0 %v354
      %802 = vmatmul.mubr.bf16.gmra.mrb[0].mxu0 %v353
      %v803 = vpop.f32.mrb[0].mxu0
      %v804 = vadd.f32 %v323, %v803
      %v805 = vpop.f32.mrb[0].mxu0
      %v806 = vpop.f32.mrb[0].mxu0
      %v807 = vadd.f32 %v328, %v806
      %v808 = vpop.f32.mrb[0].mxu0
      %809 = vdwg.mxu0
      %810 = vmatprep.subr.bf16.mxu0 0
      %811 = vmatpush1.bf16.msra.mxu0 %v590
      %812 = vmatprep.subr.bf16.mxu0 0
      %813 = vmatpush1.bf16.msra.mxu0 %v593
      %814 = vmatprep.subr.bf16.mxu0 0
      %815 = vmatpush1.bf16.msra.mxu0 0
      %816 = vmatprep.subr.bf16.mxu0 0
      %817 = vmatpush1.bf16.msra.mxu0 0
      %818 = vmatprep.subr.bf16.mxu0 0
      %819 = vmatpush1.bf16.msra.mxu0 0
      %820 = vmatprep.subr.bf16.mxu0 0
      %821 = vmatpush1.bf16.msra.mxu0 0
      %822 = vmatprep.subr.bf16.mxu0 0
      %823 = vmatpush1.bf16.msra.mxu0 0
      %824 = vmatprep.subr.bf16.mxu0 0
      %825 = vmatpush1.bf16.msra.mxu0 0
      %826 = vmatprep.subr.bf16.mxu0 0
      %827 = vmatpush1.bf16.msra.mxu0 0
      %828 = vmatprep.subr.bf16.mxu0 0
      %829 = vmatpush1.bf16.msra.mxu0 0
      %830 = vmatprep.subr.bf16.mxu0 0
      %831 = vmatpush1.bf16.msra.mxu0 0
      %832 = vmatprep.subr.bf16.mxu0 0
      %833 = vmatpush1.bf16.msra.mxu0 0
      %834 = vmatprep.subr.bf16.mxu0 0
      %835 = vmatpush1.bf16.msra.mxu0 0
      %836 = vmatprep.subr.bf16.mxu0 0
      %837 = vmatpush1.bf16.msra.mxu0 0
      %838 = vmatprep.subr.bf16.mxu0 0
      %839 = vmatpush1.bf16.msra.mxu0 0
      %840 = vmatprep.subr.bf16.mxu0 0
      %841 = vmatpush1.bf16.msra.mxu0 0
      %842 = vmatprep.mubr.bf16.mxu0 0
      %843 = vmatmul.mubr.bf16.gmra.mrb[0].mxu0 %v650
      %v844 = vpop.f32.mrb[0].mxu0
      %v845 = vadd.f32 %v796, %v844
      %v846 = vpop.f32.mrb[0].mxu0
      %v847 = vpop.f32.mrb[0].mxu0
      %v848 = vadd.f32 %v799, %v847
      %v849 = vpop.f32.mrb[0].mxu0
      %850 = vmatprep.mubr.bf16.mxu0 0
      %851 = vmatmul.mubr.bf16.gmra.mrb[0].mxu0 %v653
      %v852 = vpop.f32.mrb[0].mxu0
      %v853 = vadd.f32 %v804, %v852
      %v854 = vpop.f32.mrb[0].mxu0
      %v855 = vpop.f32.mrb[0].mxu0
      %v856 = vadd.f32 %v807, %v855
      %v857 = vpop.f32.mrb[0].mxu0
      %858 = vdwg.mxu0
      %v859 = vmax.f32 %v743, 0.0
      %v860 = vmax.f32 %v745, 0.0
      %v861 = vmax.f32 %v845, 0.0
      %v862 = vmax.f32 %v747, 0.0
      %v863 = vmax.f32 %v749, 0.0
      %v864 = vmax.f32 %v848, 0.0
      %v865 = vmax.f32 %v753, 0.0
      %v866 = vmax.f32 %v755, 0.0
      %v867 = vmax.f32 %v853, 0.0
      %v868 = vmax.f32 %v757, 0.0
      %v869 = vmax.f32 %v759, 0.0
      %v870 = vmax.f32 %v856, 0.0
      %v871 = vpack.c.bf16 %v862, %v859
      %v872 = vpack.c.bf16 %v863, %v860
      %v873 = vpack.c.bf16 %v864, %v861
      %v874 = vpack.c.bf16 %v868, %v865
      %v875 = vpack.c.bf16 %v869, %v866
      %v876 = vpack.c.bf16 %v870, %v867
      %v877 = vld [vmem:[%s3] sm:$0xf]
      %v878 = vld [vmem:[%s3 + $0x4] sm:$0xf]
      %v879 = vld [vmem:[%s4] sm:$0xff]
      %v880 = vld [vmem:[%s4 + $0x8] sm:$0xff]
      %882 = vset.pattern.permute.xlu0 0
      %883 = vperm.xlu0 %882, %v879
      %v884 = vpop.permute.xlu0 %883
      %887 = vset.pattern.permute.xlu0 0
      %888 = vperm.xlu0 %887, %v880
      %v889 = vpop.permute.xlu0 %888
      %v893 = vunpack.c.l.b16 %v877
      %v894 = vunpack.c.l.b16 %v878
      %v895 = vpack.c.b16 %v894, %v893
      %v897 = vsel %vm648, %v895, 0
      %899 = vmatprep.subr.bf16.mxu0 %v872
      %900 = vmatpush1.bf16.msra.mxu0 %v871
      %901 = vmatprep.subr.bf16.mxu0 %v875
      %902 = vmatpush1.bf16.msra.mxu0 %v874
      %903 = vmatprep.subr.bf16.mxu0 0
      %904 = vmatpush1.bf16.msra.mxu0 0
      %905 = vmatprep.subr.bf16.mxu0 0
      %906 = vmatpush1.bf16.msra.mxu0 0
      %907 = vmatprep.subr.bf16.mxu0 0
      %908 = vmatpush1.bf16.msra.mxu0 0
      %909 = vmatprep.subr.bf16.mxu0 0
      %910 = vmatpush1.bf16.msra.mxu0 0
      %911 = vmatprep.subr.bf16.mxu0 0
      %912 = vmatpush1.bf16.msra.mxu0 0
      %913 = vmatprep.subr.bf16.mxu0 0
      %914 = vmatpush1.bf16.msra.mxu0 0
      %915 = vmatprep.subr.bf16.mxu0 0
      %916 = vmatpush1.bf16.msra.mxu0 0
      %917 = vmatprep.subr.bf16.mxu0 0
      %918 = vmatpush1.bf16.msra.mxu0 0
      %919 = vmatprep.subr.bf16.mxu0 0
      %920 = vmatpush1.bf16.msra.mxu0 0
      %921 = vmatprep.subr.bf16.mxu0 0
      %922 = vmatpush1.bf16.msra.mxu0 0
      %923 = vmatprep.subr.bf16.mxu0 0
      %924 = vmatpush1.bf16.msra.mxu0 0
      %925 = vmatprep.subr.bf16.mxu0 0
      %926 = vmatpush1.bf16.msra.mxu0 0
      %927 = vmatprep.subr.bf16.mxu0 0
      %928 = vmatpush1.bf16.msra.mxu0 0
      %929 = vmatprep.subr.bf16.mxu0 0
      %930 = vmatpush1.bf16.msra.mxu0 0
      %931 = vmatprep.mubr.bf16.mxu0 0
      %932 = vmatmul.mubr.bf16.gmra.mrb[0].mxu0 %v897
      %v933 = vpop.f32.mrb[0].mxu0
      %v934 = vadd.f32 %v884, %v933
      %v935 = vpop.f32.mrb[0].mxu0
      %v936 = vadd.f32 %v884, %v935
      %v937 = vpop.f32.mrb[0].mxu0
      %v938 = vadd.f32 %v889, %v937
      %v939 = vpop.f32.mrb[0].mxu0
      %v940 = vadd.f32 %v889, %v939
      %941 = vdwg.mxu0
      %942 = vmatprep.subr.bf16.mxu0 0
      %943 = vmatpush1.bf16.msra.mxu0 %v873
      %944 = vmatprep.subr.bf16.mxu0 0
      %945 = vmatpush1.bf16.msra.mxu0 %v876
      %946 = vmatprep.subr.bf16.mxu0 0
      %947 = vmatpush1.bf16.msra.mxu0 0
      %948 = vmatprep.subr.bf16.mxu0 0
      %949 = vmatpush1.bf16.msra.mxu0 0
      %950 = vmatprep.subr.bf16.mxu0 0
      %951 = vmatpush1.bf16.msra.mxu0 0
      %952 = vmatprep.subr.bf16.mxu0 0
      %953 = vmatpush1.bf16.msra.mxu0 0
      %954 = vmatprep.subr.bf16.mxu0 0
      %955 = vmatpush1.bf16.msra.mxu0 0
      %956 = vmatprep.subr.bf16.mxu0 0
      %957 = vmatpush1.bf16.msra.mxu0 0
      %958 = vmatprep.subr.bf16.mxu0 0
      %959 = vmatpush1.bf16.msra.mxu0 0
      %960 = vmatprep.subr.bf16.mxu0 0
      %961 = vmatpush1.bf16.msra.mxu0 0
      %962 = vmatprep.subr.bf16.mxu0 0
      %963 = vmatpush1.bf16.msra.mxu0 0
      %964 = vmatprep.subr.bf16.mxu0 0
      %965 = vmatpush1.bf16.msra.mxu0 0
      %966 = vmatprep.subr.bf16.mxu0 0
      %967 = vmatpush1.bf16.msra.mxu0 0
      %968 = vmatprep.subr.bf16.mxu0 0
      %969 = vmatpush1.bf16.msra.mxu0 0
      %970 = vmatprep.subr.bf16.mxu0 0
      %971 = vmatpush1.bf16.msra.mxu0 0
      %972 = vmatprep.subr.bf16.mxu0 0
      %973 = vmatpush1.bf16.msra.mxu0 0
      %974 = vmatprep.mubr.bf16.mxu0 0
      %975 = vmatmul.mubr.bf16.gmra.mrb[0].mxu0 %v897
      %v976 = vpop.f32.mrb[0].mxu0
      %v977 = vadd.f32 %v884, %v976
      %v978 = vpop.f32.mrb[0].mxu0
      %v979 = vpop.f32.mrb[0].mxu0
      %v980 = vadd.f32 %v889, %v979
      %v981 = vpop.f32.mrb[0].mxu0
      %982 = vdwg.mxu0
      %983 = vst [vmem:[%s224] sm:$0xff] %v934
      %984 = vst [vmem:[%s224 + $0x8] sm:$0xff] %v936
      %vm985 = vcmask 719872
      %986 = vst.msk [vmem:[%s224 + $0x10] sm:$0xff] %vm985, %v977
      %987 = vst [vmem:[%s224 + $0x18] sm:$0xff] %v938
      %988 = vst [vmem:[%s224 + $0x20] sm:$0xff] %v940
      %989 = vst.msk [vmem:[%s224 + $0x28] sm:$0xff] %vm985, %v980
      %p990 = scmp.lt.s32.totalorder %s16, 1
      %s991 = scalar_select %p990, %s16, 1
      %s992 = smul.addr %s991, 6
      %s993 = smul.addr %s992, 8
      %s994 = scalar_lea.vmem %s5, %s993
      // Predicated region
      $region41: #{generalized_rcnn_forward.14} parent=39 // pred_check
        %p995 = pneg %p144
      $region42: #{generalized_rcnn_forward.14} parent=39 // pred_check_branch
        %997 = sbr.rel (%p995) target = $region44
      $region43: #{generalized_rcnn_forward.14} parent=39 // pred_region
        _
      $region44: #{generalized_rcnn_forward.14} parent=39 // pred_fallthru
        _
    $region40: #{generalized_rcnn_forward.14} parent=5 // pred_fallthru
      _
    %p998 = scmp.le.s32.totalorder 2, %s11
    // Predicated region
    $region45: #{generalized_rcnn_forward.14} parent=5 // pred_check
      %p999 = pneg %p998
    $region46: #{generalized_rcnn_forward.14} parent=5 // pred_check_branch
      %1001 = sbr.rel (%p999) target = $region48
    $region47: #{generalized_rcnn_forward.14} parent=5 // pred_region
      %s1002 = ssub.s32 %s11, 2
      // Predicated region
      $region49: #{generalized_rcnn_forward.14} parent=47 // pred_check
        %p1003 = pneg %p150
      $region50: #{generalized_rcnn_forward.14} parent=47 // pred_check_branch
        %1005 = sbr.rel (%p1003) target = $region52
      $region51: #{generalized_rcnn_forward.14} parent=47 // pred_region
        %p1006 = scmp.lt.s32.totalorder %s17, 1
        %s1007 = scalar_select %p1006, %s17, 1
        %s1008 = smul.addr %s1007, 6
        %s1009 = smul.addr %s1008, 8
        %s1010 = scalar_lea.vmem %s5, %s1009
      $region52: #{generalized_rcnn_forward.14} parent=47 // pred_fallthru
        _
    $region48: #{generalized_rcnn_forward.14} parent=5 // pred_fallthru
      _
  $region6: #{generalized_rcnn_forward.14} parent=0 // loop_footer
    %s15 = sadd.s32 1, %s11
  $region7: #{generalized_rcnn_forward.14} parent=0 // loop_footer_branch
    %10 = sbr.rel target = $region3
  $region8: #{generalized_rcnn_forward.14} parent=0 // loop_exit
    _

// kernel: generalized_rcnn_forward.15
$region0: #{generalized_rcnn_forward.15}
  #allocation0 [shape = 'u32[]', space=smem, size = 0x4, offset = 0x4, fixed_abs, tag = 'smem constant byte address 0x4 - core index']
  #allocation1 [shape = 'u32[144,128]{1,0:T(1,128)}', space=vmem, size = 0x12000, scoped, tag = 'internal scratch']
  %s0 = inlined_call_operand.vmem [shape: f32[2,2], index: 0, kind: input, shape index: {}]
  %s1 = inlined_call_operand.vmem [shape: f32[2,8,1024], index: 1, kind: input, shape index: {}]
  %s2 = inlined_call_operand.vmem [shape: f32[2,4,1024], index: 2, kind: output, shape index: {}]
  %s3 = sld [smem:[#allocation0]]
  $region45: #{generalized_rcnn_forward.15} parent=0
    _
  %s5 = ssub.s32 1, %s3
  %s6 = scalar_select 0, %s5, %s3
  $region1: #{generalized_rcnn_forward.15} parent=0
    #allocation2 [shape = 'u8[1024]{0}', space=smem, size = 0x400, scoped, tag = 'input window, operand 0, single buffered']
    #allocation3 [shape = 's32[2]{0}', space=sflag, size = 0x8, scoped, tag = 'scoped memory for generalized_rcnn_forward.15']
    %7 = vsyncpa [#allocation3], 0
    loop: start=0, step=1, limit=4
    $region2: #{generalized_rcnn_forward.15} parent=1 // loop_pre_header
      _
    $region3: #{generalized_rcnn_forward.15} parent=1 // loop_header
      %s9 = sphi 0, %s13
      %p10 = scmp.ge.s32.totalorder %s9, 4
      %s17 = sphi 0, %s17
      %s19 = sphi 0, %s17
      %s20 = sphi 0, %s19
      %s34 = sphi 0, %s20
      %s40 = sphi 0, %s42
      %s43 = sphi 0, %s40
      %s44 = sphi 0, %s43
      %s60 = sphi 0, %s44
      %s66 = sphi 0, %s68
      %s69 = sphi 0, %s66
      %s70 = sphi 0, %s69
      %s86 = sphi 0, %s70
    $region4: #{generalized_rcnn_forward.15} parent=1 // loop_header_branch
      %12 = sbr.rel (%p10) target = $region8
    $region5: #{generalized_rcnn_forward.15} parent=1 // loop_body
      %s14 = ssub.s32 %s9, 1
      %s15 = ssub.s32 %s9, 2
      %s16 = sadd.s32 %s9, 1
      %s18 = sadd.s32 %s17, 1
      %p21 = scmp.eq.s32.totalorder %s9, 1
      %p22 = scmp.ne.s32.totalorder %s17, %s19
      %p23 = scmp.eq.s32.totalorder %s9, 0
      %p24 = por %p22, %p23
      %p25 = scmp.ne.s32.totalorder %s17, %s19
      %p26 = scmp.eq.s32.totalorder %s14, 1
      %p27 = por %p25, %p26
      %p28 = scmp.ne.s32.totalorder %s19, %s20
      %p29 = scmp.eq.s32.totalorder %s14, 0
      %p30 = por %p28, %p29
      %p31 = scmp.ne.s32.totalorder %s19, %s20
      %p32 = scmp.eq.s32.totalorder %s15, 1
      %p33 = por %p31, %p32
      %p35 = scmp.ne.s32.totalorder %s20, %s34
      %p36 = scmp.eq.s32.totalorder %s15, 0
      %p37 = por %p35, %p36
      %s38 = ssub.s32 %s9, %s16
      %p39 = scmp.eq.s32.totalorder %s38, 0
      %s41 = sadd.s32 %s40, 1
      %s42 = scalar_select %p39, %s40, %s41
      %p45 = pneg %p39
      %p46 = scmp.eq.s32.totalorder %s9, 1
      %p47 = por %p45, %p46
      %p48 = scmp.ne.s32.totalorder %s40, %s43
      %p49 = scmp.eq.s32.totalorder %s9, 0
      %p50 = por %p48, %p49
      %p51 = scmp.ne.s32.totalorder %s40, %s43
      %p52 = scmp.eq.s32.totalorder %s14, 1
      %p53 = por %p51, %p52
      %p54 = scmp.ne.s32.totalorder %s43, %s44
      %p55 = scmp.eq.s32.totalorder %s14, 0
      %p56 = por %p54, %p55
      %p57 = scmp.ne.s32.totalorder %s43, %s44
      %p58 = scmp.eq.s32.totalorder %s15, 1
      %p59 = por %p57, %p58
      %p61 = scmp.ne.s32.totalorder %s44, %s60
      %p62 = scmp.eq.s32.totalorder %s15, 0
      %p63 = por %p61, %p62
      %s64 = ssub.s32 %s9, %s16
      %p65 = scmp.eq.s32.totalorder %s64, 0
      %s67 = sadd.s32 %s66, 1
      %s68 = scalar_select %p65, %s66, %s67
      %p71 = pneg %p65
      %p72 = scmp.eq.s32.totalorder %s9, 1
      %p73 = por %p71, %p72
      %p74 = scmp.ne.s32.totalorder %s66, %s69
      %p75 = scmp.eq.s32.totalorder %s9, 0
      %p76 = por %p74, %p75
      %p77 = scmp.ne.s32.totalorder %s66, %s69
      %p78 = scmp.eq.s32.totalorder %s14, 1
      %p79 = por %p77, %p78
      %p80 = scmp.ne.s32.totalorder %s69, %s70
      %p81 = scmp.eq.s32.totalorder %s14, 0
      %p82 = por %p80, %p81
      %p83 = scmp.ne.s32.totalorder %s69, %s70
      %p84 = scmp.eq.s32.totalorder %s15, 1
      %p85 = por %p83, %p84
      %p87 = scmp.ne.s32.totalorder %s70, %s86
      %p88 = scmp.eq.s32.totalorder %s15, 0
      %p89 = por %p87, %p88
      %p90 = scmp.le.s32.totalorder 1, %s9
      %p91 = scmp.lt.s32.totalorder %s9, 3
      %p92 = pnand %p90, %p91
      %p93 = pneg %p92
      // Predicated region
      $region9: #{generalized_rcnn_forward.15} parent=5 // pred_check
        _
      $region10: #{generalized_rcnn_forward.15} parent=5 // pred_check_branch
        %95 = sbr.rel (%p92) target = $region12
      $region11: #{generalized_rcnn_forward.15} parent=5 // pred_region
        %s96 = ssub.s32 %s9, 1
        // Predicated region
        $region13: #{generalized_rcnn_forward.15} parent=11 // pred_check
          %p97 = pneg %p30
        $region14: #{generalized_rcnn_forward.15} parent=11 // pred_check_branch
          %99 = sbr.rel (%p97) target = $region16
        $region15: #{generalized_rcnn_forward.15} parent=11 // pred_region
          %s101 = ssub.s32 32, 32
          %102 = vsyncadd [#allocation3], %s101
          %s104 = sshll.u32 %s0, 4
          %s105 = int_to_ptr.vmem [resolvable:$true] %s104
          %107 = dma.vmem_to_smem %s105, 32, [#allocation2], [#allocation3]
        $region16: #{generalized_rcnn_forward.15} parent=11 // pred_fallthru
          _
      $region12: #{generalized_rcnn_forward.15} parent=5 // pred_fallthru
        _
      %p108 = scmp.lt.s32.totalorder %s9, 2
      // Predicated region
      $region17: #{generalized_rcnn_forward.15} parent=5 // pred_check
        %p109 = pneg %p108
      $region18: #{generalized_rcnn_forward.15} parent=5 // pred_check_branch
        %111 = sbr.rel (%p109) target = $region20
      $region19: #{generalized_rcnn_forward.15} parent=5 // pred_region
        // Predicated region
        $region21: #{generalized_rcnn_forward.15} parent=19 // pred_check
          %p112 = pneg %p50
        $region22: #{generalized_rcnn_forward.15} parent=19 // pred_check_branch
          %114 = sbr.rel (%p112) target = $region24
        $region23: #{generalized_rcnn_forward.15} parent=19 // pred_region
          %p115 = scmp.lt.s32.totalorder %s9, 1
          %s116 = scalar_select %p115, %s9, 1
          %s117 = smul.addr %s116, 8
          %s118 = smul.addr %s117, 8
          %s119 = scalar_lea.vmem %s1, %s118
        $region24: #{generalized_rcnn_forward.15} parent=19 // pred_fallthru
          _
      $region20: #{generalized_rcnn_forward.15} parent=5 // pred_fallthru
        _
      %p120 = scmp.le.s32.totalorder 1, %s9
      %p121 = scmp.lt.s32.totalorder %s9, 3
      %p122 = pnand %p120, %p121
      %p123 = pneg %p122
      // Predicated region
      $region25: #{generalized_rcnn_forward.15} parent=5 // pred_check
        _
      $region26: #{generalized_rcnn_forward.15} parent=5 // pred_check_branch
        %125 = sbr.rel (%p122) target = $region28
      $region27: #{generalized_rcnn_forward.15} parent=5 // pred_region
        %s126 = ssub.s32 %s9, 1
        // Predicated region
        $region29: #{generalized_rcnn_forward.15} parent=27 // pred_check
          %p127 = pneg %p30
        $region30: #{generalized_rcnn_forward.15} parent=27 // pred_check_branch
          %129 = sbr.rel (%p127) target = $region32
        $region31: #{generalized_rcnn_forward.15} parent=27 // pred_region
          %130 = dma.done [#allocation3], 32
        $region32: #{generalized_rcnn_forward.15} parent=27 // pred_fallthru
          _
        %131 = sfence
        %p132 = pneg %p30
        %p133 = pneg %p27
        %p134 = scmp.lt.s32.totalorder %s14, 1
        %s135 = scalar_select %p134, %s14, 1
        %s136 = smul.addr %s135, 8
        %s137 = smul.addr %s136, 8
        %s138 = scalar_lea.vmem %s1, %s137
        %p139 = pneg %p56
        %p140 = pneg %p53
        %p141 = pneg %p82
        %p142 = pneg %p79
        %p143 = scmp.lt.s32.totalorder %s14, 1
        %s144 = scalar_select %p143, %s14, 1
        %s145 = smul.addr %s144, 8
        %s146 = smul.addr %s145, 4
        %s147 = scalar_lea.vmem %s2, %s146
        %p148 = scmp.lt.s32.totalorder %s14, 1
        %s149 = scalar_select %p148, %s14, 1
        %s150 = smul.addr %s149, 8
        %s151 = smul.addr %s150, 8
        %s152 = scalar_lea.vmem %s1, %s151
        %p153 = scmp.lt.s32.totalorder %s14, 1
        %s154 = scalar_select %p153, %s14, 1
        %s155 = smul.addr %s154, 8
        %s156 = smul.addr %s155, 4
        %s157 = scalar_lea.vmem %s2, %s156
        %v158 = vld [vmem:[%s152] sm:$0xff]
        %v159 = vld [vmem:[%s152 + $0x8] sm:$0xff]
        %v160 = vld [vmem:[%s152 + $0x10] sm:$0xff]
        %v161 = vld [vmem:[%s152 + $0x18] sm:$0xff]
        %v162 = vld [vmem:[%s152 + $0x20] sm:$0xff]
        %v163 = vld [vmem:[%s152 + $0x28] sm:$0xff]
        %v164 = vld [vmem:[%s152 + $0x30] sm:$0xff]
        %v165 = vld [vmem:[%s152 + $0x38] sm:$0xff]
        %v174 = vrot.slane %v158, 6
        %v175 = vrot.slane %v159, 6
        %v176 = vrot.slane %v160, 6
        %v177 = vrot.slane %v161, 6
        %v178 = vrot.slane %v162, 6
        %v179 = vrot.slane %v163, 6
        %v180 = vrot.slane %v164, 6
        %v181 = vrot.slane %v165, 6
        %v190 = vsub.f32 %v158, %v174
        %v191 = vsub.f32 %v159, %v175
        %v192 = vsub.f32 %v160, %v176
        %v193 = vsub.f32 %v161, %v177
        %v194 = vsub.f32 %v162, %v178
        %v195 = vsub.f32 %v163, %v179
        %v196 = vsub.f32 %v164, %v180
        %v197 = vsub.f32 %v165, %v181
        %v198 = vadd.f32 %v190, 1.0
        %v199 = vadd.f32 %v191, 1.0
        %v200 = vadd.f32 %v192, 1.0
        %v201 = vadd.f32 %v193, 1.0
        %v202 = vadd.f32 %v194, 1.0
        %v203 = vadd.f32 %v195, 1.0
        %v204 = vadd.f32 %v196, 1.0
        %v205 = vadd.f32 %v197, 1.0
        %v206 = vmul.f32 %v198, 0.5
        %v207 = vmul.f32 %v199, 0.5
        %v208 = vmul.f32 %v200, 0.5
        %v209 = vmul.f32 %v201, 0.5
        %v210 = vmul.f32 %v202, 0.5
        %v211 = vmul.f32 %v203, 0.5
        %v212 = vmul.f32 %v204, 0.5
        %v213 = vmul.f32 %v205, 0.5
        %v222 = vrot.slane %v206, 2
        %v223 = vrot.slane %v207, 2
        %v224 = vrot.slane %v208, 2
        %v225 = vrot.slane %v209, 2
        %v226 = vrot.slane %v210, 2
        %v227 = vrot.slane %v211, 2
        %v228 = vrot.slane %v212, 2
        %v229 = vrot.slane %v213, 2
        %v238 = vadd.f32 %v158, %v222
        %v239 = vadd.f32 %v159, %v223
        %v240 = vadd.f32 %v160, %v224
        %v241 = vadd.f32 %v161, %v225
        %v242 = vadd.f32 %v162, %v226
        %v243 = vadd.f32 %v163, %v227
        %v244 = vadd.f32 %v164, %v228
        %v245 = vadd.f32 %v165, %v229
        %v246 = vmin.f32 %v158, 4.1351666
        %v247 = vmin.f32 %v159, 4.1351666
        %v248 = vmin.f32 %v160, 4.1351666
        %v249 = vmin.f32 %v161, 4.1351666
        %v250 = vmin.f32 %v162, 4.1351666
        %v251 = vmin.f32 %v163, 4.1351666
        %v252 = vmin.f32 %v164, 4.1351666
        %v253 = vmin.f32 %v165, 4.1351666
        %v262 = vrot.slane %v198, 6
        %v263 = vrot.slane %v199, 6
        %v264 = vrot.slane %v200, 6
        %v265 = vrot.slane %v201, 6
        %v266 = vrot.slane %v202, 6
        %v267 = vrot.slane %v203, 6
        %v268 = vrot.slane %v204, 6
        %v269 = vrot.slane %v205, 6
        %v278 = vmul.f32 %v158, %v262
        %v279 = vmul.f32 %v159, %v263
        %v280 = vmul.f32 %v160, %v264
        %v281 = vmul.f32 %v161, %v265
        %v282 = vmul.f32 %v162, %v266
        %v283 = vmul.f32 %v163, %v267
        %v284 = vmul.f32 %v164, %v268
        %v285 = vmul.f32 %v165, %v269
        %v294 = vrot.slane %v238, 4
        %v295 = vrot.slane %v239, 4
        %v296 = vrot.slane %v240, 4
        %v297 = vrot.slane %v241, 4
        %v298 = vrot.slane %v242, 4
        %v299 = vrot.slane %v243, 4
        %v300 = vrot.slane %v244, 4
        %v301 = vrot.slane %v245, 4
        %v310 = vadd.f32 %v278, %v294
        %v311 = vadd.f32 %v279, %v295
        %v312 = vadd.f32 %v280, %v296
        %v313 = vadd.f32 %v281, %v297
        %v314 = vadd.f32 %v282, %v298
        %v315 = vadd.f32 %v283, %v299
        %v316 = vadd.f32 %v284, %v300
        %v317 = vadd.f32 %v285, %v301
        %v318 = vmul.f32 %v246, 1.442695
        %v319 = vpow.pop %v318
        %v320 = vmul.f32 %v247, 1.442695
        %v321 = vpow.pop %v320
        %v322 = vmul.f32 %v248, 1.442695
        %v323 = vpow.pop %v322
        %v324 = vmul.f32 %v249, 1.442695
        %v325 = vpow.pop %v324
        %v326 = vmul.f32 %v250, 1.442695
        %v327 = vpow.pop %v326
        %v328 = vmul.f32 %v251, 1.442695
        %v329 = vpow.pop %v328
        %v330 = vmul.f32 %v252, 1.442695
        %v331 = vpow.pop %v330
        %v332 = vmul.f32 %v253, 1.442695
        %v333 = vpow.pop %v332
        %v334 = vrot.slane %v198, 4
        %v335 = vrot.slane %v199, 4
        %v336 = vrot.slane %v200, 4
        %v337 = vrot.slane %v201, 4
        %v338 = vrot.slane %v202, 4
        %v339 = vrot.slane %v203, 4
        %v340 = vrot.slane %v204, 4
        %v341 = vrot.slane %v205, 4
        %v350 = vmul.f32 %v319, %v334
        %v351 = vmul.f32 %v321, %v335
        %v352 = vmul.f32 %v323, %v336
        %v353 = vmul.f32 %v325, %v337
        %v354 = vmul.f32 %v327, %v338
        %v355 = vmul.f32 %v329, %v339
        %v356 = vmul.f32 %v331, %v340
        %v357 = vmul.f32 %v333, %v341
        %s358 = smul.u32 %s14, 128
        %s359 = sld [smem:[#allocation2 + %s358]]
        %s360 = sadd.s32 %s358, 1
        %s361 = sld [smem:[#allocation2 + %s360]]
        %v362 = vmul.f32 %v350, 0.5
        %v363 = vmul.f32 %v351, 0.5
        %v364 = vmul.f32 %v352, 0.5
        %v365 = vmul.f32 %v353, 0.5
        %v366 = vmul.f32 %v354, 0.5
        %v367 = vmul.f32 %v355, 0.5
        %v368 = vmul.f32 %v356, 0.5
        %v369 = vmul.f32 %v357, 0.5
        %v378 = vrot.slane %v362, 2
        %v379 = vrot.slane %v363, 2
        %v380 = vrot.slane %v364, 2
        %v381 = vrot.slane %v365, 2
        %v382 = vrot.slane %v366, 2
        %v383 = vrot.slane %v367, 2
        %v384 = vrot.slane %v368, 2
        %v385 = vrot.slane %v369, 2
        %v394 = vsub.f32 %v310, %v378
        %v395 = vsub.f32 %v311, %v379
        %v396 = vsub.f32 %v312, %v380
        %v397 = vsub.f32 %v313, %v381
        %v398 = vsub.f32 %v314, %v382
        %v399 = vsub.f32 %v315, %v383
        %v400 = vsub.f32 %v316, %v384
        %v401 = vsub.f32 %v317, %v385
        %s402 = ssub.f32 %s361, 1.0
        %v403 = vmax.f32 %v394, 0.0
        %v404 = vmax.f32 %v395, 0.0
        %v405 = vmax.f32 %v396, 0.0
        %v406 = vmax.f32 %v397, 0.0
        %v407 = vmax.f32 %v398, 0.0
        %v408 = vmax.f32 %v399, 0.0
        %v409 = vmax.f32 %v400, 0.0
        %v410 = vmax.f32 %v401, 0.0
        %v411 = vstv %s402
        %v412 = vmin.f32 %v411, %v403
        %v413 = vmin.f32 %v411, %v404
        %v414 = vmin.f32 %v411, %v405
        %v415 = vmin.f32 %v411, %v406
        %v416 = vmin.f32 %v411, %v407
        %v417 = vmin.f32 %v411, %v408
        %v418 = vmin.f32 %v411, %v409
        %v419 = vmin.f32 %v411, %v410
        %s420 = ssub.f32 %s359, 1.0
        %v421 = vstv %s420
        %v422 = vmin.f32 %v421, %v403
        %v423 = vmin.f32 %v421, %v404
        %v424 = vmin.f32 %v421, %v405
        %v425 = vmin.f32 %v421, %v406
        %v426 = vmin.f32 %v421, %v407
        %v427 = vmin.f32 %v421, %v408
        %v428 = vmin.f32 %v421, %v409
        %v429 = vmin.f32 %v421, %v410
        %v430 = vadd.f32 %v310, %v378
        %v431 = vadd.f32 %v311, %v379
        %v432 = vadd.f32 %v312, %v380
        %v433 = vadd.f32 %v313, %v381
        %v434 = vadd.f32 %v314, %v382
        %v435 = vadd.f32 %v315, %v383
        %v436 = vadd.f32 %v316, %v384
        %v437 = vadd.f32 %v317, %v385
        %v438 = vsub.f32 %v430, 1.0
        %v439 = vsub.f32 %v431, 1.0
        %v440 = vsub.f32 %v432, 1.0
        %v441 = vsub.f32 %v433, 1.0
        %v442 = vsub.f32 %v434, 1.0
        %v443 = vsub.f32 %v435, 1.0
        %v444 = vsub.f32 %v436, 1.0
        %v445 = vsub.f32 %v437, 1.0
        %v446 = vmax.f32 %v438, 0.0
        %v447 = vmax.f32 %v439, 0.0
        %v448 = vmax.f32 %v440, 0.0
        %v449 = vmax.f32 %v441, 0.0
        %v450 = vmax.f32 %v442, 0.0
        %v451 = vmax.f32 %v443, 0.0
        %v452 = vmax.f32 %v444, 0.0
        %v453 = vmax.f32 %v445, 0.0
        %v454 = vmin.f32 %v411, %v446
        %v455 = vmin.f32 %v411, %v447
        %v456 = vmin.f32 %v411, %v448
        %v457 = vmin.f32 %v411, %v449
        %v458 = vmin.f32 %v411, %v450
        %v459 = vmin.f32 %v411, %v451
        %v460 = vmin.f32 %v411, %v452
        %v461 = vmin.f32 %v411, %v453
        %v462 = vmin.f32 %v421, %v446
        %v463 = vmin.f32 %v421, %v447
        %v464 = vmin.f32 %v421, %v448
        %v465 = vmin.f32 %v421, %v449
        %v466 = vmin.f32 %v421, %v450
        %v467 = vmin.f32 %v421, %v451
        %v468 = vmin.f32 %v421, %v452
        %v469 = vmin.f32 %v421, %v453
        %v478 = vrot.slane %v412, 4
        %v479 = vrot.slane %v413, 4
        %v480 = vrot.slane %v414, 4
        %v481 = vrot.slane %v415, 4
        %v482 = vrot.slane %v416, 4
        %v483 = vrot.slane %v417, 4
        %v484 = vrot.slane %v418, 4
        %v485 = vrot.slane %v419, 4
        %v502 = vrot.slane %v422, 4
        %v503 = vrot.slane %v423, 4
        %v504 = vrot.slane %v424, 4
        %v505 = vrot.slane %v425, 4
        %v506 = vrot.slane %v426, 4
        %v507 = vrot.slane %v427, 4
        %v508 = vrot.slane %v428, 4
        %v509 = vrot.slane %v429, 4
        %v526 = vrot.slane %v454, 2
        %v527 = vrot.slane %v455, 2
        %v528 = vrot.slane %v456, 2
        %v529 = vrot.slane %v457, 2
        %v530 = vrot.slane %v458, 2
        %v531 = vrot.slane %v459, 2
        %v532 = vrot.slane %v460, 2
        %v533 = vrot.slane %v461, 2
        %v550 = vrot.slane %v462, 2
        %v551 = vrot.slane %v463, 2
        %v552 = vrot.slane %v464, 2
        %v553 = vrot.slane %v465, 2
        %v554 = vrot.slane %v466, 2
        %v555 = vrot.slane %v467, 2
        %v556 = vrot.slane %v468, 2
        %v557 = vrot.slane %v469, 2
        %vm566 = vcmask 1040384
        %v567 = vsel %vm566, %v478, %v502
        %v568 = vsel %vm566, %v479, %v503
        %v569 = vsel %vm566, %v480, %v504
        %v570 = vsel %vm566, %v481, %v505
        %v571 = vsel %vm566, %v482, %v506
        %v572 = vsel %vm566, %v483, %v507
        %v573 = vsel %vm566, %v484, %v508
        %v574 = vsel %vm566, %v485, %v509
        %vm575 = vcmask 1041408
        %v576 = vsel %vm575, %v567, %v526
        %v577 = vsel %vm575, %v568, %v527
        %v578 = vsel %vm575, %v569, %v528
        %v579 = vsel %vm575, %v570, %v529
        %v580 = vsel %vm575, %v571, %v530
        %v581 = vsel %vm575, %v572, %v531
        %v582 = vsel %vm575, %v573, %v532
        %v583 = vsel %vm575, %v574, %v533
        %vm584 = vcmask 1042432
        %v585 = vsel %vm584, %v576, %v550
        %v586 = vsel %vm584, %v577, %v551
        %v587 = vsel %vm584, %v578, %v552
        %v588 = vsel %vm584, %v579, %v553
        %v589 = vsel %vm584, %v580, %v554
        %v590 = vsel %vm584, %v581, %v555
        %v591 = vsel %vm584, %v582, %v556
        %v592 = vsel %vm584, %v583, %v557
        %v601 = vcombine.low %v585, %v586
        %v602 = vcombine.low %v587, %v588
        %v603 = vcombine.low %v589, %v590
        %v604 = vcombine.low %v591, %v592
        %609 = vst [vmem:[%s157] sm:$0xff] %v601
        %610 = vst [vmem:[%s157 + $0x8] sm:$0xff] %v602
        %611 = vst [vmem:[%s157 + $0x10] sm:$0xff] %v603
        %612 = vst [vmem:[%s157 + $0x18] sm:$0xff] %v604
        %p613 = scmp.lt.s32.totalorder %s14, 1
        %s614 = scalar_select %p613, %s14, 1
        %s615 = smul.addr %s614, 8
        %s616 = smul.addr %s615, 4
        %s617 = scalar_lea.vmem %s2, %s616
        // Predicated region
        $region33: #{generalized_rcnn_forward.15} parent=27 // pred_check
          %p618 = pneg %p79
        $region34: #{generalized_rcnn_forward.15} parent=27 // pred_check_branch
          %620 = sbr.rel (%p618) target = $region36
        $region35: #{generalized_rcnn_forward.15} parent=27 // pred_region
          _
        $region36: #{generalized_rcnn_forward.15} parent=27 // pred_fallthru
          _
      $region28: #{generalized_rcnn_forward.15} parent=5 // pred_fallthru
        _
      %p621 = scmp.le.s32.totalorder 2, %s9
      // Predicated region
      $region37: #{generalized_rcnn_forward.15} parent=5 // pred_check
        %p622 = pneg %p621
      $region38: #{generalized_rcnn_forward.15} parent=5 // pred_check_branch
        %624 = sbr.rel (%p622) target = $region40
      $region39: #{generalized_rcnn_forward.15} parent=5 // pred_region
        %s625 = ssub.s32 %s9, 2
        // Predicated region
        $region41: #{generalized_rcnn_forward.15} parent=39 // pred_check
          %p626 = pneg %p85
        $region42: #{generalized_rcnn_forward.15} parent=39 // pred_check_branch
          %628 = sbr.rel (%p626) target = $region44
        $region43: #{generalized_rcnn_forward.15} parent=39 // pred_region
          %p629 = scmp.lt.s32.totalorder %s15, 1
          %s630 = scalar_select %p629, %s15, 1
          %s631 = smul.addr %s630, 8
          %s632 = smul.addr %s631, 4
          %s633 = scalar_lea.vmem %s2, %s632
        $region44: #{generalized_rcnn_forward.15} parent=39 // pred_fallthru
          _
      $region40: #{generalized_rcnn_forward.15} parent=5 // pred_fallthru
        _
    $region6: #{generalized_rcnn_forward.15} parent=1 // loop_footer
      %s13 = sadd.s32 1, %s9
    $region7: #{generalized_rcnn_forward.15} parent=1 // loop_footer_branch
      %8 = sbr.rel target = $region3
    $region8: #{generalized_rcnn_forward.15} parent=1 // loop_exit
      _
    %634 = vsyncpa [#allocation3], 1
    %s635 = scalar_lea.sflag [#allocation3], 1
    %636 = vsyncpa %s635, 1

</llo_original>
